<compile_context>
chip_gen: v6e
topology: v6e:2x2x1
jax: 0.10.0
libtpu: 0.0.40
codegen_flags: <defaults>
</compile_context>

<pallas_src>
import jax
import jax.numpy as jnp
from jax import lax
from jax.experimental import pallas as pl
from jax.experimental.pallas import tpu as pltpu
import numpy as np


def _gru_rec_kernel(x_emb_ref, pr_ref,
                    w_ih1e_ref, w_pr_ref, b_gi1_ref,
                    w_hh1_ref, b_hh1_ref,
                    w_ih2_ref, b_ih2_ref,
                    w_hh2_ref, b_hh2_ref,
                    w_fc_ref, b_fc_ref,
                    out_ref,
                    h1_ref, h2_ref, h2seq_ref):
    """One (batch-block, time-block) grid step.

    x_emb_ref : (Bb, Tt, E)  f32   item embeddings for this block
    pr_ref    : (Bb, Tt, 1)  f32   raw prices
    w_ih1e    : (E, 3H)  bf16      layer-0 input weights (embedding part), gate-fused
    w_pr      : (1, 3H)  f32       price column folded through layer-0 input weights
    b_gi1     : (1, 3H)  f32       b_ih_l0 + price bias folded through layer-0 weights
    w_hh1/2   : (H, 3H)  bf16      recurrent weights, gate-fused, pre-transposed
    w_ih2     : (H, 3H)  bf16      layer-1 input weights, gate-fused, pre-transposed
    b_hh1/b_ih2/b_hh2 : (1, 3H) f32
    w_fc      : (H, Np)  bf16 ; b_fc : (1, Np) f32
    out_ref   : (Bb, Tt, Np) f32
    scratch   : h1, h2 (Bb, H) f32 ; h2seq (Bb, Tt, H) f32
    """
    tb = pl.program_id(1)
    Bb, Tt, E = x_emb_ref.shape
    H = w_hh1_ref.shape[0]
    Np = w_fc_ref.shape[1]

    # Reset hidden state at the start of every batch block's time sweep.
    @pl.when(tb == 0)
    def _():
        h1_ref[...] = jnp.zeros(h1_ref.shape, h1_ref.dtype)
        h2_ref[...] = jnp.zeros(h2_ref.shape, h2_ref.dtype)

    # ---- block prologue: layer-0 input projection for all Tt steps at once ----
    # gi1 = x_emb @ W_ih1[:, :E].T + price * (W_ih1[:, E:] @ w_price) + fused bias
    x_flat = x_emb_ref[...].reshape(Bb * Tt, E).astype(jnp.bfloat16)
    gi1_flat = jnp.dot(x_flat, w_ih1e_ref[...], preferred_element_type=jnp.float32)
    gi1_blk = gi1_flat.reshape(Bb, Tt, 3 * H)
    gi1_blk = gi1_blk + pr_ref[...] * w_pr_ref[...] + b_gi1_ref[...]   # (Bb, Tt, 3H) f32

    # hoist weight / bias loads out of the serial loop
    w_hh1 = w_hh1_ref[...]
    w_ih2 = w_ih2_ref[...]
    w_hh2 = w_hh2_ref[...]
    b_hh1 = b_hh1_ref[...]
    b_ih2 = b_ih2_ref[...]
    b_hh2 = b_hh2_ref[...]

    def gru_gates(gi, gh, h):
        # PyTorch gate order along the fused 3H axis: [reset | update | new]
        rz = jax.nn.sigmoid(gi[:, :2 * H] + gh[:, :2 * H])
        r, z = rz[:, :H], rz[:, H:]
        n = jnp.tanh(gi[:, 2 * H:] + r * gh[:, 2 * H:])   # b_hn already inside gh
        return (1.0 - z) * n + z * h

    # ---- serial recurrence over the Tt steps of this block (static unroll) ----
    h1 = h1_ref[...]
    h2 = h2_ref[...]
    for s in range(Tt):
        gi1_s = gi1_blk[:, s, :]                                        # (Bb, 3H)
        gh1 = jnp.dot(h1.astype(jnp.bfloat16), w_hh1,
                      preferred_element_type=jnp.float32) + b_hh1
        h1 = gru_gates(gi1_s, gh1, h1)

        gi2 = jnp.dot(h1.astype(jnp.bfloat16), w_ih2,
                      preferred_element_type=jnp.float32) + b_ih2
        gh2 = jnp.dot(h2.astype(jnp.bfloat16), w_hh2,
                      preferred_element_type=jnp.float32) + b_hh2
        h2 = gru_gates(gi2, gh2, h2)

        h2seq_ref[:, s:s + 1, :] = h2[:, None, :]                       # stage for fc

    h1_ref[...] = h1
    h2_ref[...] = h2

    # ---- block epilogue: one big fc matmul over all Bb*Tt rows ----
    h2_flat = h2seq_ref[...].reshape(Bb * Tt, H).astype(jnp.bfloat16)
    logits = jnp.dot(h2_flat, w_fc_ref[...],
                     preferred_element_type=jnp.float32) + b_fc_ref[...]
    out_ref[...] = logits.reshape(Bb, Tt, Np).astype(out_ref.dtype)


def gru_rec_forward(items, prices, params, *, time_block=8, batch_block=8):
    """Pallas implementation of _GRURec.forward. items, prices: (B, T) -> logits (B, T, N)."""
    B, T = items.shape
    E = params["item_emb"].shape[1]
    H = params["gru_w_hh_l0"].shape[1]
    N = params["fc_w"].shape[0]

    Bb = batch_block
    Tt = time_block
    Bp = pl.cdiv(B, Bb) * Bb          # batch padded to sublane-multiple blocks
    Tp = pl.cdiv(T, Tt) * Tt          # time padded to whole blocks
    Np = pl.cdiv(N, 128) * 128        # vocab padded to lane multiple (dense stores)

    f32, bf16 = jnp.float32, jnp.bfloat16

    # Embedding gather is glue (data-dependent lookup); padding row 0 is zero.
    x_emb = params["item_emb"][items].astype(f32)                     # (B, T, E)
    x_emb = jnp.pad(x_emb, ((0, Bp - B), (0, Tp - T), (0, 0)))
    pr = prices.astype(f32)[..., None]                                # (B, T, 1)
    pr = jnp.pad(pr, ((0, Bp - B), (0, Tp - T), (0, 0)))

    # ---- weight repacking: gate-fused, pre-transposed, price Linear folded ----
    W1 = params["gru_w_ih_l0"]                  # (3H, E+P), PyTorch gate order r|z|n
    W1_e, W1_p = W1[:, :E], W1[:, E:]
    w_ih1e = W1_e.T.astype(bf16)                                                # (E, 3H)
    w_pr = (W1_p @ params["price_w"][:, 0]).reshape(1, 3 * H).astype(f32)       # (1, 3H)
    b_gi1 = (params["gru_b_ih_l0"] + W1_p @ params["price_b"]
             ).reshape(1, 3 * H).astype(f32)                                    # (1, 3H)

    w_hh1 = params["gru_w_hh_l0"].T.astype(bf16)                                # (H, 3H)
    b_hh1 = params["gru_b_hh_l0"].reshape(1, 3 * H).astype(f32)
    w_ih2 = params["gru_w_ih_l1"].T.astype(bf16)                                # (H, 3H)
    b_ih2 = params["gru_b_ih_l1"].reshape(1, 3 * H).astype(f32)
    w_hh2 = params["gru_w_hh_l1"].T.astype(bf16)
    b_hh2 = params["gru_b_hh_l1"].reshape(1, 3 * H).astype(f32)

    w_fc = jnp.zeros((H, Np), bf16).at[:, :N].set(params["fc_w"].T.astype(bf16))
    b_fc = jnp.zeros((1, Np), f32).at[:, :N].set(params["fc_b"].astype(f32))

    grid = (Bp // Bb, Tp // Tt)

    def full_spec(a):
        nd = a.ndim

        def idx(bb, tb):
            return (0,) * nd
        return pl.BlockSpec(a.shape, idx)

    out = pl.pallas_call(
        _gru_rec_kernel,
        out_shape=jax.ShapeDtypeStruct((Bp, Tp, Np), f32),
        grid_spec=pltpu.PrefetchScalarGridSpec(
            num_scalar_prefetch=0,
            grid=grid,
            in_specs=[
                pl.BlockSpec((Bb, Tt, E), lambda bb, tb: (bb, tb, 0)),   # embeddings
                pl.BlockSpec((Bb, Tt, 1), lambda bb, tb: (bb, tb, 0)),   # prices
                full_spec(w_ih1e), full_spec(w_pr), full_spec(b_gi1),
                full_spec(w_hh1), full_spec(b_hh1),
                full_spec(w_ih2), full_spec(b_ih2),
                full_spec(w_hh2), full_spec(b_hh2),
                full_spec(w_fc), full_spec(b_fc),
            ],
            out_specs=pl.BlockSpec((Bb, Tt, Np), lambda bb, tb: (bb, tb, 0)),
            scratch_shapes=[
                pltpu.VMEM((Bb, H), f32),        # layer-0 hidden state (persists over tb)
                pltpu.VMEM((Bb, H), f32),        # layer-1 hidden state
                pltpu.VMEM((Bb, Tt, H), f32),    # staged h2 sequence for the fc matmul
            ],
        ),
        compiler_params=pltpu.CompilerParams(
            dimension_semantics=("parallel", "arbitrary"),
        ),
    )(x_emb, pr,
      w_ih1e, w_pr, b_gi1,
      w_hh1, b_hh1, w_ih2, b_ih2, w_hh2, b_hh2,
      w_fc, b_fc)

    return out[:B, :T, :N]


def gru_rec_reference(items, prices, params):
    """Pure-JAX reference (mirrors PyTorch nn.GRU math) for validation."""
    H = params["gru_w_hh_l0"].shape[1]
    emb = params["item_emb"][items]                                          # (B, T, E)
    pf = prices[..., None] * params["price_w"][:, 0] + params["price_b"]     # (B, T, P)
    x = jnp.transpose(jnp.concatenate([emb, pf], axis=-1), (1, 0, 2))        # (T, B, D)

    def layer(x_seq, w_ih, w_hh, b_ih, b_hh):
        def step(h, xt):
            gi = xt @ w_ih.T + b_ih
            gh = h @ w_hh.T + b_hh
            r = jax.nn.sigmoid(gi[:, :H] + gh[:, :H])
            z = jax.nn.sigmoid(gi[:, H:2 * H] + gh[:, H:2 * H])
            n = jnp.tanh(gi[:, 2 * H:] + r * gh[:, 2 * H:])
            h_new = (1.0 - z) * n + z * h
            return h_new, h_new
        h0 = jnp.zeros((x_seq.shape[1], H), jnp.float32)
        _, ys = lax.scan(step, h0, x_seq)
        return ys

    h1 = layer(x, params["gru_w_ih_l0"], params["gru_w_hh_l0"],
               params["gru_b_ih_l0"], params["gru_b_hh_l0"])
    h2 = layer(h1, params["gru_w_ih_l1"], params["gru_w_hh_l1"],
               params["gru_b_ih_l1"], params["gru_b_hh_l1"])
    logits = h2 @ params["fc_w"].T + params["fc_b"]                          # (T, B, N)
    return jnp.transpose(logits, (1, 0, 2))


if __name__ == "__main__":
    key = jax.random.PRNGKey(0)
    B, T = 2, 16
    num_items, emb_dim, hidden, price_emb_dim = 200, 16, 32, 16
    D = emb_dim + price_emb_dim
    keys = jax.random.split(key, 16)

    def u(k, shape, scale=0.1):
        return jax.random.uniform(k, shape, jnp.float32, -scale, scale)

    item_emb = u(keys[0], (num_items, emb_dim))
    item_emb = item_emb.at[0].set(0.0)   # padding_idx=0 row is zero

    params = dict(
        item_emb=item_emb,
        price_w=u(keys[1], (price_emb_dim, 1)),
        price_b=u(keys[2], (price_emb_dim,)),
        gru_w_ih_l0=u(keys[3], (3 * hidden, D)),
        gru_w_hh_l0=u(keys[4], (3 * hidden, hidden)),
        gru_b_ih_l0=u(keys[5], (3 * hidden,)),
        gru_b_hh_l0=u(keys[6], (3 * hidden,)),
        gru_w_ih_l1=u(keys[7], (3 * hidden, hidden)),
        gru_w_hh_l1=u(keys[8], (3 * hidden, hidden)),
        gru_b_ih_l1=u(keys[9], (3 * hidden,)),
        gru_b_hh_l1=u(keys[10], (3 * hidden,)),
        fc_w=u(keys[11], (num_items, hidden)),
        fc_b=u(keys[12], (num_items,)),
    )

    items = jax.random.randint(keys[13], (B, T), 0, num_items)
    prices = jax.random.uniform(keys[14], (B, T), jnp.float32, 0.0, 5.0)

    logits = jax.block_until_ready(gru_rec_forward(items, prices, params))
    ref = jax.block_until_ready(gru_rec_reference(items, prices, params))
    np.testing.assert_allclose(np.asarray(logits), np.asarray(ref), rtol=2e-2, atol=2e-2)
    # predict_last equivalent would just be logits[:, -1]
    print("KERNEL_OK")
</pallas_src>

<mosaic_0001>
module attributes {stable_mosaic.version = 11 : i64} {
  func.func @_gru_rec_kernel(%arg0: i32, %arg1: i32, %arg2: memref<8x8x16xf32, #tpu.memory_space<vmem>>, %arg3: memref<8x8x1xf32, #tpu.memory_space<vmem>>, %arg4: memref<16x96xbf16, #tpu.memory_space<vmem>>, %arg5: memref<1x96xf32, #tpu.memory_space<vmem>>, %arg6: memref<1x96xf32, #tpu.memory_space<vmem>>, %arg7: memref<32x96xbf16, #tpu.memory_space<vmem>>, %arg8: memref<1x96xf32, #tpu.memory_space<vmem>>, %arg9: memref<32x96xbf16, #tpu.memory_space<vmem>>, %arg10: memref<1x96xf32, #tpu.memory_space<vmem>>, %arg11: memref<32x96xbf16, #tpu.memory_space<vmem>>, %arg12: memref<1x96xf32, #tpu.memory_space<vmem>>, %arg13: memref<32x256xbf16, #tpu.memory_space<vmem>>, %arg14: memref<1x256xf32, #tpu.memory_space<vmem>>, %arg15: memref<8x8x256xf32, #tpu.memory_space<vmem>>, %arg16: memref<8x32xf32, #tpu.memory_space<vmem>>, %arg17: memref<8x32xf32, #tpu.memory_space<vmem>>, %arg18: memref<8x8x32xf32, #tpu.memory_space<vmem>>) attributes {dimension_semantics = [#tpu.dimension_semantics<parallel>, #tpu.dimension_semantics<arbitrary>], iteration_bounds = array<i64: 1, 2>, scalar_prefetch = 0 : i64, scratch_operands = 3 : i64, tpu.core_type = #tpu.core_type<tc>, window_params = [{transform_indices = @transform_0, window_bounds = array<i64: 8, 8, 16>}, {transform_indices = @transform_1, window_bounds = array<i64: 8, 8, 1>}, {pipeline_mode = #tpu.pipeline_mode<synchronous>, transform_indices = @transform_2, window_bounds = array<i64: 16, 96>}, {pipeline_mode = #tpu.pipeline_mode<synchronous>, transform_indices = @transform_3, window_bounds = array<i64: 1, 96>}, {pipeline_mode = #tpu.pipeline_mode<synchronous>, transform_indices = @transform_4, window_bounds = array<i64: 1, 96>}, {pipeline_mode = #tpu.pipeline_mode<synchronous>, transform_indices = @transform_5, window_bounds = array<i64: 32, 96>}, {pipeline_mode = #tpu.pipeline_mode<synchronous>, transform_indices = @transform_6, window_bounds = array<i64: 1, 96>}, {pipeline_mode = #tpu.pipeline_mode<synchronous>, transform_indices = @transform_7, window_bounds = array<i64: 32, 96>}, {pipeline_mode = #tpu.pipeline_mode<synchronous>, transform_indices = @transform_8, window_bounds = array<i64: 1, 96>}, {pipeline_mode = #tpu.pipeline_mode<synchronous>, transform_indices = @transform_9, window_bounds = array<i64: 32, 96>}, {pipeline_mode = #tpu.pipeline_mode<synchronous>, transform_indices = @transform_10, window_bounds = array<i64: 1, 96>}, {pipeline_mode = #tpu.pipeline_mode<synchronous>, transform_indices = @transform_11, window_bounds = array<i64: 32, 256>}, {pipeline_mode = #tpu.pipeline_mode<synchronous>, transform_indices = @transform_12, window_bounds = array<i64: 1, 256>}, {transform_indices = @transform_13, window_bounds = array<i64: 8, 8, 256>}]} {
    %c0_i32 = arith.constant 0 : i32
    %0 = arith.cmpi eq, %arg1, %c0_i32 : i32
    %1 = arith.extui %0 : i1 to i32
    %c0_i32_0 = arith.constant 0 : i32
    %2 = arith.cmpi ne, %1, %c0_i32_0 : i32
    scf.if %2 {
      %cst_116 = arith.constant 0.000000e+00 : f32
      %488 = vector.broadcast %cst_116 : f32 to vector<8x32xf32>
      %c0_117 = arith.constant 0 : index
      %c0_118 = arith.constant 0 : index
      %489 = vector.load %arg16[%c0_117, %c0_118] : memref<8x32xf32, #tpu.memory_space<vmem>>, vector<8x32xf32>
      tpu.vector_store %arg16[%c0_117, %c0_118], %488 {strides = array<i32>} : memref<8x32xf32, #tpu.memory_space<vmem>>, vector<8x32xf32>,
      %cst_119 = arith.constant 0.000000e+00 : f32
      %490 = vector.broadcast %cst_119 : f32 to vector<8x32xf32>
      %c0_120 = arith.constant 0 : index
      %c0_121 = arith.constant 0 : index
      %491 = vector.load %arg17[%c0_120, %c0_121] : memref<8x32xf32, #tpu.memory_space<vmem>>, vector<8x32xf32>
      tpu.vector_store %arg17[%c0_120, %c0_121], %490 {strides = array<i32>} : memref<8x32xf32, #tpu.memory_space<vmem>>, vector<8x32xf32>,
    } else {
    }
    %c0 = arith.constant 0 : index
    %c0_1 = arith.constant 0 : index
    %c0_2 = arith.constant 0 : index
    %3 = vector.load %arg2[%c0, %c0_1, %c0_2] : memref<8x8x16xf32, #tpu.memory_space<vmem>>, vector<8x8x16xf32>
    %4 = vector.shape_cast %3 : vector<8x8x16xf32> to vector<64x16xf32>
    %5 = arith.truncf %4 : vector<64x16xf32> to vector<64x16xbf16>
    %c0_3 = arith.constant 0 : index
    %c0_4 = arith.constant 0 : index
    %6 = vector.load %arg4[%c0_3, %c0_4] : memref<16x96xbf16, #tpu.memory_space<vmem>>, vector<16x96xbf16>
    %cst = arith.constant dense<0.000000e+00> : vector<64x96xf32>
    %7 = tpu.matmul %5, %6, %cst {dimension_numbers = #tpu.dot_dimension_numbers<[1], [0], [0], [1], [0, 0, 1, 1], [], []>} : vector<64x16xbf16>, vector<16x96xbf16>, vector<64x96xf32> -> vector<64x96xf32>
    %8 = vector.shape_cast %7 : vector<64x96xf32> to vector<8x8x96xf32>
    %c0_5 = arith.constant 0 : index
    %c0_6 = arith.constant 0 : index
    %c0_7 = arith.constant 0 : index
    %9 = vector.load %arg3[%c0_5, %c0_6, %c0_7] : memref<8x8x1xf32, #tpu.memory_space<vmem>>, vector<8x8x1xf32>
    %c0_8 = arith.constant 0 : index
    %c0_9 = arith.constant 0 : index
    %10 = vector.load %arg5[%c0_8, %c0_9] : memref<1x96xf32, #tpu.memory_space<vmem>>, vector<1x96xf32>
    %11 = vector.shape_cast %10 : vector<1x96xf32> to vector<1x1x96xf32>
    %12 = vector.broadcast %9 : vector<8x8x1xf32> to vector<8x8x96xf32>
    %13 = vector.broadcast %11 : vector<1x1x96xf32> to vector<8x8x96xf32>
    %14 = arith.mulf %12, %13 : vector<8x8x96xf32>
    %15 = arith.addf %8, %14 : vector<8x8x96xf32>
    %c0_10 = arith.constant 0 : index
    %c0_11 = arith.constant 0 : index
    %16 = vector.load %arg6[%c0_10, %c0_11] : memref<1x96xf32, #tpu.memory_space<vmem>>, vector<1x96xf32>
    %17 = vector.shape_cast %16 : vector<1x96xf32> to vector<1x1x96xf32>
    %18 = vector.broadcast %17 : vector<1x1x96xf32> to vector<8x8x96xf32>
    %19 = arith.addf %15, %18 : vector<8x8x96xf32>
    %c0_12 = arith.constant 0 : index
    %c0_13 = arith.constant 0 : index
    %20 = vector.load %arg7[%c0_12, %c0_13] : memref<32x96xbf16, #tpu.memory_space<vmem>>, vector<32x96xbf16>
    %c0_14 = arith.constant 0 : index
    %c0_15 = arith.constant 0 : index
    %21 = vector.load %arg9[%c0_14, %c0_15] : memref<32x96xbf16, #tpu.memory_space<vmem>>, vector<32x96xbf16>
    %c0_16 = arith.constant 0 : index
    %c0_17 = arith.constant 0 : index
    %22 = vector.load %arg11[%c0_16, %c0_17] : memref<32x96xbf16, #tpu.memory_space<vmem>>, vector<32x96xbf16>
    %c0_18 = arith.constant 0 : index
    %c0_19 = arith.constant 0 : index
    %23 = vector.load %arg8[%c0_18, %c0_19] : memref<1x96xf32, #tpu.memory_space<vmem>>, vector<1x96xf32>
    %c0_20 = arith.constant 0 : index
    %c0_21 = arith.constant 0 : index
    %24 = vector.load %arg10[%c0_20, %c0_21] : memref<1x96xf32, #tpu.memory_space<vmem>>, vector<1x96xf32>
    %c0_22 = arith.constant 0 : index
    %c0_23 = arith.constant 0 : index
    %25 = vector.load %arg12[%c0_22, %c0_23] : memref<1x96xf32, #tpu.memory_space<vmem>>, vector<1x96xf32>
    %c0_24 = arith.constant 0 : index
    %c0_25 = arith.constant 0 : index
    %26 = vector.load %arg16[%c0_24, %c0_25] : memref<8x32xf32, #tpu.memory_space<vmem>>, vector<8x32xf32>
    %c0_26 = arith.constant 0 : index
    %c0_27 = arith.constant 0 : index
    %27 = vector.load %arg17[%c0_26, %c0_27] : memref<8x32xf32, #tpu.memory_space<vmem>>, vector<8x32xf32>
    %28 = vector.extract_strided_slice %19 {offsets = [0, 0, 0], sizes = [8, 1, 96], strides = [1, 1, 1]} : vector<8x8x96xf32> to vector<8x1x96xf32>
    %29 = vector.shape_cast %28 : vector<8x1x96xf32> to vector<8x96xf32>
    %30 = arith.truncf %26 : vector<8x32xf32> to vector<8x32xbf16>
    %cst_28 = arith.constant dense<0.000000e+00> : vector<8x96xf32>
    %31 = tpu.matmul %30, %20, %cst_28 {dimension_numbers = #tpu.dot_dimension_numbers<[1], [0], [0], [1], [0, 0, 1, 1], [], []>} : vector<8x32xbf16>, vector<32x96xbf16>, vector<8x96xf32> -> vector<8x96xf32>
    %32 = vector.broadcast %23 : vector<1x96xf32> to vector<8x96xf32>
    %33 = arith.addf %31, %32 : vector<8x96xf32>
    %34 = vector.extract_strided_slice %29 {offsets = [0, 0], sizes = [8, 64], strides = [1, 1]} : vector<8x96xf32> to vector<8x64xf32>
    %35 = vector.extract_strided_slice %33 {offsets = [0, 0], sizes = [8, 64], strides = [1, 1]} : vector<8x96xf32> to vector<8x64xf32>
    %36 = arith.addf %34, %35 : vector<8x64xf32>
    %37 = arith.negf %36 : vector<8x64xf32>
    %38 = math.exp %37 : vector<8x64xf32>
    %cst_29 = arith.constant 1.000000e+00 : f32
    %39 = vector.broadcast %cst_29 : f32 to vector<8x64xf32>
    %40 = arith.addf %39, %38 : vector<8x64xf32>
    %41 = arith.divf %39, %40 : vector<8x64xf32>
    %42 = vector.extract_strided_slice %41 {offsets = [0, 0], sizes = [8, 32], strides = [1, 1]} : vector<8x64xf32> to vector<8x32xf32>
    %43 = vector.extract_strided_slice %41 {offsets = [0, 32], sizes = [8, 32], strides = [1, 1]} : vector<8x64xf32> to vector<8x32xf32>
    %44 = vector.extract_strided_slice %29 {offsets = [0, 64], sizes = [8, 32], strides = [1, 1]} : vector<8x96xf32> to vector<8x32xf32>
    %45 = vector.extract_strided_slice %33 {offsets = [0, 64], sizes = [8, 32], strides = [1, 1]} : vector<8x96xf32> to vector<8x32xf32>
    %46 = arith.mulf %42, %45 : vector<8x32xf32>
    %47 = arith.addf %44, %46 : vector<8x32xf32>
    %48 = math.tanh %47 : vector<8x32xf32>
    %cst_30 = arith.constant 1.000000e+00 : f32
    %49 = vector.broadcast %cst_30 : f32 to vector<8x32xf32>
    %50 = arith.subf %49, %43 : vector<8x32xf32>
    %51 = arith.mulf %50, %48 : vector<8x32xf32>
    %52 = arith.mulf %43, %26 : vector<8x32xf32>
    %53 = arith.addf %51, %52 : vector<8x32xf32>
    %54 = arith.truncf %53 : vector<8x32xf32> to vector<8x32xbf16>
    %cst_31 = arith.constant dense<0.000000e+00> : vector<8x96xf32>
    %55 = tpu.matmul %54, %21, %cst_31 {dimension_numbers = #tpu.dot_dimension_numbers<[1], [0], [0], [1], [0, 0, 1, 1], [], []>} : vector<8x32xbf16>, vector<32x96xbf16>, vector<8x96xf32> -> vector<8x96xf32>
    %56 = vector.broadcast %24 : vector<1x96xf32> to vector<8x96xf32>
    %57 = arith.addf %55, %56 : vector<8x96xf32>
    %58 = arith.truncf %27 : vector<8x32xf32> to vector<8x32xbf16>
    %cst_32 = arith.constant dense<0.000000e+00> : vector<8x96xf32>
    %59 = tpu.matmul %58, %22, %cst_32 {dimension_numbers = #tpu.dot_dimension_numbers<[1], [0], [0], [1], [0, 0, 1, 1], [], []>} : vector<8x32xbf16>, vector<32x96xbf16>, vector<8x96xf32> -> vector<8x96xf32>
    %60 = vector.broadcast %25 : vector<1x96xf32> to vector<8x96xf32>
    %61 = arith.addf %59, %60 : vector<8x96xf32>
    %62 = vector.extract_strided_slice %57 {offsets = [0, 0], sizes = [8, 64], strides = [1, 1]} : vector<8x96xf32> to vector<8x64xf32>
    %63 = vector.extract_strided_slice %61 {offsets = [0, 0], sizes = [8, 64], strides = [1, 1]} : vector<8x96xf32> to vector<8x64xf32>
    %64 = arith.addf %62, %63 : vector<8x64xf32>
    %65 = arith.negf %64 : vector<8x64xf32>
    %66 = math.exp %65 : vector<8x64xf32>
    %cst_33 = arith.constant 1.000000e+00 : f32
    %67 = vector.broadcast %cst_33 : f32 to vector<8x64xf32>
    %68 = arith.addf %67, %66 : vector<8x64xf32>
    %69 = arith.divf %67, %68 : vector<8x64xf32>
    %70 = vector.extract_strided_slice %69 {offsets = [0, 0], sizes = [8, 32], strides = [1, 1]} : vector<8x64xf32> to vector<8x32xf32>
    %71 = vector.extract_strided_slice %69 {offsets = [0, 32], sizes = [8, 32], strides = [1, 1]} : vector<8x64xf32> to vector<8x32xf32>
    %72 = vector.extract_strided_slice %57 {offsets = [0, 64], sizes = [8, 32], strides = [1, 1]} : vector<8x96xf32> to vector<8x32xf32>
    %73 = vector.extract_strided_slice %61 {offsets = [0, 64], sizes = [8, 32], strides = [1, 1]} : vector<8x96xf32> to vector<8x32xf32>
    %74 = arith.mulf %70, %73 : vector<8x32xf32>
    %75 = arith.addf %72, %74 : vector<8x32xf32>
    %76 = math.tanh %75 : vector<8x32xf32>
    %cst_34 = arith.constant 1.000000e+00 : f32
    %77 = vector.broadcast %cst_34 : f32 to vector<8x32xf32>
    %78 = arith.subf %77, %71 : vector<8x32xf32>
    %79 = arith.mulf %78, %76 : vector<8x32xf32>
    %80 = arith.mulf %71, %27 : vector<8x32xf32>
    %81 = arith.addf %79, %80 : vector<8x32xf32>
    %82 = vector.shape_cast %81 : vector<8x32xf32> to vector<8x1x32xf32>
    %c0_35 = arith.constant 0 : index
    %c0_36 = arith.constant 0 : index
    %c0_37 = arith.constant 0 : index
    %83 = vector.load %arg18[%c0_35, %c0_36, %c0_37] : memref<8x8x32xf32, #tpu.memory_space<vmem>>, vector<8x1x32xf32>
    tpu.vector_store %arg18[%c0_35, %c0_36, %c0_37], %82 {strides = array<i32>} : memref<8x8x32xf32, #tpu.memory_space<vmem>>, vector<8x1x32xf32>,
    %84 = vector.extract_strided_slice %19 {offsets = [0, 1, 0], sizes = [8, 1, 96], strides = [1, 1, 1]} : vector<8x8x96xf32> to vector<8x1x96xf32>
    %85 = vector.shape_cast %84 : vector<8x1x96xf32> to vector<8x96xf32>
    %86 = arith.truncf %53 : vector<8x32xf32> to vector<8x32xbf16>
    %cst_38 = arith.constant dense<0.000000e+00> : vector<8x96xf32>
    %87 = tpu.matmul %86, %20, %cst_38 {dimension_numbers = #tpu.dot_dimension_numbers<[1], [0], [0], [1], [0, 0, 1, 1], [], []>} : vector<8x32xbf16>, vector<32x96xbf16>, vector<8x96xf32> -> vector<8x96xf32>
    %88 = vector.broadcast %23 : vector<1x96xf32> to vector<8x96xf32>
    %89 = arith.addf %87, %88 : vector<8x96xf32>
    %90 = vector.extract_strided_slice %85 {offsets = [0, 0], sizes = [8, 64], strides = [1, 1]} : vector<8x96xf32> to vector<8x64xf32>
    %91 = vector.extract_strided_slice %89 {offsets = [0, 0], sizes = [8, 64], strides = [1, 1]} : vector<8x96xf32> to vector<8x64xf32>
    %92 = arith.addf %90, %91 : vector<8x64xf32>
    %93 = arith.negf %92 : vector<8x64xf32>
    %94 = math.exp %93 : vector<8x64xf32>
    %cst_39 = arith.constant 1.000000e+00 : f32
    %95 = vector.broadcast %cst_39 : f32 to vector<8x64xf32>
    %96 = arith.addf %95, %94 : vector<8x64xf32>
    %97 = arith.divf %95, %96 : vector<8x64xf32>
    %98 = vector.extract_strided_slice %97 {offsets = [0, 0], sizes = [8, 32], strides = [1, 1]} : vector<8x64xf32> to vector<8x32xf32>
    %99 = vector.extract_strided_slice %97 {offsets = [0, 32], sizes = [8, 32], strides = [1, 1]} : vector<8x64xf32> to vector<8x32xf32>
    %100 = vector.extract_strided_slice %85 {offsets = [0, 64], sizes = [8, 32], strides = [1, 1]} : vector<8x96xf32> to vector<8x32xf32>
    %101 = vector.extract_strided_slice %89 {offsets = [0, 64], sizes = [8, 32], strides = [1, 1]} : vector<8x96xf32> to vector<8x32xf32>
    %102 = arith.mulf %98, %101 : vector<8x32xf32>
    %103 = arith.addf %100, %102 : vector<8x32xf32>
    %104 = math.tanh %103 : vector<8x32xf32>
    %cst_40 = arith.constant 1.000000e+00 : f32
    %105 = vector.broadcast %cst_40 : f32 to vector<8x32xf32>
    %106 = arith.subf %105, %99 : vector<8x32xf32>
    %107 = arith.mulf %106, %104 : vector<8x32xf32>
    %108 = arith.mulf %99, %53 : vector<8x32xf32>
    %109 = arith.addf %107, %108 : vector<8x32xf32>
    %110 = arith.truncf %109 : vector<8x32xf32> to vector<8x32xbf16>
    %cst_41 = arith.constant dense<0.000000e+00> : vector<8x96xf32>
    %111 = tpu.matmul %110, %21, %cst_41 {dimension_numbers = #tpu.dot_dimension_numbers<[1], [0], [0], [1], [0, 0, 1, 1], [], []>} : vector<8x32xbf16>, vector<32x96xbf16>, vector<8x96xf32> -> vector<8x96xf32>
    %112 = vector.broadcast %24 : vector<1x96xf32> to vector<8x96xf32>
    %113 = arith.addf %111, %112 : vector<8x96xf32>
    %114 = arith.truncf %81 : vector<8x32xf32> to vector<8x32xbf16>
    %cst_42 = arith.constant dense<0.000000e+00> : vector<8x96xf32>
    %115 = tpu.matmul %114, %22, %cst_42 {dimension_numbers = #tpu.dot_dimension_numbers<[1], [0], [0], [1], [0, 0, 1, 1], [], []>} : vector<8x32xbf16>, vector<32x96xbf16>, vector<8x96xf32> -> vector<8x96xf32>
    %116 = vector.broadcast %25 : vector<1x96xf32> to vector<8x96xf32>
    %117 = arith.addf %115, %116 : vector<8x96xf32>
    %118 = vector.extract_strided_slice %113 {offsets = [0, 0], sizes = [8, 64], strides = [1, 1]} : vector<8x96xf32> to vector<8x64xf32>
    %119 = vector.extract_strided_slice %117 {offsets = [0, 0], sizes = [8, 64], strides = [1, 1]} : vector<8x96xf32> to vector<8x64xf32>
    %120 = arith.addf %118, %119 : vector<8x64xf32>
    %121 = arith.negf %120 : vector<8x64xf32>
    %122 = math.exp %121 : vector<8x64xf32>
    %cst_43 = arith.constant 1.000000e+00 : f32
    %123 = vector.broadcast %cst_43 : f32 to vector<8x64xf32>
    %124 = arith.addf %123, %122 : vector<8x64xf32>
    %125 = arith.divf %123, %124 : vector<8x64xf32>
    %126 = vector.extract_strided_slice %125 {offsets = [0, 0], sizes = [8, 32], strides = [1, 1]} : vector<8x64xf32> to vector<8x32xf32>
    %127 = vector.extract_strided_slice %125 {offsets = [0, 32], sizes = [8, 32], strides = [1, 1]} : vector<8x64xf32> to vector<8x32xf32>
    %128 = vector.extract_strided_slice %113 {offsets = [0, 64], sizes = [8, 32], strides = [1, 1]} : vector<8x96xf32> to vector<8x32xf32>
    %129 = vector.extract_strided_slice %117 {offsets = [0, 64], sizes = [8, 32], strides = [1, 1]} : vector<8x96xf32> to vector<8x32xf32>
    %130 = arith.mulf %126, %129 : vector<8x32xf32>
    %131 = arith.addf %128, %130 : vector<8x32xf32>
    %132 = math.tanh %131 : vector<8x32xf32>
    %cst_44 = arith.constant 1.000000e+00 : f32
    %133 = vector.broadcast %cst_44 : f32 to vector<8x32xf32>
    %134 = arith.subf %133, %127 : vector<8x32xf32>
    %135 = arith.mulf %134, %132 : vector<8x32xf32>
    %136 = arith.mulf %127, %81 : vector<8x32xf32>
    %137 = arith.addf %135, %136 : vector<8x32xf32>
    %138 = vector.shape_cast %137 : vector<8x32xf32> to vector<8x1x32xf32>
    %c0_45 = arith.constant 0 : index
    %c1 = arith.constant 1 : index
    %c0_46 = arith.constant 0 : index
    %139 = vector.load %arg18[%c0_45, %c1, %c0_46] : memref<8x8x32xf32, #tpu.memory_space<vmem>>, vector<8x1x32xf32>
    tpu.vector_store %arg18[%c0_45, %c1, %c0_46], %138 {strides = array<i32>} : memref<8x8x32xf32, #tpu.memory_space<vmem>>, vector<8x1x32xf32>,
    %140 = vector.extract_strided_slice %19 {offsets = [0, 2, 0], sizes = [8, 1, 96], strides = [1, 1, 1]} : vector<8x8x96xf32> to vector<8x1x96xf32>
    %141 = vector.shape_cast %140 : vector<8x1x96xf32> to vector<8x96xf32>
    %142 = arith.truncf %109 : vector<8x32xf32> to vector<8x32xbf16>
    %cst_47 = arith.constant dense<0.000000e+00> : vector<8x96xf32>
    %143 = tpu.matmul %142, %20, %cst_47 {dimension_numbers = #tpu.dot_dimension_numbers<[1], [0], [0], [1], [0, 0, 1, 1], [], []>} : vector<8x32xbf16>, vector<32x96xbf16>, vector<8x96xf32> -> vector<8x96xf32>
    %144 = vector.broadcast %23 : vector<1x96xf32> to vector<8x96xf32>
    %145 = arith.addf %143, %144 : vector<8x96xf32>
    %146 = vector.extract_strided_slice %141 {offsets = [0, 0], sizes = [8, 64], strides = [1, 1]} : vector<8x96xf32> to vector<8x64xf32>
    %147 = vector.extract_strided_slice %145 {offsets = [0, 0], sizes = [8, 64], strides = [1, 1]} : vector<8x96xf32> to vector<8x64xf32>
    %148 = arith.addf %146, %147 : vector<8x64xf32>
    %149 = arith.negf %148 : vector<8x64xf32>
    %150 = math.exp %149 : vector<8x64xf32>
    %cst_48 = arith.constant 1.000000e+00 : f32
    %151 = vector.broadcast %cst_48 : f32 to vector<8x64xf32>
    %152 = arith.addf %151, %150 : vector<8x64xf32>
    %153 = arith.divf %151, %152 : vector<8x64xf32>
    %154 = vector.extract_strided_slice %153 {offsets = [0, 0], sizes = [8, 32], strides = [1, 1]} : vector<8x64xf32> to vector<8x32xf32>
    %155 = vector.extract_strided_slice %153 {offsets = [0, 32], sizes = [8, 32], strides = [1, 1]} : vector<8x64xf32> to vector<8x32xf32>
    %156 = vector.extract_strided_slice %141 {offsets = [0, 64], sizes = [8, 32], strides = [1, 1]} : vector<8x96xf32> to vector<8x32xf32>
    %157 = vector.extract_strided_slice %145 {offsets = [0, 64], sizes = [8, 32], strides = [1, 1]} : vector<8x96xf32> to vector<8x32xf32>
    %158 = arith.mulf %154, %157 : vector<8x32xf32>
    %159 = arith.addf %156, %158 : vector<8x32xf32>
    %160 = math.tanh %159 : vector<8x32xf32>
    %cst_49 = arith.constant 1.000000e+00 : f32
    %161 = vector.broadcast %cst_49 : f32 to vector<8x32xf32>
    %162 = arith.subf %161, %155 : vector<8x32xf32>
    %163 = arith.mulf %162, %160 : vector<8x32xf32>
    %164 = arith.mulf %155, %109 : vector<8x32xf32>
    %165 = arith.addf %163, %164 : vector<8x32xf32>
    %166 = arith.truncf %165 : vector<8x32xf32> to vector<8x32xbf16>
    %cst_50 = arith.constant dense<0.000000e+00> : vector<8x96xf32>
    %167 = tpu.matmul %166, %21, %cst_50 {dimension_numbers = #tpu.dot_dimension_numbers<[1], [0], [0], [1], [0, 0, 1, 1], [], []>} : vector<8x32xbf16>, vector<32x96xbf16>, vector<8x96xf32> -> vector<8x96xf32>
    %168 = vector.broadcast %24 : vector<1x96xf32> to vector<8x96xf32>
    %169 = arith.addf %167, %168 : vector<8x96xf32>
    %170 = arith.truncf %137 : vector<8x32xf32> to vector<8x32xbf16>
    %cst_51 = arith.constant dense<0.000000e+00> : vector<8x96xf32>
    %171 = tpu.matmul %170, %22, %cst_51 {dimension_numbers = #tpu.dot_dimension_numbers<[1], [0], [0], [1], [0, 0, 1, 1], [], []>} : vector<8x32xbf16>, vector<32x96xbf16>, vector<8x96xf32> -> vector<8x96xf32>
    %172 = vector.broadcast %25 : vector<1x96xf32> to vector<8x96xf32>
    %173 = arith.addf %171, %172 : vector<8x96xf32>
    %174 = vector.extract_strided_slice %169 {offsets = [0, 0], sizes = [8, 64], strides = [1, 1]} : vector<8x96xf32> to vector<8x64xf32>
    %175 = vector.extract_strided_slice %173 {offsets = [0, 0], sizes = [8, 64], strides = [1, 1]} : vector<8x96xf32> to vector<8x64xf32>
    %176 = arith.addf %174, %175 : vector<8x64xf32>
    %177 = arith.negf %176 : vector<8x64xf32>
    %178 = math.exp %177 : vector<8x64xf32>
    %cst_52 = arith.constant 1.000000e+00 : f32
    %179 = vector.broadcast %cst_52 : f32 to vector<8x64xf32>
    %180 = arith.addf %179, %178 : vector<8x64xf32>
    %181 = arith.divf %179, %180 : vector<8x64xf32>
    %182 = vector.extract_strided_slice %181 {offsets = [0, 0], sizes = [8, 32], strides = [1, 1]} : vector<8x64xf32> to vector<8x32xf32>
    %183 = vector.extract_strided_slice %181 {offsets = [0, 32], sizes = [8, 32], strides = [1, 1]} : vector<8x64xf32> to vector<8x32xf32>
    %184 = vector.extract_strided_slice %169 {offsets = [0, 64], sizes = [8, 32], strides = [1, 1]} : vector<8x96xf32> to vector<8x32xf32>
    %185 = vector.extract_strided_slice %173 {offsets = [0, 64], sizes = [8, 32], strides = [1, 1]} : vector<8x96xf32> to vector<8x32xf32>
    %186 = arith.mulf %182, %185 : vector<8x32xf32>
    %187 = arith.addf %184, %186 : vector<8x32xf32>
    %188 = math.tanh %187 : vector<8x32xf32>
    %cst_53 = arith.constant 1.000000e+00 : f32
    %189 = vector.broadcast %cst_53 : f32 to vector<8x32xf32>
    %190 = arith.subf %189, %183 : vector<8x32xf32>
    %191 = arith.mulf %190, %188 : vector<8x32xf32>
    %192 = arith.mulf %183, %137 : vector<8x32xf32>
    %193 = arith.addf %191, %192 : vector<8x32xf32>
    %194 = vector.shape_cast %193 : vector<8x32xf32> to vector<8x1x32xf32>
    %c0_54 = arith.constant 0 : index
    %c2 = arith.constant 2 : index
    %c0_55 = arith.constant 0 : index
    %195 = vector.load %arg18[%c0_54, %c2, %c0_55] : memref<8x8x32xf32, #tpu.memory_space<vmem>>, vector<8x1x32xf32>
    tpu.vector_store %arg18[%c0_54, %c2, %c0_55], %194 {strides = array<i32>} : memref<8x8x32xf32, #tpu.memory_space<vmem>>, vector<8x1x32xf32>,
    %196 = vector.extract_strided_slice %19 {offsets = [0, 3, 0], sizes = [8, 1, 96], strides = [1, 1, 1]} : vector<8x8x96xf32> to vector<8x1x96xf32>
    %197 = vector.shape_cast %196 : vector<8x1x96xf32> to vector<8x96xf32>
    %198 = arith.truncf %165 : vector<8x32xf32> to vector<8x32xbf16>
    %cst_56 = arith.constant dense<0.000000e+00> : vector<8x96xf32>
    %199 = tpu.matmul %198, %20, %cst_56 {dimension_numbers = #tpu.dot_dimension_numbers<[1], [0], [0], [1], [0, 0, 1, 1], [], []>} : vector<8x32xbf16>, vector<32x96xbf16>, vector<8x96xf32> -> vector<8x96xf32>
    %200 = vector.broadcast %23 : vector<1x96xf32> to vector<8x96xf32>
    %201 = arith.addf %199, %200 : vector<8x96xf32>
    %202 = vector.extract_strided_slice %197 {offsets = [0, 0], sizes = [8, 64], strides = [1, 1]} : vector<8x96xf32> to vector<8x64xf32>
    %203 = vector.extract_strided_slice %201 {offsets = [0, 0], sizes = [8, 64], strides = [1, 1]} : vector<8x96xf32> to vector<8x64xf32>
    %204 = arith.addf %202, %203 : vector<8x64xf32>
    %205 = arith.negf %204 : vector<8x64xf32>
    %206 = math.exp %205 : vector<8x64xf32>
    %cst_57 = arith.constant 1.000000e+00 : f32
    %207 = vector.broadcast %cst_57 : f32 to vector<8x64xf32>
    %208 = arith.addf %207, %206 : vector<8x64xf32>
    %209 = arith.divf %207, %208 : vector<8x64xf32>
    %210 = vector.extract_strided_slice %209 {offsets = [0, 0], sizes = [8, 32], strides = [1, 1]} : vector<8x64xf32> to vector<8x32xf32>
    %211 = vector.extract_strided_slice %209 {offsets = [0, 32], sizes = [8, 32], strides = [1, 1]} : vector<8x64xf32> to vector<8x32xf32>
    %212 = vector.extract_strided_slice %197 {offsets = [0, 64], sizes = [8, 32], strides = [1, 1]} : vector<8x96xf32> to vector<8x32xf32>
    %213 = vector.extract_strided_slice %201 {offsets = [0, 64], sizes = [8, 32], strides = [1, 1]} : vector<8x96xf32> to vector<8x32xf32>
    %214 = arith.mulf %210, %213 : vector<8x32xf32>
    %215 = arith.addf %212, %214 : vector<8x32xf32>
    %216 = math.tanh %215 : vector<8x32xf32>
    %cst_58 = arith.constant 1.000000e+00 : f32
    %217 = vector.broadcast %cst_58 : f32 to vector<8x32xf32>
    %218 = arith.subf %217, %211 : vector<8x32xf32>
    %219 = arith.mulf %218, %216 : vector<8x32xf32>
    %220 = arith.mulf %211, %165 : vector<8x32xf32>
    %221 = arith.addf %219, %220 : vector<8x32xf32>
    %222 = arith.truncf %221 : vector<8x32xf32> to vector<8x32xbf16>
    %cst_59 = arith.constant dense<0.000000e+00> : vector<8x96xf32>
    %223 = tpu.matmul %222, %21, %cst_59 {dimension_numbers = #tpu.dot_dimension_numbers<[1], [0], [0], [1], [0, 0, 1, 1], [], []>} : vector<8x32xbf16>, vector<32x96xbf16>, vector<8x96xf32> -> vector<8x96xf32>
    %224 = vector.broadcast %24 : vector<1x96xf32> to vector<8x96xf32>
    %225 = arith.addf %223, %224 : vector<8x96xf32>
    %226 = arith.truncf %193 : vector<8x32xf32> to vector<8x32xbf16>
    %cst_60 = arith.constant dense<0.000000e+00> : vector<8x96xf32>
    %227 = tpu.matmul %226, %22, %cst_60 {dimension_numbers = #tpu.dot_dimension_numbers<[1], [0], [0], [1], [0, 0, 1, 1], [], []>} : vector<8x32xbf16>, vector<32x96xbf16>, vector<8x96xf32> -> vector<8x96xf32>
    %228 = vector.broadcast %25 : vector<1x96xf32> to vector<8x96xf32>
    %229 = arith.addf %227, %228 : vector<8x96xf32>
    %230 = vector.extract_strided_slice %225 {offsets = [0, 0], sizes = [8, 64], strides = [1, 1]} : vector<8x96xf32> to vector<8x64xf32>
    %231 = vector.extract_strided_slice %229 {offsets = [0, 0], sizes = [8, 64], strides = [1, 1]} : vector<8x96xf32> to vector<8x64xf32>
    %232 = arith.addf %230, %231 : vector<8x64xf32>
    %233 = arith.negf %232 : vector<8x64xf32>
    %234 = math.exp %233 : vector<8x64xf32>
    %cst_61 = arith.constant 1.000000e+00 : f32
    %235 = vector.broadcast %cst_61 : f32 to vector<8x64xf32>
    %236 = arith.addf %235, %234 : vector<8x64xf32>
    %237 = arith.divf %235, %236 : vector<8x64xf32>
    %238 = vector.extract_strided_slice %237 {offsets = [0, 0], sizes = [8, 32], strides = [1, 1]} : vector<8x64xf32> to vector<8x32xf32>
    %239 = vector.extract_strided_slice %237 {offsets = [0, 32], sizes = [8, 32], strides = [1, 1]} : vector<8x64xf32> to vector<8x32xf32>
    %240 = vector.extract_strided_slice %225 {offsets = [0, 64], sizes = [8, 32], strides = [1, 1]} : vector<8x96xf32> to vector<8x32xf32>
    %241 = vector.extract_strided_slice %229 {offsets = [0, 64], sizes = [8, 32], strides = [1, 1]} : vector<8x96xf32> to vector<8x32xf32>
    %242 = arith.mulf %238, %241 : vector<8x32xf32>
    %243 = arith.addf %240, %242 : vector<8x32xf32>
    %244 = math.tanh %243 : vector<8x32xf32>
    %cst_62 = arith.constant 1.000000e+00 : f32
    %245 = vector.broadcast %cst_62 : f32 to vector<8x32xf32>
    %246 = arith.subf %245, %239 : vector<8x32xf32>
    %247 = arith.mulf %246, %244 : vector<8x32xf32>
    %248 = arith.mulf %239, %193 : vector<8x32xf32>
    %249 = arith.addf %247, %248 : vector<8x32xf32>
    %250 = vector.shape_cast %249 : vector<8x32xf32> to vector<8x1x32xf32>
    %c0_63 = arith.constant 0 : index
    %c3 = arith.constant 3 : index
    %c0_64 = arith.constant 0 : index
    %251 = vector.load %arg18[%c0_63, %c3, %c0_64] : memref<8x8x32xf32, #tpu.memory_space<vmem>>, vector<8x1x32xf32>
    tpu.vector_store %arg18[%c0_63, %c3, %c0_64], %250 {strides = array<i32>} : memref<8x8x32xf32, #tpu.memory_space<vmem>>, vector<8x1x32xf32>,
    %252 = vector.extract_strided_slice %19 {offsets = [0, 4, 0], sizes = [8, 1, 96], strides = [1, 1, 1]} : vector<8x8x96xf32> to vector<8x1x96xf32>
    %253 = vector.shape_cast %252 : vector<8x1x96xf32> to vector<8x96xf32>
    %254 = arith.truncf %221 : vector<8x32xf32> to vector<8x32xbf16>
    %cst_65 = arith.constant dense<0.000000e+00> : vector<8x96xf32>
    %255 = tpu.matmul %254, %20, %cst_65 {dimension_numbers = #tpu.dot_dimension_numbers<[1], [0], [0], [1], [0, 0, 1, 1], [], []>} : vector<8x32xbf16>, vector<32x96xbf16>, vector<8x96xf32> -> vector<8x96xf32>
    %256 = vector.broadcast %23 : vector<1x96xf32> to vector<8x96xf32>
    %257 = arith.addf %255, %256 : vector<8x96xf32>
    %258 = vector.extract_strided_slice %253 {offsets = [0, 0], sizes = [8, 64], strides = [1, 1]} : vector<8x96xf32> to vector<8x64xf32>
    %259 = vector.extract_strided_slice %257 {offsets = [0, 0], sizes = [8, 64], strides = [1, 1]} : vector<8x96xf32> to vector<8x64xf32>
    %260 = arith.addf %258, %259 : vector<8x64xf32>
    %261 = arith.negf %260 : vector<8x64xf32>
    %262 = math.exp %261 : vector<8x64xf32>
    %cst_66 = arith.constant 1.000000e+00 : f32
    %263 = vector.broadcast %cst_66 : f32 to vector<8x64xf32>
    %264 = arith.addf %263, %262 : vector<8x64xf32>
    %265 = arith.divf %263, %264 : vector<8x64xf32>
    %266 = vector.extract_strided_slice %265 {offsets = [0, 0], sizes = [8, 32], strides = [1, 1]} : vector<8x64xf32> to vector<8x32xf32>
    %267 = vector.extract_strided_slice %265 {offsets = [0, 32], sizes = [8, 32], strides = [1, 1]} : vector<8x64xf32> to vector<8x32xf32>
    %268 = vector.extract_strided_slice %253 {offsets = [0, 64], sizes = [8, 32], strides = [1, 1]} : vector<8x96xf32> to vector<8x32xf32>
    %269 = vector.extract_strided_slice %257 {offsets = [0, 64], sizes = [8, 32], strides = [1, 1]} : vector<8x96xf32> to vector<8x32xf32>
    %270 = arith.mulf %266, %269 : vector<8x32xf32>
    %271 = arith.addf %268, %270 : vector<8x32xf32>
    %272 = math.tanh %271 : vector<8x32xf32>
    %cst_67 = arith.constant 1.000000e+00 : f32
    %273 = vector.broadcast %cst_67 : f32 to vector<8x32xf32>
    %274 = arith.subf %273, %267 : vector<8x32xf32>
    %275 = arith.mulf %274, %272 : vector<8x32xf32>
    %276 = arith.mulf %267, %221 : vector<8x32xf32>
    %277 = arith.addf %275, %276 : vector<8x32xf32>
    %278 = arith.truncf %277 : vector<8x32xf32> to vector<8x32xbf16>
    %cst_68 = arith.constant dense<0.000000e+00> : vector<8x96xf32>
    %279 = tpu.matmul %278, %21, %cst_68 {dimension_numbers = #tpu.dot_dimension_numbers<[1], [0], [0], [1], [0, 0, 1, 1], [], []>} : vector<8x32xbf16>, vector<32x96xbf16>, vector<8x96xf32> -> vector<8x96xf32>
    %280 = vector.broadcast %24 : vector<1x96xf32> to vector<8x96xf32>
    %281 = arith.addf %279, %280 : vector<8x96xf32>
    %282 = arith.truncf %249 : vector<8x32xf32> to vector<8x32xbf16>
    %cst_69 = arith.constant dense<0.000000e+00> : vector<8x96xf32>
    %283 = tpu.matmul %282, %22, %cst_69 {dimension_numbers = #tpu.dot_dimension_numbers<[1], [0], [0], [1], [0, 0, 1, 1], [], []>} : vector<8x32xbf16>, vector<32x96xbf16>, vector<8x96xf32> -> vector<8x96xf32>
    %284 = vector.broadcast %25 : vector<1x96xf32> to vector<8x96xf32>
    %285 = arith.addf %283, %284 : vector<8x96xf32>
    %286 = vector.extract_strided_slice %281 {offsets = [0, 0], sizes = [8, 64], strides = [1, 1]} : vector<8x96xf32> to vector<8x64xf32>
    %287 = vector.extract_strided_slice %285 {offsets = [0, 0], sizes = [8, 64], strides = [1, 1]} : vector<8x96xf32> to vector<8x64xf32>
    %288 = arith.addf %286, %287 : vector<8x64xf32>
    %289 = arith.negf %288 : vector<8x64xf32>
    %290 = math.exp %289 : vector<8x64xf32>
    %cst_70 = arith.constant 1.000000e+00 : f32
    %291 = vector.broadcast %cst_70 : f32 to vector<8x64xf32>
    %292 = arith.addf %291, %290 : vector<8x64xf32>
    %293 = arith.divf %291, %292 : vector<8x64xf32>
    %294 = vector.extract_strided_slice %293 {offsets = [0, 0], sizes = [8, 32], strides = [1, 1]} : vector<8x64xf32> to vector<8x32xf32>
    %295 = vector.extract_strided_slice %293 {offsets = [0, 32], sizes = [8, 32], strides = [1, 1]} : vector<8x64xf32> to vector<8x32xf32>
    %296 = vector.extract_strided_slice %281 {offsets = [0, 64], sizes = [8, 32], strides = [1, 1]} : vector<8x96xf32> to vector<8x32xf32>
    %297 = vector.extract_strided_slice %285 {offsets = [0, 64], sizes = [8, 32], strides = [1, 1]} : vector<8x96xf32> to vector<8x32xf32>
    %298 = arith.mulf %294, %297 : vector<8x32xf32>
    %299 = arith.addf %296, %298 : vector<8x32xf32>
    %300 = math.tanh %299 : vector<8x32xf32>
    %cst_71 = arith.constant 1.000000e+00 : f32
    %301 = vector.broadcast %cst_71 : f32 to vector<8x32xf32>
    %302 = arith.subf %301, %295 : vector<8x32xf32>
    %303 = arith.mulf %302, %300 : vector<8x32xf32>
    %304 = arith.mulf %295, %249 : vector<8x32xf32>
    %305 = arith.addf %303, %304 : vector<8x32xf32>
    %306 = vector.shape_cast %305 : vector<8x32xf32> to vector<8x1x32xf32>
    %c0_72 = arith.constant 0 : index
    %c4 = arith.constant 4 : index
    %c0_73 = arith.constant 0 : index
    %307 = vector.load %arg18[%c0_72, %c4, %c0_73] : memref<8x8x32xf32, #tpu.memory_space<vmem>>, vector<8x1x32xf32>
    tpu.vector_store %arg18[%c0_72, %c4, %c0_73], %306 {strides = array<i32>} : memref<8x8x32xf32, #tpu.memory_space<vmem>>, vector<8x1x32xf32>,
    %308 = vector.extract_strided_slice %19 {offsets = [0, 5, 0], sizes = [8, 1, 96], strides = [1, 1, 1]} : vector<8x8x96xf32> to vector<8x1x96xf32>
    %309 = vector.shape_cast %308 : vector<8x1x96xf32> to vector<8x96xf32>
    %310 = arith.truncf %277 : vector<8x32xf32> to vector<8x32xbf16>
    %cst_74 = arith.constant dense<0.000000e+00> : vector<8x96xf32>
    %311 = tpu.matmul %310, %20, %cst_74 {dimension_numbers = #tpu.dot_dimension_numbers<[1], [0], [0], [1], [0, 0, 1, 1], [], []>} : vector<8x32xbf16>, vector<32x96xbf16>, vector<8x96xf32> -> vector<8x96xf32>
    %312 = vector.broadcast %23 : vector<1x96xf32> to vector<8x96xf32>
    %313 = arith.addf %311, %312 : vector<8x96xf32>
    %314 = vector.extract_strided_slice %309 {offsets = [0, 0], sizes = [8, 64], strides = [1, 1]} : vector<8x96xf32> to vector<8x64xf32>
    %315 = vector.extract_strided_slice %313 {offsets = [0, 0], sizes = [8, 64], strides = [1, 1]} : vector<8x96xf32> to vector<8x64xf32>
    %316 = arith.addf %314, %315 : vector<8x64xf32>
    %317 = arith.negf %316 : vector<8x64xf32>
    %318 = math.exp %317 : vector<8x64xf32>
    %cst_75 = arith.constant 1.000000e+00 : f32
    %319 = vector.broadcast %cst_75 : f32 to vector<8x64xf32>
    %320 = arith.addf %319, %318 : vector<8x64xf32>
    %321 = arith.divf %319, %320 : vector<8x64xf32>
    %322 = vector.extract_strided_slice %321 {offsets = [0, 0], sizes = [8, 32], strides = [1, 1]} : vector<8x64xf32> to vector<8x32xf32>
    %323 = vector.extract_strided_slice %321 {offsets = [0, 32], sizes = [8, 32], strides = [1, 1]} : vector<8x64xf32> to vector<8x32xf32>
    %324 = vector.extract_strided_slice %309 {offsets = [0, 64], sizes = [8, 32], strides = [1, 1]} : vector<8x96xf32> to vector<8x32xf32>
    %325 = vector.extract_strided_slice %313 {offsets = [0, 64], sizes = [8, 32], strides = [1, 1]} : vector<8x96xf32> to vector<8x32xf32>
    %326 = arith.mulf %322, %325 : vector<8x32xf32>
    %327 = arith.addf %324, %326 : vector<8x32xf32>
    %328 = math.tanh %327 : vector<8x32xf32>
    %cst_76 = arith.constant 1.000000e+00 : f32
    %329 = vector.broadcast %cst_76 : f32 to vector<8x32xf32>
    %330 = arith.subf %329, %323 : vector<8x32xf32>
    %331 = arith.mulf %330, %328 : vector<8x32xf32>
    %332 = arith.mulf %323, %277 : vector<8x32xf32>
    %333 = arith.addf %331, %332 : vector<8x32xf32>
    %334 = arith.truncf %333 : vector<8x32xf32> to vector<8x32xbf16>
    %cst_77 = arith.constant dense<0.000000e+00> : vector<8x96xf32>
    %335 = tpu.matmul %334, %21, %cst_77 {dimension_numbers = #tpu.dot_dimension_numbers<[1], [0], [0], [1], [0, 0, 1, 1], [], []>} : vector<8x32xbf16>, vector<32x96xbf16>, vector<8x96xf32> -> vector<8x96xf32>
    %336 = vector.broadcast %24 : vector<1x96xf32> to vector<8x96xf32>
    %337 = arith.addf %335, %336 : vector<8x96xf32>
    %338 = arith.truncf %305 : vector<8x32xf32> to vector<8x32xbf16>
    %cst_78 = arith.constant dense<0.000000e+00> : vector<8x96xf32>
    %339 = tpu.matmul %338, %22, %cst_78 {dimension_numbers = #tpu.dot_dimension_numbers<[1], [0], [0], [1], [0, 0, 1, 1], [], []>} : vector<8x32xbf16>, vector<32x96xbf16>, vector<8x96xf32> -> vector<8x96xf32>
    %340 = vector.broadcast %25 : vector<1x96xf32> to vector<8x96xf32>
    %341 = arith.addf %339, %340 : vector<8x96xf32>
    %342 = vector.extract_strided_slice %337 {offsets = [0, 0], sizes = [8, 64], strides = [1, 1]} : vector<8x96xf32> to vector<8x64xf32>
    %343 = vector.extract_strided_slice %341 {offsets = [0, 0], sizes = [8, 64], strides = [1, 1]} : vector<8x96xf32> to vector<8x64xf32>
    %344 = arith.addf %342, %343 : vector<8x64xf32>
    %345 = arith.negf %344 : vector<8x64xf32>
    %346 = math.exp %345 : vector<8x64xf32>
    %cst_79 = arith.constant 1.000000e+00 : f32
    %347 = vector.broadcast %cst_79 : f32 to vector<8x64xf32>
    %348 = arith.addf %347, %346 : vector<8x64xf32>
    %349 = arith.divf %347, %348 : vector<8x64xf32>
    %350 = vector.extract_strided_slice %349 {offsets = [0, 0], sizes = [8, 32], strides = [1, 1]} : vector<8x64xf32> to vector<8x32xf32>
    %351 = vector.extract_strided_slice %349 {offsets = [0, 32], sizes = [8, 32], strides = [1, 1]} : vector<8x64xf32> to vector<8x32xf32>
    %352 = vector.extract_strided_slice %337 {offsets = [0, 64], sizes = [8, 32], strides = [1, 1]} : vector<8x96xf32> to vector<8x32xf32>
    %353 = vector.extract_strided_slice %341 {offsets = [0, 64], sizes = [8, 32], strides = [1, 1]} : vector<8x96xf32> to vector<8x32xf32>
    %354 = arith.mulf %350, %353 : vector<8x32xf32>
    %355 = arith.addf %352, %354 : vector<8x32xf32>
    %356 = math.tanh %355 : vector<8x32xf32>
    %cst_80 = arith.constant 1.000000e+00 : f32
    %357 = vector.broadcast %cst_80 : f32 to vector<8x32xf32>
    %358 = arith.subf %357, %351 : vector<8x32xf32>
    %359 = arith.mulf %358, %356 : vector<8x32xf32>
    %360 = arith.mulf %351, %305 : vector<8x32xf32>
    %361 = arith.addf %359, %360 : vector<8x32xf32>
    %362 = vector.shape_cast %361 : vector<8x32xf32> to vector<8x1x32xf32>
    %c0_81 = arith.constant 0 : index
    %c5 = arith.constant 5 : index
    %c0_82 = arith.constant 0 : index
    %363 = vector.load %arg18[%c0_81, %c5, %c0_82] : memref<8x8x32xf32, #tpu.memory_space<vmem>>, vector<8x1x32xf32>
    tpu.vector_store %arg18[%c0_81, %c5, %c0_82], %362 {strides = array<i32>} : memref<8x8x32xf32, #tpu.memory_space<vmem>>, vector<8x1x32xf32>,
    %364 = vector.extract_strided_slice %19 {offsets = [0, 6, 0], sizes = [8, 1, 96], strides = [1, 1, 1]} : vector<8x8x96xf32> to vector<8x1x96xf32>
    %365 = vector.shape_cast %364 : vector<8x1x96xf32> to vector<8x96xf32>
    %366 = arith.truncf %333 : vector<8x32xf32> to vector<8x32xbf16>
    %cst_83 = arith.constant dense<0.000000e+00> : vector<8x96xf32>
    %367 = tpu.matmul %366, %20, %cst_83 {dimension_numbers = #tpu.dot_dimension_numbers<[1], [0], [0], [1], [0, 0, 1, 1], [], []>} : vector<8x32xbf16>, vector<32x96xbf16>, vector<8x96xf32> -> vector<8x96xf32>
    %368 = vector.broadcast %23 : vector<1x96xf32> to vector<8x96xf32>
    %369 = arith.addf %367, %368 : vector<8x96xf32>
    %370 = vector.extract_strided_slice %365 {offsets = [0, 0], sizes = [8, 64], strides = [1, 1]} : vector<8x96xf32> to vector<8x64xf32>
    %371 = vector.extract_strided_slice %369 {offsets = [0, 0], sizes = [8, 64], strides = [1, 1]} : vector<8x96xf32> to vector<8x64xf32>
    %372 = arith.addf %370, %371 : vector<8x64xf32>
    %373 = arith.negf %372 : vector<8x64xf32>
    %374 = math.exp %373 : vector<8x64xf32>
    %cst_84 = arith.constant 1.000000e+00 : f32
    %375 = vector.broadcast %cst_84 : f32 to vector<8x64xf32>
    %376 = arith.addf %375, %374 : vector<8x64xf32>
    %377 = arith.divf %375, %376 : vector<8x64xf32>
    %378 = vector.extract_strided_slice %377 {offsets = [0, 0], sizes = [8, 32], strides = [1, 1]} : vector<8x64xf32> to vector<8x32xf32>
    %379 = vector.extract_strided_slice %377 {offsets = [0, 32], sizes = [8, 32], strides = [1, 1]} : vector<8x64xf32> to vector<8x32xf32>
    %380 = vector.extract_strided_slice %365 {offsets = [0, 64], sizes = [8, 32], strides = [1, 1]} : vector<8x96xf32> to vector<8x32xf32>
    %381 = vector.extract_strided_slice %369 {offsets = [0, 64], sizes = [8, 32], strides = [1, 1]} : vector<8x96xf32> to vector<8x32xf32>
    %382 = arith.mulf %378, %381 : vector<8x32xf32>
    %383 = arith.addf %380, %382 : vector<8x32xf32>
    %384 = math.tanh %383 : vector<8x32xf32>
    %cst_85 = arith.constant 1.000000e+00 : f32
    %385 = vector.broadcast %cst_85 : f32 to vector<8x32xf32>
    %386 = arith.subf %385, %379 : vector<8x32xf32>
    %387 = arith.mulf %386, %384 : vector<8x32xf32>
    %388 = arith.mulf %379, %333 : vector<8x32xf32>
    %389 = arith.addf %387, %388 : vector<8x32xf32>
    %390 = arith.truncf %389 : vector<8x32xf32> to vector<8x32xbf16>
    %cst_86 = arith.constant dense<0.000000e+00> : vector<8x96xf32>
    %391 = tpu.matmul %390, %21, %cst_86 {dimension_numbers = #tpu.dot_dimension_numbers<[1], [0], [0], [1], [0, 0, 1, 1], [], []>} : vector<8x32xbf16>, vector<32x96xbf16>, vector<8x96xf32> -> vector<8x96xf32>
    %392 = vector.broadcast %24 : vector<1x96xf32> to vector<8x96xf32>
    %393 = arith.addf %391, %392 : vector<8x96xf32>
    %394 = arith.truncf %361 : vector<8x32xf32> to vector<8x32xbf16>
    %cst_87 = arith.constant dense<0.000000e+00> : vector<8x96xf32>
    %395 = tpu.matmul %394, %22, %cst_87 {dimension_numbers = #tpu.dot_dimension_numbers<[1], [0], [0], [1], [0, 0, 1, 1], [], []>} : vector<8x32xbf16>, vector<32x96xbf16>, vector<8x96xf32> -> vector<8x96xf32>
    %396 = vector.broadcast %25 : vector<1x96xf32> to vector<8x96xf32>
    %397 = arith.addf %395, %396 : vector<8x96xf32>
    %398 = vector.extract_strided_slice %393 {offsets = [0, 0], sizes = [8, 64], strides = [1, 1]} : vector<8x96xf32> to vector<8x64xf32>
    %399 = vector.extract_strided_slice %397 {offsets = [0, 0], sizes = [8, 64], strides = [1, 1]} : vector<8x96xf32> to vector<8x64xf32>
    %400 = arith.addf %398, %399 : vector<8x64xf32>
    %401 = arith.negf %400 : vector<8x64xf32>
    %402 = math.exp %401 : vector<8x64xf32>
    %cst_88 = arith.constant 1.000000e+00 : f32
    %403 = vector.broadcast %cst_88 : f32 to vector<8x64xf32>
    %404 = arith.addf %403, %402 : vector<8x64xf32>
    %405 = arith.divf %403, %404 : vector<8x64xf32>
    %406 = vector.extract_strided_slice %405 {offsets = [0, 0], sizes = [8, 32], strides = [1, 1]} : vector<8x64xf32> to vector<8x32xf32>
    %407 = vector.extract_strided_slice %405 {offsets = [0, 32], sizes = [8, 32], strides = [1, 1]} : vector<8x64xf32> to vector<8x32xf32>
    %408 = vector.extract_strided_slice %393 {offsets = [0, 64], sizes = [8, 32], strides = [1, 1]} : vector<8x96xf32> to vector<8x32xf32>
    %409 = vector.extract_strided_slice %397 {offsets = [0, 64], sizes = [8, 32], strides = [1, 1]} : vector<8x96xf32> to vector<8x32xf32>
    %410 = arith.mulf %406, %409 : vector<8x32xf32>
    %411 = arith.addf %408, %410 : vector<8x32xf32>
    %412 = math.tanh %411 : vector<8x32xf32>
    %cst_89 = arith.constant 1.000000e+00 : f32
    %413 = vector.broadcast %cst_89 : f32 to vector<8x32xf32>
    %414 = arith.subf %413, %407 : vector<8x32xf32>
    %415 = arith.mulf %414, %412 : vector<8x32xf32>
    %416 = arith.mulf %407, %361 : vector<8x32xf32>
    %417 = arith.addf %415, %416 : vector<8x32xf32>
    %418 = vector.shape_cast %417 : vector<8x32xf32> to vector<8x1x32xf32>
    %c0_90 = arith.constant 0 : index
    %c6 = arith.constant 6 : index
    %c0_91 = arith.constant 0 : index
    %419 = vector.load %arg18[%c0_90, %c6, %c0_91] : memref<8x8x32xf32, #tpu.memory_space<vmem>>, vector<8x1x32xf32>
    tpu.vector_store %arg18[%c0_90, %c6, %c0_91], %418 {strides = array<i32>} : memref<8x8x32xf32, #tpu.memory_space<vmem>>, vector<8x1x32xf32>,
    %420 = vector.extract_strided_slice %19 {offsets = [0, 7, 0], sizes = [8, 1, 96], strides = [1, 1, 1]} : vector<8x8x96xf32> to vector<8x1x96xf32>
    %421 = vector.shape_cast %420 : vector<8x1x96xf32> to vector<8x96xf32>
    %422 = arith.truncf %389 : vector<8x32xf32> to vector<8x32xbf16>
    %cst_92 = arith.constant dense<0.000000e+00> : vector<8x96xf32>
    %423 = tpu.matmul %422, %20, %cst_92 {dimension_numbers = #tpu.dot_dimension_numbers<[1], [0], [0], [1], [0, 0, 1, 1], [], []>} : vector<8x32xbf16>, vector<32x96xbf16>, vector<8x96xf32> -> vector<8x96xf32>
    %424 = vector.broadcast %23 : vector<1x96xf32> to vector<8x96xf32>
    %425 = arith.addf %423, %424 : vector<8x96xf32>
    %426 = vector.extract_strided_slice %421 {offsets = [0, 0], sizes = [8, 64], strides = [1, 1]} : vector<8x96xf32> to vector<8x64xf32>
    %427 = vector.extract_strided_slice %425 {offsets = [0, 0], sizes = [8, 64], strides = [1, 1]} : vector<8x96xf32> to vector<8x64xf32>
    %428 = arith.addf %426, %427 : vector<8x64xf32>
    %429 = arith.negf %428 : vector<8x64xf32>
    %430 = math.exp %429 : vector<8x64xf32>
    %cst_93 = arith.constant 1.000000e+00 : f32
    %431 = vector.broadcast %cst_93 : f32 to vector<8x64xf32>
    %432 = arith.addf %431, %430 : vector<8x64xf32>
    %433 = arith.divf %431, %432 : vector<8x64xf32>
    %434 = vector.extract_strided_slice %433 {offsets = [0, 0], sizes = [8, 32], strides = [1, 1]} : vector<8x64xf32> to vector<8x32xf32>
    %435 = vector.extract_strided_slice %433 {offsets = [0, 32], sizes = [8, 32], strides = [1, 1]} : vector<8x64xf32> to vector<8x32xf32>
    %436 = vector.extract_strided_slice %421 {offsets = [0, 64], sizes = [8, 32], strides = [1, 1]} : vector<8x96xf32> to vector<8x32xf32>
    %437 = vector.extract_strided_slice %425 {offsets = [0, 64], sizes = [8, 32], strides = [1, 1]} : vector<8x96xf32> to vector<8x32xf32>
    %438 = arith.mulf %434, %437 : vector<8x32xf32>
    %439 = arith.addf %436, %438 : vector<8x32xf32>
    %440 = math.tanh %439 : vector<8x32xf32>
    %cst_94 = arith.constant 1.000000e+00 : f32
    %441 = vector.broadcast %cst_94 : f32 to vector<8x32xf32>
    %442 = arith.subf %441, %435 : vector<8x32xf32>
    %443 = arith.mulf %442, %440 : vector<8x32xf32>
    %444 = arith.mulf %435, %389 : vector<8x32xf32>
    %445 = arith.addf %443, %444 : vector<8x32xf32>
    %446 = arith.truncf %445 : vector<8x32xf32> to vector<8x32xbf16>
    %cst_95 = arith.constant dense<0.000000e+00> : vector<8x96xf32>
    %447 = tpu.matmul %446, %21, %cst_95 {dimension_numbers = #tpu.dot_dimension_numbers<[1], [0], [0], [1], [0, 0, 1, 1], [], []>} : vector<8x32xbf16>, vector<32x96xbf16>, vector<8x96xf32> -> vector<8x96xf32>
    %448 = vector.broadcast %24 : vector<1x96xf32> to vector<8x96xf32>
    %449 = arith.addf %447, %448 : vector<8x96xf32>
    %450 = arith.truncf %417 : vector<8x32xf32> to vector<8x32xbf16>
    %cst_96 = arith.constant dense<0.000000e+00> : vector<8x96xf32>
    %451 = tpu.matmul %450, %22, %cst_96 {dimension_numbers = #tpu.dot_dimension_numbers<[1], [0], [0], [1], [0, 0, 1, 1], [], []>} : vector<8x32xbf16>, vector<32x96xbf16>, vector<8x96xf32> -> vector<8x96xf32>
    %452 = vector.broadcast %25 : vector<1x96xf32> to vector<8x96xf32>
    %453 = arith.addf %451, %452 : vector<8x96xf32>
    %454 = vector.extract_strided_slice %449 {offsets = [0, 0], sizes = [8, 64], strides = [1, 1]} : vector<8x96xf32> to vector<8x64xf32>
    %455 = vector.extract_strided_slice %453 {offsets = [0, 0], sizes = [8, 64], strides = [1, 1]} : vector<8x96xf32> to vector<8x64xf32>
    %456 = arith.addf %454, %455 : vector<8x64xf32>
    %457 = arith.negf %456 : vector<8x64xf32>
    %458 = math.exp %457 : vector<8x64xf32>
    %cst_97 = arith.constant 1.000000e+00 : f32
    %459 = vector.broadcast %cst_97 : f32 to vector<8x64xf32>
    %460 = arith.addf %459, %458 : vector<8x64xf32>
    %461 = arith.divf %459, %460 : vector<8x64xf32>
    %462 = vector.extract_strided_slice %461 {offsets = [0, 0], sizes = [8, 32], strides = [1, 1]} : vector<8x64xf32> to vector<8x32xf32>
    %463 = vector.extract_strided_slice %461 {offsets = [0, 32], sizes = [8, 32], strides = [1, 1]} : vector<8x64xf32> to vector<8x32xf32>
    %464 = vector.extract_strided_slice %449 {offsets = [0, 64], sizes = [8, 32], strides = [1, 1]} : vector<8x96xf32> to vector<8x32xf32>
    %465 = vector.extract_strided_slice %453 {offsets = [0, 64], sizes = [8, 32], strides = [1, 1]} : vector<8x96xf32> to vector<8x32xf32>
    %466 = arith.mulf %462, %465 : vector<8x32xf32>
    %467 = arith.addf %464, %466 : vector<8x32xf32>
    %468 = math.tanh %467 : vector<8x32xf32>
    %cst_98 = arith.constant 1.000000e+00 : f32
    %469 = vector.broadcast %cst_98 : f32 to vector<8x32xf32>
    %470 = arith.subf %469, %463 : vector<8x32xf32>
    %471 = arith.mulf %470, %468 : vector<8x32xf32>
    %472 = arith.mulf %463, %417 : vector<8x32xf32>
    %473 = arith.addf %471, %472 : vector<8x32xf32>
    %474 = vector.shape_cast %473 : vector<8x32xf32> to vector<8x1x32xf32>
    %c0_99 = arith.constant 0 : index
    %c7 = arith.constant 7 : index
    %c0_100 = arith.constant 0 : index
    %475 = vector.load %arg18[%c0_99, %c7, %c0_100] : memref<8x8x32xf32, #tpu.memory_space<vmem>>, vector<8x1x32xf32>
    tpu.vector_store %arg18[%c0_99, %c7, %c0_100], %474 {strides = array<i32>} : memref<8x8x32xf32, #tpu.memory_space<vmem>>, vector<8x1x32xf32>,
    %c0_101 = arith.constant 0 : index
    %c0_102 = arith.constant 0 : index
    %476 = vector.load %arg16[%c0_101, %c0_102] : memref<8x32xf32, #tpu.memory_space<vmem>>, vector<8x32xf32>
    tpu.vector_store %arg16[%c0_101, %c0_102], %445 {strides = array<i32>} : memref<8x32xf32, #tpu.memory_space<vmem>>, vector<8x32xf32>,
    %c0_103 = arith.constant 0 : index
    %c0_104 = arith.constant 0 : index
    %477 = vector.load %arg17[%c0_103, %c0_104] : memref<8x32xf32, #tpu.memory_space<vmem>>, vector<8x32xf32>
    tpu.vector_store %arg17[%c0_103, %c0_104], %473 {strides = array<i32>} : memref<8x32xf32, #tpu.memory_space<vmem>>, vector<8x32xf32>,
    %c0_105 = arith.constant 0 : index
    %c0_106 = arith.constant 0 : index
    %c0_107 = arith.constant 0 : index
    %478 = vector.load %arg18[%c0_105, %c0_106, %c0_107] : memref<8x8x32xf32, #tpu.memory_space<vmem>>, vector<8x8x32xf32>
    %479 = vector.shape_cast %478 : vector<8x8x32xf32> to vector<64x32xf32>
    %480 = arith.truncf %479 : vector<64x32xf32> to vector<64x32xbf16>
    %c0_108 = arith.constant 0 : index
    %c0_109 = arith.constant 0 : index
    %481 = vector.load %arg13[%c0_108, %c0_109] : memref<32x256xbf16, #tpu.memory_space<vmem>>, vector<32x256xbf16>
    %cst_110 = arith.constant dense<0.000000e+00> : vector<64x256xf32>
    %482 = tpu.matmul %480, %481, %cst_110 {dimension_numbers = #tpu.dot_dimension_numbers<[1], [0], [0], [1], [0, 0, 1, 1], [], []>} : vector<64x32xbf16>, vector<32x256xbf16>, vector<64x256xf32> -> vector<64x256xf32>
    %c0_111 = arith.constant 0 : index
    %c0_112 = arith.constant 0 : index
    %483 = vector.load %arg14[%c0_111, %c0_112] : memref<1x256xf32, #tpu.memory_space<vmem>>, vector<1x256xf32>
    %484 = vector.broadcast %483 : vector<1x256xf32> to vector<64x256xf32>
    %485 = arith.addf %482, %484 : vector<64x256xf32>
    %486 = vector.shape_cast %485 : vector<64x256xf32> to vector<8x8x256xf32>
    %c0_113 = arith.constant 0 : index
    %c0_114 = arith.constant 0 : index
    %c0_115 = arith.constant 0 : index
    %487 = vector.load %arg15[%c0_113, %c0_114, %c0_115] : memref<8x8x256xf32, #tpu.memory_space<vmem>>, vector<8x8x256xf32>
    tpu.vector_store %arg15[%c0_113, %c0_114, %c0_115], %486 {strides = array<i32>} : memref<8x8x256xf32, #tpu.memory_space<vmem>>, vector<8x8x256xf32>,
    return
  }
  func.func @transform_0(%arg0: i32, %arg1: i32) -> (i32, i32, i32) {
    %c0_i32 = arith.constant 0 : i32
    %c0_i32_0 = arith.constant 0 : i32
    return %arg0, %arg1, %c0_i32 : i32, i32, i32
  }
  func.func @transform_1(%arg0: i32, %arg1: i32) -> (i32, i32, i32) {
    %c0_i32 = arith.constant 0 : i32
    %c0_i32_0 = arith.constant 0 : i32
    return %arg0, %arg1, %c0_i32 : i32, i32, i32
  }
  func.func @transform_2(%arg0: i32, %arg1: i32) -> (i32, i32) {
    %c0_i32 = arith.constant 0 : i32
    %c0_i32_0 = arith.constant 0 : i32
    %c0_i32_1 = arith.constant 0 : i32
    return %c0_i32, %c0_i32_0 : i32, i32
  }
  func.func @transform_3(%arg0: i32, %arg1: i32) -> (i32, i32) {
    %c0_i32 = arith.constant 0 : i32
    %c0_i32_0 = arith.constant 0 : i32
    %c0_i32_1 = arith.constant 0 : i32
    return %c0_i32, %c0_i32_0 : i32, i32
  }
  func.func @transform_4(%arg0: i32, %arg1: i32) -> (i32, i32) {
    %c0_i32 = arith.constant 0 : i32
    %c0_i32_0 = arith.constant 0 : i32
    %c0_i32_1 = arith.constant 0 : i32
    return %c0_i32, %c0_i32_0 : i32, i32
  }
  func.func @transform_5(%arg0: i32, %arg1: i32) -> (i32, i32) {
    %c0_i32 = arith.constant 0 : i32
    %c0_i32_0 = arith.constant 0 : i32
    %c0_i32_1 = arith.constant 0 : i32
    return %c0_i32, %c0_i32_0 : i32, i32
  }
  func.func @transform_6(%arg0: i32, %arg1: i32) -> (i32, i32) {
    %c0_i32 = arith.constant 0 : i32
    %c0_i32_0 = arith.constant 0 : i32
    %c0_i32_1 = arith.constant 0 : i32
    return %c0_i32, %c0_i32_0 : i32, i32
  }
  func.func @transform_7(%arg0: i32, %arg1: i32) -> (i32, i32) {
    %c0_i32 = arith.constant 0 : i32
    %c0_i32_0 = arith.constant 0 : i32
    %c0_i32_1 = arith.constant 0 : i32
    return %c0_i32, %c0_i32_0 : i32, i32
  }
  func.func @transform_8(%arg0: i32, %arg1: i32) -> (i32, i32) {
    %c0_i32 = arith.constant 0 : i32
    %c0_i32_0 = arith.constant 0 : i32
    %c0_i32_1 = arith.constant 0 : i32
    return %c0_i32, %c0_i32_0 : i32, i32
  }
  func.func @transform_9(%arg0: i32, %arg1: i32) -> (i32, i32) {
    %c0_i32 = arith.constant 0 : i32
    %c0_i32_0 = arith.constant 0 : i32
    %c0_i32_1 = arith.constant 0 : i32
    return %c0_i32, %c0_i32_0 : i32, i32
  }
  func.func @transform_10(%arg0: i32, %arg1: i32) -> (i32, i32) {
    %c0_i32 = arith.constant 0 : i32
    %c0_i32_0 = arith.constant 0 : i32
    %c0_i32_1 = arith.constant 0 : i32
    return %c0_i32, %c0_i32_0 : i32, i32
  }
  func.func @transform_11(%arg0: i32, %arg1: i32) -> (i32, i32) {
    %c0_i32 = arith.constant 0 : i32
    %c0_i32_0 = arith.constant 0 : i32
    %c0_i32_1 = arith.constant 0 : i32
    return %c0_i32, %c0_i32_0 : i32, i32
  }
  func.func @transform_12(%arg0: i32, %arg1: i32) -> (i32, i32) {
    %c0_i32 = arith.constant 0 : i32
    %c0_i32_0 = arith.constant 0 : i32
    %c0_i32_1 = arith.constant 0 : i32
    return %c0_i32, %c0_i32_0 : i32, i32
  }
  func.func @transform_13(%arg0: i32, %arg1: i32) -> (i32, i32, i32) {
    %c0_i32 = arith.constant 0 : i32
    %c0_i32_0 = arith.constant 0 : i32
    return %arg0, %arg1, %c0_i32 : i32, i32, i32
  }
}

</mosaic_0001>

<llo_original>
// kernel: tpu_custom_call.1
$region0: #{tpu_custom_call.1}
  #allocation0 [shape = 'u32[]', space=smem, size = 0x4, offset = 0x4, fixed_abs, tag = 'smem constant byte address 0x4 - core index']
  #allocation1 [shape = 'u32[144,128]{1,0:T(1,128)}', space=vmem, size = 0x12000, scoped, tag = 'internal scratch']
  #allocation2 [shape = 'f32[8,32]{1,0:T(8,128)}', space=vmem, size = 0x1000, scoped, tag = 'scratch operand']
  #allocation3 [shape = 'f32[8,32]{1,0:T(8,128)}', space=vmem, size = 0x1000, scoped, tag = 'scratch operand']
  #allocation4 [shape = 'f32[8,8,32]{2,1,0:T(8,128)}', space=vmem, size = 0x8000, scoped, tag = 'scratch operand']
  %s0 = inlined_call_operand.vmem [shape: f32[8,16,16], index: 0, kind: input, shape index: {}]
  %s1 = inlined_call_operand.vmem [shape: f32[8,16,1], index: 1, kind: input, shape index: {}]
  %s2 = inlined_call_operand.hbm [shape: bf16[16,96], index: 2, kind: input, shape index: {}]
  %s3 = inlined_call_operand.hbm [shape: f32[1,96], index: 3, kind: input, shape index: {}]
  %s4 = inlined_call_operand.hbm [shape: f32[1,96], index: 4, kind: input, shape index: {}]
  %s5 = inlined_call_operand.vmem [shape: bf16[32,96], index: 5, kind: input, shape index: {}]
  %s6 = inlined_call_operand.hbm [shape: f32[1,96], index: 6, kind: input, shape index: {}]
  %s7 = inlined_call_operand.hbm [shape: bf16[32,96], index: 7, kind: input, shape index: {}]
  %s8 = inlined_call_operand.vmem [shape: f32[1,96], index: 8, kind: input, shape index: {}]
  %s9 = inlined_call_operand.hbm [shape: bf16[32,96], index: 9, kind: input, shape index: {}]
  %s10 = inlined_call_operand.vmem [shape: f32[1,96], index: 10, kind: input, shape index: {}]
  %s11 = inlined_call_operand.hbm [shape: bf16[32,256], index: 11, kind: input, shape index: {}]
  %s12 = inlined_call_operand.vmem [shape: f32[1,256], index: 12, kind: input, shape index: {}]
  %s13 = inlined_call_operand.hbm [shape: f32[8,16,256], index: 13, kind: output, shape index: {}]
  %s14 = sld [smem:[#allocation0]]
  $region193: #{tpu_custom_call.1} parent=0
    _
  %s16 = ssub.s32 1, %s14
  %s17 = scalar_select 0, %s16, %s14
  $region1: #{tpu_custom_call.1} parent=0
    #allocation5 [shape = 'u8[65536]{0}', space=vmem, size = 0x10000, scoped, tag = 'input window, operand 0']
    #allocation6 [shape = 'u8[65536]{0}', space=vmem, size = 0x10000, scoped, tag = 'input window, operand 1']
    #allocation7 [shape = 'u8[4096]{0}', space=vmem, size = 0x1000, scoped, tag = 'input window, operand 2, single buffered']
    #allocation8 [shape = 's32[2]{0}', space=sflag, size = 0x8, scoped, tag = 'scoped memory for tpu_custom_call.1']
    #allocation9 [shape = 's32[2]{0}', space=sflag, size = 0x8, scoped, tag = 'scoped memory for tpu_custom_call.1']
    #allocation10 [shape = 'u8[512]{0}', space=vmem, size = 0x400, scoped, tag = 'input window, operand 3, single buffered']
    #allocation11 [shape = 's32[1]{0}', space=sflag, size = 0x4, scoped, tag = 'scoped memory for tpu_custom_call.1']
    #allocation12 [shape = 'u8[512]{0}', space=vmem, size = 0x400, scoped, tag = 'input window, operand 4, single buffered']
    #allocation13 [shape = 'u8[512]{0}', space=vmem, size = 0x400, scoped, tag = 'input window, operand 6, single buffered']
    #allocation14 [shape = 's32[1]{0}', space=sflag, size = 0x4, scoped, tag = 'scoped memory for tpu_custom_call.1']
    #allocation15 [shape = 'u8[8192]{0}', space=vmem, size = 0x2000, scoped, tag = 'input window, operand 7, single buffered']
    #allocation16 [shape = 'u8[8192]{0}', space=vmem, size = 0x2000, scoped, tag = 'input window, operand 9, single buffered']
    #allocation17 [shape = 's32[1]{0}', space=sflag, size = 0x4, scoped, tag = 'scoped memory for tpu_custom_call.1']
    #allocation18 [shape = 'u8[16384]{0}', space=vmem, size = 0x4000, scoped, tag = 'input window, operand 11, single buffered']
    #allocation19 [shape = 'u8[131072]{0}', space=vmem, size = 0x20000, scoped, tag = 'output window, operand 0']
    %18 = vsyncpa [#allocation8], 0
    %19 = vsyncpa [#allocation11], 0
    %20 = vsyncpa [#allocation14], 0
    %21 = vsyncpa [#allocation17], 0
    %22 = vsyncpa [#allocation9], 0
    %s23 = scalar_lea.sflag [#allocation9], 1
    %24 = vsyncpa %s23, 0
    loop: start=0, step=1, limit=4
    $region2: #{tpu_custom_call.1} parent=1 // loop_pre_header
      _
    $region3: #{tpu_custom_call.1} parent=1 // loop_header
      %s26 = sphi 0, %s30
      %p27 = scmp.ge.s32.totalorder %s26, 4
      %s33 = sphi 0, %s45
      %s34 = sphi 0, %s41
      %s35 = sphi 0, %s33
      %s36 = sphi 0, %s34
      %s37 = sphi 0, %s35
      %s38 = sphi 0, %s36
      %s50 = sphi 0, %s52
      %s53 = sphi 0, %s50
      %s54 = sphi 0, %s53
      %s70 = sphi 0, %s54
      %s78 = sphi 0, %s80
      %s81 = sphi 0, %s78
      %s82 = sphi 0, %s81
      %s98 = sphi 0, %s82
      %s102 = sphi 0, %s102
      %s104 = sphi 0, %s102
      %s105 = sphi 0, %s104
      %s119 = sphi 0, %s105
      %s123 = sphi 0, %s123
      %s125 = sphi 0, %s123
      %s126 = sphi 0, %s125
      %s140 = sphi 0, %s126
      %s144 = sphi 0, %s144
      %s146 = sphi 0, %s144
      %s147 = sphi 0, %s146
      %s161 = sphi 0, %s147
      %s165 = sphi 0, %s165
      %s167 = sphi 0, %s165
      %s168 = sphi 0, %s167
      %s182 = sphi 0, %s168
      %s186 = sphi 0, %s186
      %s188 = sphi 0, %s186
      %s189 = sphi 0, %s188
      %s203 = sphi 0, %s189
      %s207 = sphi 0, %s207
      %s209 = sphi 0, %s207
      %s210 = sphi 0, %s209
      %s224 = sphi 0, %s210
      %s228 = sphi 0, %s228
      %s230 = sphi 0, %s228
      %s231 = sphi 0, %s230
      %s245 = sphi 0, %s231
      %s249 = sphi 0, %s249
      %s251 = sphi 0, %s249
      %s252 = sphi 0, %s251
      %s266 = sphi 0, %s252
      %s270 = sphi 0, %s270
      %s272 = sphi 0, %s270
      %s273 = sphi 0, %s272
      %s287 = sphi 0, %s273
      %s291 = sphi 0, %s291
      %s293 = sphi 0, %s291
      %s294 = sphi 0, %s293
      %s308 = sphi 0, %s294
      %s312 = sphi 0, %s312
      %s314 = sphi 0, %s312
      %s315 = sphi 0, %s314
      %s329 = sphi 0, %s315
      %s337 = sphi 0, %s339
      %s340 = sphi 0, %s337
      %s341 = sphi 0, %s340
      %s357 = sphi 0, %s341
    $region4: #{tpu_custom_call.1} parent=1 // loop_header_branch
      %29 = sbr.rel (%p27) target = $region8
    $region5: #{tpu_custom_call.1} parent=1 // loop_body
      %s31 = ssub.s32 %s26, 1
      %s32 = ssub.s32 %s26, 2
      %s39 = sadd.s32 1, %s34
      %p40 = scmp.ge.s32.totalorder %s39, 2
      %s41 = scalar_select %p40, 0, %s39
      %s42 = sadd.s32 1, %s33
      %s43 = scalar_select %p40, %s42, %s33
      %p44 = scmp.ge.s32.totalorder %s43, 1
      %s45 = scalar_select %p44, 0, %s43
      %s46 = ssub.s32 %s33, %s45
      %s47 = ssub.s32 %s34, %s41
      %s48 = sor.u32 %s46, %s47
      %p49 = scmp.eq.s32.totalorder %s48, 0
      %s51 = sadd.s32 %s50, 1
      %s52 = scalar_select %p49, %s50, %s51
      %p55 = pneg %p49
      %p56 = scmp.eq.s32.totalorder %s26, 1
      %p57 = por %p55, %p56
      %p58 = scmp.ne.s32.totalorder %s50, %s53
      %p59 = scmp.eq.s32.totalorder %s26, 0
      %p60 = por %p58, %p59
      %p61 = scmp.ne.s32.totalorder %s50, %s53
      %p62 = scmp.eq.s32.totalorder %s31, 1
      %p63 = por %p61, %p62
      %p64 = scmp.ne.s32.totalorder %s53, %s54
      %p65 = scmp.eq.s32.totalorder %s31, 0
      %p66 = por %p64, %p65
      %p67 = scmp.ne.s32.totalorder %s53, %s54
      %p68 = scmp.eq.s32.totalorder %s32, 1
      %p69 = por %p67, %p68
      %p71 = scmp.ne.s32.totalorder %s54, %s70
      %p72 = scmp.eq.s32.totalorder %s32, 0
      %p73 = por %p71, %p72
      %s74 = ssub.s32 %s33, %s45
      %s75 = ssub.s32 %s34, %s41
      %s76 = sor.u32 %s74, %s75
      %p77 = scmp.eq.s32.totalorder %s76, 0
      %s79 = sadd.s32 %s78, 1
      %s80 = scalar_select %p77, %s78, %s79
      %p83 = pneg %p77
      %p84 = scmp.eq.s32.totalorder %s26, 1
      %p85 = por %p83, %p84
      %p86 = scmp.ne.s32.totalorder %s78, %s81
      %p87 = scmp.eq.s32.totalorder %s26, 0
      %p88 = por %p86, %p87
      %p89 = scmp.ne.s32.totalorder %s78, %s81
      %p90 = scmp.eq.s32.totalorder %s31, 1
      %p91 = por %p89, %p90
      %p92 = scmp.ne.s32.totalorder %s81, %s82
      %p93 = scmp.eq.s32.totalorder %s31, 0
      %p94 = por %p92, %p93
      %p95 = scmp.ne.s32.totalorder %s81, %s82
      %p96 = scmp.eq.s32.totalorder %s32, 1
      %p97 = por %p95, %p96
      %p99 = scmp.ne.s32.totalorder %s82, %s98
      %p100 = scmp.eq.s32.totalorder %s32, 0
      %p101 = por %p99, %p100
      %s103 = sadd.s32 %s102, 1
      %p106 = scmp.eq.s32.totalorder %s26, 1
      %p107 = scmp.ne.s32.totalorder %s102, %s104
      %p108 = scmp.eq.s32.totalorder %s26, 0
      %p109 = por %p107, %p108
      %p110 = scmp.ne.s32.totalorder %s102, %s104
      %p111 = scmp.eq.s32.totalorder %s31, 1
      %p112 = por %p110, %p111
      %p113 = scmp.ne.s32.totalorder %s104, %s105
      %p114 = scmp.eq.s32.totalorder %s31, 0
      %p115 = por %p113, %p114
      %p116 = scmp.ne.s32.totalorder %s104, %s105
      %p117 = scmp.eq.s32.totalorder %s32, 1
      %p118 = por %p116, %p117
      %p120 = scmp.ne.s32.totalorder %s105, %s119
      %p121 = scmp.eq.s32.totalorder %s32, 0
      %p122 = por %p120, %p121
      %s124 = sadd.s32 %s123, 1
      %p127 = scmp.eq.s32.totalorder %s26, 1
      %p128 = scmp.ne.s32.totalorder %s123, %s125
      %p129 = scmp.eq.s32.totalorder %s26, 0
      %p130 = por %p128, %p129
      %p131 = scmp.ne.s32.totalorder %s123, %s125
      %p132 = scmp.eq.s32.totalorder %s31, 1
      %p133 = por %p131, %p132
      %p134 = scmp.ne.s32.totalorder %s125, %s126
      %p135 = scmp.eq.s32.totalorder %s31, 0
      %p136 = por %p134, %p135
      %p137 = scmp.ne.s32.totalorder %s125, %s126
      %p138 = scmp.eq.s32.totalorder %s32, 1
      %p139 = por %p137, %p138
      %p141 = scmp.ne.s32.totalorder %s126, %s140
      %p142 = scmp.eq.s32.totalorder %s32, 0
      %p143 = por %p141, %p142
      %s145 = sadd.s32 %s144, 1
      %p148 = scmp.eq.s32.totalorder %s26, 1
      %p149 = scmp.ne.s32.totalorder %s144, %s146
      %p150 = scmp.eq.s32.totalorder %s26, 0
      %p151 = por %p149, %p150
      %p152 = scmp.ne.s32.totalorder %s144, %s146
      %p153 = scmp.eq.s32.totalorder %s31, 1
      %p154 = por %p152, %p153
      %p155 = scmp.ne.s32.totalorder %s146, %s147
      %p156 = scmp.eq.s32.totalorder %s31, 0
      %p157 = por %p155, %p156
      %p158 = scmp.ne.s32.totalorder %s146, %s147
      %p159 = scmp.eq.s32.totalorder %s32, 1
      %p160 = por %p158, %p159
      %p162 = scmp.ne.s32.totalorder %s147, %s161
      %p163 = scmp.eq.s32.totalorder %s32, 0
      %p164 = por %p162, %p163
      %s166 = sadd.s32 %s165, 1
      %p169 = scmp.eq.s32.totalorder %s26, 1
      %p170 = scmp.ne.s32.totalorder %s165, %s167
      %p171 = scmp.eq.s32.totalorder %s26, 0
      %p172 = por %p170, %p171
      %p173 = scmp.ne.s32.totalorder %s165, %s167
      %p174 = scmp.eq.s32.totalorder %s31, 1
      %p175 = por %p173, %p174
      %p176 = scmp.ne.s32.totalorder %s167, %s168
      %p177 = scmp.eq.s32.totalorder %s31, 0
      %p178 = por %p176, %p177
      %p179 = scmp.ne.s32.totalorder %s167, %s168
      %p180 = scmp.eq.s32.totalorder %s32, 1
      %p181 = por %p179, %p180
      %p183 = scmp.ne.s32.totalorder %s168, %s182
      %p184 = scmp.eq.s32.totalorder %s32, 0
      %p185 = por %p183, %p184
      %s187 = sadd.s32 %s186, 1
      %p190 = scmp.eq.s32.totalorder %s26, 1
      %p191 = scmp.ne.s32.totalorder %s186, %s188
      %p192 = scmp.eq.s32.totalorder %s26, 0
      %p193 = por %p191, %p192
      %p194 = scmp.ne.s32.totalorder %s186, %s188
      %p195 = scmp.eq.s32.totalorder %s31, 1
      %p196 = por %p194, %p195
      %p197 = scmp.ne.s32.totalorder %s188, %s189
      %p198 = scmp.eq.s32.totalorder %s31, 0
      %p199 = por %p197, %p198
      %p200 = scmp.ne.s32.totalorder %s188, %s189
      %p201 = scmp.eq.s32.totalorder %s32, 1
      %p202 = por %p200, %p201
      %p204 = scmp.ne.s32.totalorder %s189, %s203
      %p205 = scmp.eq.s32.totalorder %s32, 0
      %p206 = por %p204, %p205
      %s208 = sadd.s32 %s207, 1
      %p211 = scmp.eq.s32.totalorder %s26, 1
      %p212 = scmp.ne.s32.totalorder %s207, %s209
      %p213 = scmp.eq.s32.totalorder %s26, 0
      %p214 = por %p212, %p213
      %p215 = scmp.ne.s32.totalorder %s207, %s209
      %p216 = scmp.eq.s32.totalorder %s31, 1
      %p217 = por %p215, %p216
      %p218 = scmp.ne.s32.totalorder %s209, %s210
      %p219 = scmp.eq.s32.totalorder %s31, 0
      %p220 = por %p218, %p219
      %p221 = scmp.ne.s32.totalorder %s209, %s210
      %p222 = scmp.eq.s32.totalorder %s32, 1
      %p223 = por %p221, %p222
      %p225 = scmp.ne.s32.totalorder %s210, %s224
      %p226 = scmp.eq.s32.totalorder %s32, 0
      %p227 = por %p225, %p226
      %s229 = sadd.s32 %s228, 1
      %p232 = scmp.eq.s32.totalorder %s26, 1
      %p233 = scmp.ne.s32.totalorder %s228, %s230
      %p234 = scmp.eq.s32.totalorder %s26, 0
      %p235 = por %p233, %p234
      %p236 = scmp.ne.s32.totalorder %s228, %s230
      %p237 = scmp.eq.s32.totalorder %s31, 1
      %p238 = por %p236, %p237
      %p239 = scmp.ne.s32.totalorder %s230, %s231
      %p240 = scmp.eq.s32.totalorder %s31, 0
      %p241 = por %p239, %p240
      %p242 = scmp.ne.s32.totalorder %s230, %s231
      %p243 = scmp.eq.s32.totalorder %s32, 1
      %p244 = por %p242, %p243
      %p246 = scmp.ne.s32.totalorder %s231, %s245
      %p247 = scmp.eq.s32.totalorder %s32, 0
      %p248 = por %p246, %p247
      %s250 = sadd.s32 %s249, 1
      %p253 = scmp.eq.s32.totalorder %s26, 1
      %p254 = scmp.ne.s32.totalorder %s249, %s251
      %p255 = scmp.eq.s32.totalorder %s26, 0
      %p256 = por %p254, %p255
      %p257 = scmp.ne.s32.totalorder %s249, %s251
      %p258 = scmp.eq.s32.totalorder %s31, 1
      %p259 = por %p257, %p258
      %p260 = scmp.ne.s32.totalorder %s251, %s252
      %p261 = scmp.eq.s32.totalorder %s31, 0
      %p262 = por %p260, %p261
      %p263 = scmp.ne.s32.totalorder %s251, %s252
      %p264 = scmp.eq.s32.totalorder %s32, 1
      %p265 = por %p263, %p264
      %p267 = scmp.ne.s32.totalorder %s252, %s266
      %p268 = scmp.eq.s32.totalorder %s32, 0
      %p269 = por %p267, %p268
      %s271 = sadd.s32 %s270, 1
      %p274 = scmp.eq.s32.totalorder %s26, 1
      %p275 = scmp.ne.s32.totalorder %s270, %s272
      %p276 = scmp.eq.s32.totalorder %s26, 0
      %p277 = por %p275, %p276
      %p278 = scmp.ne.s32.totalorder %s270, %s272
      %p279 = scmp.eq.s32.totalorder %s31, 1
      %p280 = por %p278, %p279
      %p281 = scmp.ne.s32.totalorder %s272, %s273
      %p282 = scmp.eq.s32.totalorder %s31, 0
      %p283 = por %p281, %p282
      %p284 = scmp.ne.s32.totalorder %s272, %s273
      %p285 = scmp.eq.s32.totalorder %s32, 1
      %p286 = por %p284, %p285
      %p288 = scmp.ne.s32.totalorder %s273, %s287
      %p289 = scmp.eq.s32.totalorder %s32, 0
      %p290 = por %p288, %p289
      %s292 = sadd.s32 %s291, 1
      %p295 = scmp.eq.s32.totalorder %s26, 1
      %p296 = scmp.ne.s32.totalorder %s291, %s293
      %p297 = scmp.eq.s32.totalorder %s26, 0
      %p298 = por %p296, %p297
      %p299 = scmp.ne.s32.totalorder %s291, %s293
      %p300 = scmp.eq.s32.totalorder %s31, 1
      %p301 = por %p299, %p300
      %p302 = scmp.ne.s32.totalorder %s293, %s294
      %p303 = scmp.eq.s32.totalorder %s31, 0
      %p304 = por %p302, %p303
      %p305 = scmp.ne.s32.totalorder %s293, %s294
      %p306 = scmp.eq.s32.totalorder %s32, 1
      %p307 = por %p305, %p306
      %p309 = scmp.ne.s32.totalorder %s294, %s308
      %p310 = scmp.eq.s32.totalorder %s32, 0
      %p311 = por %p309, %p310
      %s313 = sadd.s32 %s312, 1
      %p316 = scmp.eq.s32.totalorder %s26, 1
      %p317 = scmp.ne.s32.totalorder %s312, %s314
      %p318 = scmp.eq.s32.totalorder %s26, 0
      %p319 = por %p317, %p318
      %p320 = scmp.ne.s32.totalorder %s312, %s314
      %p321 = scmp.eq.s32.totalorder %s31, 1
      %p322 = por %p320, %p321
      %p323 = scmp.ne.s32.totalorder %s314, %s315
      %p324 = scmp.eq.s32.totalorder %s31, 0
      %p325 = por %p323, %p324
      %p326 = scmp.ne.s32.totalorder %s314, %s315
      %p327 = scmp.eq.s32.totalorder %s32, 1
      %p328 = por %p326, %p327
      %p330 = scmp.ne.s32.totalorder %s315, %s329
      %p331 = scmp.eq.s32.totalorder %s32, 0
      %p332 = por %p330, %p331
      %s333 = ssub.s32 %s33, %s45
      %s334 = ssub.s32 %s34, %s41
      %s335 = sor.u32 %s333, %s334
      %p336 = scmp.eq.s32.totalorder %s335, 0
      %s338 = sadd.s32 %s337, 1
      %s339 = scalar_select %p336, %s337, %s338
      %p342 = pneg %p336
      %p343 = scmp.eq.s32.totalorder %s26, 1
      %p344 = por %p342, %p343
      %p345 = scmp.ne.s32.totalorder %s337, %s340
      %p346 = scmp.eq.s32.totalorder %s26, 0
      %p347 = por %p345, %p346
      %p348 = scmp.ne.s32.totalorder %s337, %s340
      %p349 = scmp.eq.s32.totalorder %s31, 1
      %p350 = por %p348, %p349
      %p351 = scmp.ne.s32.totalorder %s340, %s341
      %p352 = scmp.eq.s32.totalorder %s31, 0
      %p353 = por %p351, %p352
      %p354 = scmp.ne.s32.totalorder %s340, %s341
      %p355 = scmp.eq.s32.totalorder %s32, 1
      %p356 = por %p354, %p355
      %p358 = scmp.ne.s32.totalorder %s341, %s357
      %p359 = scmp.eq.s32.totalorder %s32, 0
      %p360 = por %p358, %p359
      %p361 = scmp.le.s32.totalorder 1, %s26
      %p362 = scmp.lt.s32.totalorder %s26, 3
      %p363 = pnand %p361, %p362
      %p364 = pneg %p363
      // Predicated region
      $region9: #{tpu_custom_call.1} parent=5 // pred_check
        _
      $region10: #{tpu_custom_call.1} parent=5 // pred_check_branch
        %366 = sbr.rel (%p363) target = $region12
      $region11: #{tpu_custom_call.1} parent=5 // pred_region
        %s367 = ssub.s32 %s26, 1
        // Predicated region
        $region13: #{tpu_custom_call.1} parent=11 // pred_check
          %p368 = pneg %p115
        $region14: #{tpu_custom_call.1} parent=11 // pred_check_branch
          %370 = sbr.rel (%p368) target = $region16
        $region15: #{tpu_custom_call.1} parent=11 // pred_region
          %s372 = ssub.s32 128, 128
          %373 = vsyncadd [#allocation8], %s372
          %s374 = sshll.u32 [#allocation7], 4
          %s375 = int_to_ptr.vmem [resolvable:$true] %s374
          %380 = dma.hbm_to_vmem [thread:$0]  %s2, 128, %s375, [#allocation8], 64, 64, 4
        $region16: #{tpu_custom_call.1} parent=11 // pred_fallthru
          _
        // Predicated region
        $region17: #{tpu_custom_call.1} parent=11 // pred_check
          %p381 = pneg %p136
        $region18: #{tpu_custom_call.1} parent=11 // pred_check_branch
          %383 = sbr.rel (%p381) target = $region20
        $region19: #{tpu_custom_call.1} parent=11 // pred_region
          %s385 = ssub.s32 16, 16
          %386 = vsyncadd [#allocation11], %s385
          %s388 = sshll.u32 [#allocation10], 4
          %s389 = int_to_ptr.vmem [resolvable:$true] %s388
          %391 = dma.hbm_to_vmem [thread:$0]  %s3, 16, %s389, [#allocation11]
        $region20: #{tpu_custom_call.1} parent=11 // pred_fallthru
          _
        // Predicated region
        $region21: #{tpu_custom_call.1} parent=11 // pred_check
          %p392 = pneg %p157
        $region22: #{tpu_custom_call.1} parent=11 // pred_check_branch
          %394 = sbr.rel (%p392) target = $region24
        $region23: #{tpu_custom_call.1} parent=11 // pred_region
          %s396 = ssub.s32 16, 16
          %397 = vsyncadd [#allocation11], %s396
          %s399 = sshll.u32 [#allocation12], 4
          %s400 = int_to_ptr.vmem [resolvable:$true] %s399
          %402 = dma.hbm_to_vmem [thread:$0]  %s4, 16, %s400, [#allocation11]
        $region24: #{tpu_custom_call.1} parent=11 // pred_fallthru
          _
        // Predicated region
        $region25: #{tpu_custom_call.1} parent=11 // pred_check
          %p403 = pneg %p178
        $region26: #{tpu_custom_call.1} parent=11 // pred_check_branch
          %405 = sbr.rel (%p403) target = $region28
        $region27: #{tpu_custom_call.1} parent=11 // pred_region
          _
        $region28: #{tpu_custom_call.1} parent=11 // pred_fallthru
          _
        // Predicated region
        $region29: #{tpu_custom_call.1} parent=11 // pred_check
          %p406 = pneg %p199
        $region30: #{tpu_custom_call.1} parent=11 // pred_check_branch
          %408 = sbr.rel (%p406) target = $region32
        $region31: #{tpu_custom_call.1} parent=11 // pred_region
          %s410 = ssub.s32 16, 16
          %411 = vsyncadd [#allocation14], %s410
          %s413 = sshll.u32 [#allocation13], 4
          %s414 = int_to_ptr.vmem [resolvable:$true] %s413
          %416 = dma.hbm_to_vmem [thread:$0]  %s6, 16, %s414, [#allocation14]
        $region32: #{tpu_custom_call.1} parent=11 // pred_fallthru
          _
        // Predicated region
        $region33: #{tpu_custom_call.1} parent=11 // pred_check
          %p417 = pneg %p220
        $region34: #{tpu_custom_call.1} parent=11 // pred_check_branch
          %419 = sbr.rel (%p417) target = $region36
        $region35: #{tpu_custom_call.1} parent=11 // pred_region
          %s421 = ssub.s32 256, 256
          %422 = vsyncadd [#allocation14], %s421
          %s423 = sshll.u32 [#allocation15], 4
          %s424 = int_to_ptr.vmem [resolvable:$true] %s423
          %429 = dma.hbm_to_vmem [thread:$0]  %s7, 256, %s424, [#allocation14], 64, 64, 4
        $region36: #{tpu_custom_call.1} parent=11 // pred_fallthru
          _
        // Predicated region
        $region37: #{tpu_custom_call.1} parent=11 // pred_check
          %p430 = pneg %p241
        $region38: #{tpu_custom_call.1} parent=11 // pred_check_branch
          %432 = sbr.rel (%p430) target = $region40
        $region39: #{tpu_custom_call.1} parent=11 // pred_region
          _
        $region40: #{tpu_custom_call.1} parent=11 // pred_fallthru
          _
        // Predicated region
        $region41: #{tpu_custom_call.1} parent=11 // pred_check
          %p433 = pneg %p262
        $region42: #{tpu_custom_call.1} parent=11 // pred_check_branch
          %435 = sbr.rel (%p433) target = $region44
        $region43: #{tpu_custom_call.1} parent=11 // pred_region
          %s437 = ssub.s32 256, 256
          %438 = vsyncadd [#allocation17], %s437
          %s439 = sshll.u32 [#allocation16], 4
          %s440 = int_to_ptr.vmem [resolvable:$true] %s439
          %445 = dma.hbm_to_vmem [thread:$0]  %s9, 256, %s440, [#allocation17], 64, 64, 4
        $region44: #{tpu_custom_call.1} parent=11 // pred_fallthru
          _
        // Predicated region
        $region45: #{tpu_custom_call.1} parent=11 // pred_check
          %p446 = pneg %p283
        $region46: #{tpu_custom_call.1} parent=11 // pred_check_branch
          %448 = sbr.rel (%p446) target = $region48
        $region47: #{tpu_custom_call.1} parent=11 // pred_region
          _
        $region48: #{tpu_custom_call.1} parent=11 // pred_fallthru
          _
        // Predicated region
        $region49: #{tpu_custom_call.1} parent=11 // pred_check
          %p449 = pneg %p304
        $region50: #{tpu_custom_call.1} parent=11 // pred_check_branch
          %451 = sbr.rel (%p449) target = $region52
        $region51: #{tpu_custom_call.1} parent=11 // pred_region
          %s453 = ssub.s32 512, 512
          %454 = vsyncadd [#allocation17], %s453
          %s455 = sshll.u32 [#allocation18], 4
          %s456 = int_to_ptr.vmem [resolvable:$true] %s455
          %461 = dma.hbm_to_vmem [thread:$0]  %s11, 512, %s456, [#allocation17], 128, 128, 8
        $region52: #{tpu_custom_call.1} parent=11 // pred_fallthru
          _
        // Predicated region
        $region53: #{tpu_custom_call.1} parent=11 // pred_check
          %p462 = pneg %p325
        $region54: #{tpu_custom_call.1} parent=11 // pred_check_branch
          %464 = sbr.rel (%p462) target = $region56
        $region55: #{tpu_custom_call.1} parent=11 // pred_region
          _
        $region56: #{tpu_custom_call.1} parent=11 // pred_fallthru
          _
      $region12: #{tpu_custom_call.1} parent=5 // pred_fallthru
        _
      %p465 = scmp.lt.s32.totalorder %s26, 2
      // Predicated region
      $region57: #{tpu_custom_call.1} parent=5 // pred_check
        %p466 = pneg %p465
      $region58: #{tpu_custom_call.1} parent=5 // pred_check_branch
        %468 = sbr.rel (%p466) target = $region60
      $region59: #{tpu_custom_call.1} parent=5 // pred_region
        // Predicated region
        $region61: #{tpu_custom_call.1} parent=59 // pred_check
          %p469 = pneg %p60
        $region62: #{tpu_custom_call.1} parent=59 // pred_check_branch
          %471 = sbr.rel (%p469) target = $region64
        $region63: #{tpu_custom_call.1} parent=59 // pred_region
          %s472 = sand.u32 %s50, 1
          %s473 = sand.u32 %s50, 1
          %s474 = smul.addr %s473, 64
          %s475 = scalar_lea.vmem [#allocation5], %s474
          %s476 = smul.u32 8, %s33
          %s477 = smul.addr %s476, 2
          %s478 = sadd.s32 %s34, %s477
          %s479 = smul.addr %s478, 8
          %s480 = scalar_lea.vmem %s0, %s479
          // Predicated region
          $region65: #{tpu_custom_call.1} parent=63 // pred_check
            _
          $region66: #{tpu_custom_call.1} parent=63 // pred_check_branch
            %482 = sbr.rel (0) target = $region68
          $region67: #{tpu_custom_call.1} parent=63 // pred_region
            // Predicated region
            $region69: #{tpu_custom_call.1} parent=67 // pred_check
              _
            $region70: #{tpu_custom_call.1} parent=67 // pred_check_branch
              %484 = sbr.rel (0) target = $region72
            $region71: #{tpu_custom_call.1} parent=67 // pred_region
              // Predicated region
              $region84: #{tpu_custom_call.1} parent=71 // pred_check
                _
              $region85: #{tpu_custom_call.1} parent=71 // pred_check_branch
                %514 = sbr.rel (0) target = $region87
              $region86: #{tpu_custom_call.1} parent=71 // pred_region
                loop: start=0, step=1, limit=1
                $region88: #{tpu_custom_call.1} parent=86 // loop_pre_header
                  _
                $region89: #{tpu_custom_call.1} parent=86 // loop_header
                  %s516 = sphi 0, %s520
                  %p517 = scmp.ge.s32.totalorder %s516, 1
                  %s521 = sphi %s480, %s480
                  %s522 = sphi %s475, %s475
                $region90: #{tpu_custom_call.1} parent=86 // loop_header_branch
                  %519 = sbr.rel (%p517) target = $region94
                $region91: #{tpu_custom_call.1} parent=86 // loop_body
                  %v523 = vld [vmem:[%s521] sm:$0xff]
                  %524 = vst [vmem:[%s522] sm:$0xff] %v523
                  %v525 = vld [vmem:[%s521 + $0x10] sm:$0xff]
                  %526 = vst [vmem:[%s522 + $0x8] sm:$0xff] %v525
                  %v527 = vld [vmem:[%s521 + $0x20] sm:$0xff]
                  %528 = vst [vmem:[%s522 + $0x10] sm:$0xff] %v527
                  %v529 = vld [vmem:[%s521 + $0x30] sm:$0xff]
                  %530 = vst [vmem:[%s522 + $0x18] sm:$0xff] %v529
                  %v531 = vld [vmem:[%s521 + $0x40] sm:$0xff]
                  %532 = vst [vmem:[%s522 + $0x20] sm:$0xff] %v531
                  %v533 = vld [vmem:[%s521 + $0x50] sm:$0xff]
                  %534 = vst [vmem:[%s522 + $0x28] sm:$0xff] %v533
                  %v535 = vld [vmem:[%s521 + $0x60] sm:$0xff]
                  %536 = vst [vmem:[%s522 + $0x30] sm:$0xff] %v535
                  %v537 = vld [vmem:[%s521 + $0x70] sm:$0xff]
                  %538 = vst [vmem:[%s522 + $0x38] sm:$0xff] %v537
                $region92: #{tpu_custom_call.1} parent=86 // loop_footer
                  %s520 = sadd.s32 1, %s516
                $region93: #{tpu_custom_call.1} parent=86 // loop_footer_branch
                  %515 = sbr.rel target = $region89
                $region94: #{tpu_custom_call.1} parent=86 // loop_exit
                  _
              $region87: #{tpu_custom_call.1} parent=71 // pred_fallthru
                _
              // Predicated region
              $region95: #{tpu_custom_call.1} parent=71 // pred_check
                _
              $region96: #{tpu_custom_call.1} parent=71 // pred_check_branch
                %540 = sbr.rel target = $region98
              $region97: #{tpu_custom_call.1} parent=71 // pred_region
                _
              $region98: #{tpu_custom_call.1} parent=71 // pred_fallthru
                _
            $region72: #{tpu_custom_call.1} parent=67 // pred_fallthru
              _
            // Predicated region
            $region73: #{tpu_custom_call.1} parent=67 // pred_check
              _
            $region74: #{tpu_custom_call.1} parent=67 // pred_check_branch
              %486 = sbr.rel target = $region76
            $region75: #{tpu_custom_call.1} parent=67 // pred_region
              %s488 = ssub.s32 256, 1
              loop: start=0, step=1, limit=1
              $region77: #{tpu_custom_call.1} parent=75 // loop_pre_header
                _
              $region78: #{tpu_custom_call.1} parent=75 // loop_header
                %s490 = sphi 0, %s494
                %p491 = scmp.ge.s32.totalorder %s490, 1
                %s495 = sphi %s480, %s480
                %s496 = sphi %s475, %s475
              $region79: #{tpu_custom_call.1} parent=75 // loop_header_branch
                %493 = sbr.rel (%p491) target = $region83
              $region80: #{tpu_custom_call.1} parent=75 // loop_body
                %v497 = vld [vmem:[%s495] sm:%s488]
                %498 = vst [vmem:[%s496] sm:%s488] %v497
                %v499 = vld [vmem:[%s495 + $0x10] sm:%s488]
                %500 = vst [vmem:[%s496 + $0x8] sm:%s488] %v499
                %v501 = vld [vmem:[%s495 + $0x20] sm:%s488]
                %502 = vst [vmem:[%s496 + $0x10] sm:%s488] %v501
                %v503 = vld [vmem:[%s495 + $0x30] sm:%s488]
                %504 = vst [vmem:[%s496 + $0x18] sm:%s488] %v503
                %v505 = vld [vmem:[%s495 + $0x40] sm:%s488]
                %506 = vst [vmem:[%s496 + $0x20] sm:%s488] %v505
                %v507 = vld [vmem:[%s495 + $0x50] sm:%s488]
                %508 = vst [vmem:[%s496 + $0x28] sm:%s488] %v507
                %v509 = vld [vmem:[%s495 + $0x60] sm:%s488]
                %510 = vst [vmem:[%s496 + $0x30] sm:%s488] %v509
                %v511 = vld [vmem:[%s495 + $0x70] sm:%s488]
                %512 = vst [vmem:[%s496 + $0x38] sm:%s488] %v511
              $region81: #{tpu_custom_call.1} parent=75 // loop_footer
                %s494 = sadd.s32 1, %s490
              $region82: #{tpu_custom_call.1} parent=75 // loop_footer_branch
                %489 = sbr.rel target = $region78
              $region83: #{tpu_custom_call.1} parent=75 // loop_exit
                _
            $region76: #{tpu_custom_call.1} parent=67 // pred_fallthru
              _
          $region68: #{tpu_custom_call.1} parent=63 // pred_fallthru
            _
          %541 = vnop
        $region64: #{tpu_custom_call.1} parent=59 // pred_fallthru
          _
        // Predicated region
        $region99: #{tpu_custom_call.1} parent=59 // pred_check
          %p542 = pneg %p88
        $region100: #{tpu_custom_call.1} parent=59 // pred_check_branch
          %544 = sbr.rel (%p542) target = $region102
        $region101: #{tpu_custom_call.1} parent=59 // pred_region
          %s545 = sand.u32 %s78, 1
          %s546 = sand.u32 %s78, 1
          %s547 = smul.addr %s546, 64
          %s548 = scalar_lea.vmem [#allocation6], %s547
          %s549 = smul.u32 8, %s33
          %s550 = smul.addr %s549, 2
          %s551 = sadd.s32 %s34, %s550
          %s552 = smul.addr %s551, 8
          %s553 = scalar_lea.vmem %s1, %s552
          // Predicated region
          $region103: #{tpu_custom_call.1} parent=101 // pred_check
            _
          $region104: #{tpu_custom_call.1} parent=101 // pred_check_branch
            %555 = sbr.rel (0) target = $region106
          $region105: #{tpu_custom_call.1} parent=101 // pred_region
            // Predicated region
            $region107: #{tpu_custom_call.1} parent=105 // pred_check
              _
            $region108: #{tpu_custom_call.1} parent=105 // pred_check_branch
              %557 = sbr.rel (0) target = $region110
            $region109: #{tpu_custom_call.1} parent=105 // pred_region
              // Predicated region
              $region122: #{tpu_custom_call.1} parent=109 // pred_check
                _
              $region123: #{tpu_custom_call.1} parent=109 // pred_check_branch
                %587 = sbr.rel (0) target = $region125
              $region124: #{tpu_custom_call.1} parent=109 // pred_region
                loop: start=0, step=1, limit=1
                $region126: #{tpu_custom_call.1} parent=124 // loop_pre_header
                  _
                $region127: #{tpu_custom_call.1} parent=124 // loop_header
                  %s589 = sphi 0, %s593
                  %p590 = scmp.ge.s32.totalorder %s589, 1
                  %s594 = sphi %s553, %s553
                  %s595 = sphi %s548, %s548
                $region128: #{tpu_custom_call.1} parent=124 // loop_header_branch
                  %592 = sbr.rel (%p590) target = $region132
                $region129: #{tpu_custom_call.1} parent=124 // loop_body
                  %v596 = vld [vmem:[%s594] sm:$0xff]
                  %597 = vst [vmem:[%s595] sm:$0xff] %v596
                  %v598 = vld [vmem:[%s594 + $0x10] sm:$0xff]
                  %599 = vst [vmem:[%s595 + $0x8] sm:$0xff] %v598
                  %v600 = vld [vmem:[%s594 + $0x20] sm:$0xff]
                  %601 = vst [vmem:[%s595 + $0x10] sm:$0xff] %v600
                  %v602 = vld [vmem:[%s594 + $0x30] sm:$0xff]
                  %603 = vst [vmem:[%s595 + $0x18] sm:$0xff] %v602
                  %v604 = vld [vmem:[%s594 + $0x40] sm:$0xff]
                  %605 = vst [vmem:[%s595 + $0x20] sm:$0xff] %v604
                  %v606 = vld [vmem:[%s594 + $0x50] sm:$0xff]
                  %607 = vst [vmem:[%s595 + $0x28] sm:$0xff] %v606
                  %v608 = vld [vmem:[%s594 + $0x60] sm:$0xff]
                  %609 = vst [vmem:[%s595 + $0x30] sm:$0xff] %v608
                  %v610 = vld [vmem:[%s594 + $0x70] sm:$0xff]
                  %611 = vst [vmem:[%s595 + $0x38] sm:$0xff] %v610
                $region130: #{tpu_custom_call.1} parent=124 // loop_footer
                  %s593 = sadd.s32 1, %s589
                $region131: #{tpu_custom_call.1} parent=124 // loop_footer_branch
                  %588 = sbr.rel target = $region127
                $region132: #{tpu_custom_call.1} parent=124 // loop_exit
                  _
              $region125: #{tpu_custom_call.1} parent=109 // pred_fallthru
                _
              // Predicated region
              $region133: #{tpu_custom_call.1} parent=109 // pred_check
                _
              $region134: #{tpu_custom_call.1} parent=109 // pred_check_branch
                %613 = sbr.rel target = $region136
              $region135: #{tpu_custom_call.1} parent=109 // pred_region
                _
              $region136: #{tpu_custom_call.1} parent=109 // pred_fallthru
                _
            $region110: #{tpu_custom_call.1} parent=105 // pred_fallthru
              _
            // Predicated region
            $region111: #{tpu_custom_call.1} parent=105 // pred_check
              _
            $region112: #{tpu_custom_call.1} parent=105 // pred_check_branch
              %559 = sbr.rel target = $region114
            $region113: #{tpu_custom_call.1} parent=105 // pred_region
              %s561 = ssub.s32 256, 1
              loop: start=0, step=1, limit=1
              $region115: #{tpu_custom_call.1} parent=113 // loop_pre_header
                _
              $region116: #{tpu_custom_call.1} parent=113 // loop_header
                %s563 = sphi 0, %s567
                %p564 = scmp.ge.s32.totalorder %s563, 1
                %s568 = sphi %s553, %s553
                %s569 = sphi %s548, %s548
              $region117: #{tpu_custom_call.1} parent=113 // loop_header_branch
                %566 = sbr.rel (%p564) target = $region121
              $region118: #{tpu_custom_call.1} parent=113 // loop_body
                %v570 = vld [vmem:[%s568] sm:%s561]
                %571 = vst [vmem:[%s569] sm:%s561] %v570
                %v572 = vld [vmem:[%s568 + $0x10] sm:%s561]
                %573 = vst [vmem:[%s569 + $0x8] sm:%s561] %v572
                %v574 = vld [vmem:[%s568 + $0x20] sm:%s561]
                %575 = vst [vmem:[%s569 + $0x10] sm:%s561] %v574
                %v576 = vld [vmem:[%s568 + $0x30] sm:%s561]
                %577 = vst [vmem:[%s569 + $0x18] sm:%s561] %v576
                %v578 = vld [vmem:[%s568 + $0x40] sm:%s561]
                %579 = vst [vmem:[%s569 + $0x20] sm:%s561] %v578
                %v580 = vld [vmem:[%s568 + $0x50] sm:%s561]
                %581 = vst [vmem:[%s569 + $0x28] sm:%s561] %v580
                %v582 = vld [vmem:[%s568 + $0x60] sm:%s561]
                %583 = vst [vmem:[%s569 + $0x30] sm:%s561] %v582
                %v584 = vld [vmem:[%s568 + $0x70] sm:%s561]
                %585 = vst [vmem:[%s569 + $0x38] sm:%s561] %v584
              $region119: #{tpu_custom_call.1} parent=113 // loop_footer
                %s567 = sadd.s32 1, %s563
              $region120: #{tpu_custom_call.1} parent=113 // loop_footer_branch
                %562 = sbr.rel target = $region116
              $region121: #{tpu_custom_call.1} parent=113 // loop_exit
                _
            $region114: #{tpu_custom_call.1} parent=105 // pred_fallthru
              _
          $region106: #{tpu_custom_call.1} parent=101 // pred_fallthru
            _
          %614 = vnop
        $region102: #{tpu_custom_call.1} parent=59 // pred_fallthru
          _
      $region60: #{tpu_custom_call.1} parent=5 // pred_fallthru
        _
      %p615 = scmp.le.s32.totalorder 1, %s26
      %p616 = scmp.lt.s32.totalorder %s26, 3
      %p617 = pnand %p615, %p616
      %p618 = pneg %p617
      // Predicated region
      $region137: #{tpu_custom_call.1} parent=5 // pred_check
        _
      $region138: #{tpu_custom_call.1} parent=5 // pred_check_branch
        %620 = sbr.rel (%p617) target = $region140
      $region139: #{tpu_custom_call.1} parent=5 // pred_region
        %s621 = ssub.s32 %s26, 1
        %s622 = sand.u32 %s53, 1
        %s623 = sand.u32 %s53, 1
        %s624 = smul.addr %s623, 64
        %s625 = scalar_lea.vmem [#allocation5], %s624
        // Predicated region
        $region141: #{tpu_custom_call.1} parent=139 // pred_check
          %p626 = pneg %p66
        $region142: #{tpu_custom_call.1} parent=139 // pred_check_branch
          %628 = sbr.rel (%p626) target = $region144
        $region143: #{tpu_custom_call.1} parent=139 // pred_region
          _
        $region144: #{tpu_custom_call.1} parent=139 // pred_fallthru
          _
        %s629 = sand.u32 %s81, 1
        %s630 = sand.u32 %s81, 1
        %s631 = smul.addr %s630, 64
        %s632 = scalar_lea.vmem [#allocation6], %s631
        // Predicated region
        $region145: #{tpu_custom_call.1} parent=139 // pred_check
          %p633 = pneg %p94
        $region146: #{tpu_custom_call.1} parent=139 // pred_check_branch
          %635 = sbr.rel (%p633) target = $region148
        $region147: #{tpu_custom_call.1} parent=139 // pred_region
          _
        $region148: #{tpu_custom_call.1} parent=139 // pred_fallthru
          _
        // Predicated region
        $region149: #{tpu_custom_call.1} parent=139 // pred_check
          %p636 = pneg %p115
        $region150: #{tpu_custom_call.1} parent=139 // pred_check_branch
          %638 = sbr.rel (%p636) target = $region152
        $region151: #{tpu_custom_call.1} parent=139 // pred_region
          %639 = dma.done [#allocation8], 128
        $region152: #{tpu_custom_call.1} parent=139 // pred_fallthru
          _
        // Predicated region
        $region153: #{tpu_custom_call.1} parent=139 // pred_check
          %p640 = pneg %p136
        $region154: #{tpu_custom_call.1} parent=139 // pred_check_branch
          %642 = sbr.rel (%p640) target = $region156
        $region155: #{tpu_custom_call.1} parent=139 // pred_region
          %643 = dma.done [#allocation11], 16
        $region156: #{tpu_custom_call.1} parent=139 // pred_fallthru
          _
        // Predicated region
        $region157: #{tpu_custom_call.1} parent=139 // pred_check
          %p644 = pneg %p157
        $region158: #{tpu_custom_call.1} parent=139 // pred_check_branch
          %646 = sbr.rel (%p644) target = $region160
        $region159: #{tpu_custom_call.1} parent=139 // pred_region
          %647 = dma.done [#allocation11], 16
        $region160: #{tpu_custom_call.1} parent=139 // pred_fallthru
          _
        // Predicated region
        $region161: #{tpu_custom_call.1} parent=139 // pred_check
          %p648 = pneg %p199
        $region162: #{tpu_custom_call.1} parent=139 // pred_check_branch
          %650 = sbr.rel (%p648) target = $region164
        $region163: #{tpu_custom_call.1} parent=139 // pred_region
          %651 = dma.done [#allocation14], 16
        $region164: #{tpu_custom_call.1} parent=139 // pred_fallthru
          _
        // Predicated region
        $region165: #{tpu_custom_call.1} parent=139 // pred_check
          %p652 = pneg %p220
        $region166: #{tpu_custom_call.1} parent=139 // pred_check_branch
          %654 = sbr.rel (%p652) target = $region168
        $region167: #{tpu_custom_call.1} parent=139 // pred_region
          %655 = dma.done [#allocation14], 256
        $region168: #{tpu_custom_call.1} parent=139 // pred_fallthru
          _
        // Predicated region
        $region169: #{tpu_custom_call.1} parent=139 // pred_check
          %p656 = pneg %p262
        $region170: #{tpu_custom_call.1} parent=139 // pred_check_branch
          %658 = sbr.rel (%p656) target = $region172
        $region171: #{tpu_custom_call.1} parent=139 // pred_region
          %659 = dma.done [#allocation17], 256
        $region172: #{tpu_custom_call.1} parent=139 // pred_fallthru
          _
        // Predicated region
        $region173: #{tpu_custom_call.1} parent=139 // pred_check
          %p660 = pneg %p304
        $region174: #{tpu_custom_call.1} parent=139 // pred_check_branch
          %662 = sbr.rel (%p660) target = $region176
        $region175: #{tpu_custom_call.1} parent=139 // pred_region
          %663 = dma.done [#allocation17], 512
        $region176: #{tpu_custom_call.1} parent=139 // pred_fallthru
          _
        %s664 = sand.u32 %s53, 1
        %s665 = sand.u32 %s53, 1
        %s666 = smul.addr %s665, 64
        %s667 = scalar_lea.vmem [#allocation5], %s666
        %p668 = pneg %p66
        %p669 = pneg %p63
        %s670 = sand.u32 %s81, 1
        %s671 = sand.u32 %s81, 1
        %s672 = smul.addr %s671, 64
        %s673 = scalar_lea.vmem [#allocation6], %s672
        %p674 = pneg %p94
        %p675 = pneg %p91
        %p676 = pneg %p115
        %p677 = pneg %p112
        %p678 = pneg %p136
        %p679 = pneg %p133
        %p680 = pneg %p157
        %p681 = pneg %p154
        %p682 = pneg %p178
        %p683 = pneg %p175
        %p684 = pneg %p199
        %p685 = pneg %p196
        %p686 = pneg %p220
        %p687 = pneg %p217
        %p688 = pneg %p241
        %p689 = pneg %p238
        %p690 = pneg %p262
        %p691 = pneg %p259
        %p692 = pneg %p283
        %p693 = pneg %p280
        %p694 = pneg %p304
        %p695 = pneg %p301
        %p696 = pneg %p325
        %p697 = pneg %p322
        %p698 = pneg %p353
        %p699 = pneg %p350
        %s700 = sand.u32 %s340, 1
        %s701 = scalar_lea.sflag [#allocation9], %s700
        %s702 = sand.u32 %s340, 1
        %s703 = smul.addr %s702, 128
        %s704 = scalar_lea.vmem [#allocation19], %s703
        %s705 = smul.u32 8, %s35
        %s706 = smul.u32 8, %s35
        %s707 = smul.u32 8, %s35
        %p709 = scmp.eq.s32.totalorder %s36, 0
        // Predicated region
        $region177: #{tpu_custom_call.1} parent=139 // pred_check
          %p710 = pneg %p709
        $region178: #{tpu_custom_call.1} parent=139 // pred_check_branch
          %712 = sbr.rel (%p710) target = $region180
        $region179: #{tpu_custom_call.1} parent=139 // pred_region
          %vm713 = vcmask 261120
          %714 = vst.msk [vmem:[#allocation2] sm:$0xff] %vm713, 0.0
          %715 = vst.msk [vmem:[#allocation3] sm:$0xff] %vm713, 0.0
        $region180: #{tpu_custom_call.1} parent=139 // pred_fallthru
          _
        %v716 = vld [vmem:[%s625] sm:$0xff]
        %v717 = vld [vmem:[%s625 + $0x8] sm:$0xff]
        %v718 = vld [vmem:[%s625 + $0x10] sm:$0xff]
        %v719 = vld [vmem:[%s625 + $0x18] sm:$0xff]
        %v720 = vld [vmem:[%s625 + $0x20] sm:$0xff]
        %v721 = vld [vmem:[%s625 + $0x28] sm:$0xff]
        %v722 = vld [vmem:[%s625 + $0x30] sm:$0xff]
        %v723 = vld [vmem:[%s625 + $0x38] sm:$0xff]
        %v724 = vpack.c.bf16 %v717, %v716
        %v725 = vpack.c.bf16 %v719, %v718
        %v726 = vpack.c.bf16 %v721, %v720
        %v727 = vpack.c.bf16 %v723, %v722
        %v728 = vld [vmem:[#allocation7] sm:$0xf]
        %v729 = vld [vmem:[#allocation7 + $0x4] sm:$0xf]
        %v732 = vunpack.c.l.b16 %v728
        %v733 = vunpack.c.l.b16 %v729
        %v734 = vpack.c.b16 %v733, %v732
        %vm736 = vcmask 130048
        %v738 = vsel %vm736, %v724, 0
        %v741 = vsel %vm736, %v725, 0
        %v744 = vsel %vm736, %v726, 0
        %v747 = vsel %vm736, %v727, 0
        %749 = vmatprep.subr.bf16.mxu0 0
        %750 = vmatpush1.bf16.msra.mxu0 0
        %751 = vmatprep.subr.bf16.mxu0 0
        %752 = vmatpush1.bf16.msra.mxu0 0
        %753 = vmatprep.subr.bf16.mxu0 0
        %754 = vmatpush1.bf16.msra.mxu0 0
        %755 = vmatprep.subr.bf16.mxu0 0
        %756 = vmatpush1.bf16.msra.mxu0 0
        %757 = vmatprep.subr.bf16.mxu0 0
        %758 = vmatpush1.bf16.msra.mxu0 0
        %759 = vmatprep.subr.bf16.mxu0 0
        %760 = vmatpush1.bf16.msra.mxu0 0
        %761 = vmatprep.subr.bf16.mxu0 0
        %762 = vmatpush1.bf16.msra.mxu0 0
        %763 = vmatprep.subr.bf16.mxu0 0
        %764 = vmatpush1.bf16.msra.mxu0 %v734
        %765 = vmatprep.subr.bf16.mxu0 0
        %766 = vmatpush2.bf16.msra.mxu0 0
        %767 = vmatprep.subr.bf16.mxu0 0
        %768 = vmatpush2.bf16.msra.mxu0 0
        %769 = vmatprep.subr.bf16.mxu0 0
        %770 = vmatpush2.bf16.msra.mxu0 0
        %771 = vmatprep.subr.bf16.mxu0 0
        %772 = vmatpush2.bf16.msra.mxu0 0
        %773 = vmatprep.subr.bf16.mxu0 0
        %774 = vmatpush2.bf16.msra.mxu0 0
        %775 = vmatprep.subr.bf16.mxu0 0
        %776 = vmatpush2.bf16.msra.mxu0 0
        %777 = vmatprep.subr.bf16.mxu0 0
        %778 = vmatpush2.bf16.msra.mxu0 0
        %779 = vmatprep.subr.bf16.mxu0 0
        %780 = vmatpush2.bf16.msra.mxu0 0
        %781 = vmatprep.mubr.bf16.mxu0 0
        %782 = vmatmul.mubr.bf16.gmra.mxu0 %v738
        %v783 = vpop.f32.mrf.mxu0
        %v784 = vadd.f32 0.0, %v783
        %v785 = vpop.f32.mrf.mxu0
        %v786 = vpop.f32.mrf.mxu0
        %v787 = vadd.f32 0.0, %v786
        %v788 = vpop.f32.mrf.mxu0
        %789 = vmatprep.mubr.bf16.mxu0 0
        %790 = vmatmul.mubr.bf16.gmra.mxu0 %v741
        %v791 = vpop.f32.mrf.mxu0
        %v792 = vadd.f32 0.0, %v791
        %v793 = vpop.f32.mrf.mxu0
        %v794 = vpop.f32.mrf.mxu0
        %v795 = vadd.f32 0.0, %v794
        %v796 = vpop.f32.mrf.mxu0
        %797 = vmatprep.mubr.bf16.mxu0 0
        %798 = vmatmul.mubr.bf16.gmra.mxu0 %v744
        %v799 = vpop.f32.mrf.mxu0
        %v800 = vadd.f32 0.0, %v799
        %v801 = vpop.f32.mrf.mxu0
        %v802 = vpop.f32.mrf.mxu0
        %v803 = vadd.f32 0.0, %v802
        %v804 = vpop.f32.mrf.mxu0
        %805 = vmatprep.mubr.bf16.mxu0 0
        %806 = vmatmul.mubr.bf16.gmra.mxu0 %v747
        %v807 = vpop.f32.mrf.mxu0
        %v808 = vadd.f32 0.0, %v807
        %v809 = vpop.f32.mrf.mxu0
        %v810 = vpop.f32.mrf.mxu0
        %v811 = vadd.f32 0.0, %v810
        %v812 = vpop.f32.mrf.mxu0
        %813 = vdwg.mxu0
        %v814 = vld [vmem:[%s632] sm:$0xff]
        %v815 = vld [vmem:[%s632 + $0x8] sm:$0xff]
        %v816 = vld [vmem:[%s632 + $0x10] sm:$0xff]
        %v817 = vld [vmem:[%s632 + $0x18] sm:$0xff]
        %v818 = vld [vmem:[%s632 + $0x20] sm:$0xff]
        %v819 = vld [vmem:[%s632 + $0x28] sm:$0xff]
        %v820 = vld [vmem:[%s632 + $0x30] sm:$0xff]
        %v821 = vld [vmem:[%s632 + $0x38] sm:$0xff]
        %v822 = vld [vmem:[#allocation10] sm:$0x1]
        %824 = vset.pattern.permute.xlu0 0
        %825 = vperm.xlu0 %824, %v814
        %v826 = vpop.permute.xlu0 %825
        %829 = vset.pattern.permute.xlu0 0
        %830 = vperm.xlu0 %829, %v815
        %v831 = vpop.permute.xlu0 %830
        %834 = vset.pattern.permute.xlu0 0
        %835 = vperm.xlu0 %834, %v816
        %v836 = vpop.permute.xlu0 %835
        %839 = vset.pattern.permute.xlu0 0
        %840 = vperm.xlu0 %839, %v817
        %v841 = vpop.permute.xlu0 %840
        %844 = vset.pattern.permute.xlu0 0
        %845 = vperm.xlu0 %844, %v818
        %v846 = vpop.permute.xlu0 %845
        %849 = vset.pattern.permute.xlu0 0
        %850 = vperm.xlu0 %849, %v819
        %v851 = vpop.permute.xlu0 %850
        %854 = vset.pattern.permute.xlu0 0
        %855 = vperm.xlu0 %854, %v820
        %v856 = vpop.permute.xlu0 %855
        %859 = vset.pattern.permute.xlu0 0
        %860 = vperm.xlu0 %859, %v821
        %v861 = vpop.permute.xlu0 %860
        %v864 = vlaneseq
        %v865 = vshrl.u32 %v864, 7
        %v866 = vsub.s32 0, %v865
        %v867 = vrot.slane %v822, %v866
        %v869 = vmul.f32 %v826, %v867
        %v870 = vmul.f32 %v831, %v867
        %v871 = vmul.f32 %v836, %v867
        %v872 = vmul.f32 %v841, %v867
        %v873 = vmul.f32 %v846, %v867
        %v874 = vmul.f32 %v851, %v867
        %v875 = vmul.f32 %v856, %v867
        %v876 = vmul.f32 %v861, %v867
        %v877 = vadd.f32 %v784, %v869
        %v878 = vadd.f32 %v787, %v870
        %v879 = vadd.f32 %v792, %v871
        %v880 = vadd.f32 %v795, %v872
        %v881 = vadd.f32 %v800, %v873
        %v882 = vadd.f32 %v803, %v874
        %v883 = vadd.f32 %v808, %v875
        %v884 = vadd.f32 %v811, %v876
        %v885 = vld [vmem:[#allocation12] sm:$0x1]
        %v887 = vlaneseq
        %v888 = vshrl.u32 %v887, 7
        %v889 = vsub.s32 0, %v888
        %v890 = vrot.slane %v885, %v889
        %v892 = vadd.f32 %v877, %v890
        %v893 = vadd.f32 %v878, %v890
        %v894 = vadd.f32 %v879, %v890
        %v895 = vadd.f32 %v880, %v890
        %v896 = vadd.f32 %v881, %v890
        %v897 = vadd.f32 %v882, %v890
        %v898 = vadd.f32 %v883, %v890
        %v899 = vadd.f32 %v884, %v890
        %v900 = vld [vmem:[%s5] sm:$0xf]
        %v901 = vld [vmem:[%s5 + $0x4] sm:$0xf]
        %v902 = vld [vmem:[%s5 + $0x8] sm:$0xf]
        %v903 = vld [vmem:[%s5 + $0xc] sm:$0xf]
        %v904 = vld [vmem:[#allocation15] sm:$0xf]
        %v905 = vld [vmem:[#allocation15 + $0x4] sm:$0xf]
        %v906 = vld [vmem:[#allocation15 + $0x8] sm:$0xf]
        %v907 = vld [vmem:[#allocation15 + $0xc] sm:$0xf]
        %v908 = vld [vmem:[#allocation16] sm:$0xf]
        %v909 = vld [vmem:[#allocation16 + $0x4] sm:$0xf]
        %v910 = vld [vmem:[#allocation16 + $0x8] sm:$0xf]
        %v911 = vld [vmem:[#allocation16 + $0xc] sm:$0xf]
        %v912 = vld [vmem:[#allocation13] sm:$0x1]
        %v913 = vld [vmem:[%s8] sm:$0x1]
        %v914 = vld [vmem:[%s10] sm:$0x1]
        %v915 = vld [vmem:[#allocation2] sm:$0xff]
        %v916 = vld [vmem:[#allocation3] sm:$0xff]
        %v917 = vpack.c.bf16 %v915, %v915
        %v919 = vlaneseq
        %v920 = vshrl.u32 %v919, 7
        %v921 = vsub.s32 0, %v920
        %v922 = vrot.slane %v912, %v921
        %v928 = vunpack.c.l.b16 %v900
        %v929 = vunpack.c.l.b16 %v901
        %v930 = vunpack.c.l.b16 %v902
        %v931 = vunpack.c.l.b16 %v903
        %v932 = vpack.c.b16 %v929, %v928
        %v933 = vpack.c.b16 %v931, %v930
        %vm936 = vcmask 261120
        %v938 = vsel %vm936, %v917, 0
        %940 = vmatprep.subr.bf16.mxu0 0
        %941 = vmatpush1.bf16.msra.mxu0 0
        %942 = vmatprep.subr.bf16.mxu0 0
        %943 = vmatpush1.bf16.msra.mxu0 0
        %944 = vmatprep.subr.bf16.mxu0 0
        %945 = vmatpush1.bf16.msra.mxu0 0
        %946 = vmatprep.subr.bf16.mxu0 0
        %947 = vmatpush1.bf16.msra.mxu0 0
        %948 = vmatprep.subr.bf16.mxu0 0
        %949 = vmatpush1.bf16.msra.mxu0 0
        %950 = vmatprep.subr.bf16.mxu0 0
        %951 = vmatpush1.bf16.msra.mxu0 0
        %952 = vmatprep.subr.bf16.mxu0 0
        %953 = vmatpush1.bf16.msra.mxu0 %v933
        %954 = vmatprep.subr.bf16.mxu0 0
        %955 = vmatpush1.bf16.msra.mxu0 %v932
        %956 = vmatprep.subr.bf16.mxu0 0
        %957 = vmatpush2.bf16.msra.mxu0 0
        %958 = vmatprep.subr.bf16.mxu0 0
        %959 = vmatpush2.bf16.msra.mxu0 0
        %960 = vmatprep.subr.bf16.mxu0 0
        %961 = vmatpush2.bf16.msra.mxu0 0
        %962 = vmatprep.subr.bf16.mxu0 0
        %963 = vmatpush2.bf16.msra.mxu0 0
        %964 = vmatprep.subr.bf16.mxu0 0
        %965 = vmatpush2.bf16.msra.mxu0 0
        %966 = vmatprep.subr.bf16.mxu0 0
        %967 = vmatpush2.bf16.msra.mxu0 0
        %968 = vmatprep.subr.bf16.mxu0 0
        %969 = vmatpush2.bf16.msra.mxu0 0
        %970 = vmatprep.subr.bf16.mxu0 0
        %971 = vmatpush2.bf16.msra.mxu0 0
        %972 = vmatprep.mubr.bf16.mxu0 0
        %973 = vmatmul.mubr.bf16.gmra.mxu0 %v938
        %v974 = vpop.f32.mrf.mxu0
        %v975 = vadd.f32 %v922, %v974
        %v976 = vpop.f32.mrf.mxu0
        %v977 = vpop.f32.mrf.mxu0
        %v978 = vpop.f32.mrf.mxu0
        %979 = vdwg.mxu0
        %v981 = vrot.slane %v975, 1
        %v982 = vrot.slane %v975, 2
        %v983 = vrot.slane %v975, 3
        %v984 = vrot.slane %v975, 4
        %v985 = vrot.slane %v975, 5
        %v986 = vrot.slane %v975, 6
        %v987 = vrot.slane %v975, 7
        %v996 = vadd.f32 %v892, %v975
        %v997 = vadd.f32 %v893, %v981
        %v998 = vadd.f32 %v894, %v982
        %v999 = vadd.f32 %v895, %v983
        %v1000 = vadd.f32 %v896, %v984
        %v1001 = vadd.f32 %v897, %v985
        %v1002 = vadd.f32 %v898, %v986
        %v1003 = vadd.f32 %v899, %v987
        %v1004 = vxor.u32 %v996, 2147483648
        %v1005 = vxor.u32 %v997, 2147483648
        %v1006 = vxor.u32 %v998, 2147483648
        %v1007 = vxor.u32 %v999, 2147483648
        %v1008 = vxor.u32 %v1000, 2147483648
        %v1009 = vxor.u32 %v1001, 2147483648
        %v1010 = vxor.u32 %v1002, 2147483648
        %v1011 = vxor.u32 %v1003, 2147483648
        %v1012 = vmul.f32 %v1004, 1.442695
        %v1013 = vpow.pop %v1012
        %v1014 = vmul.f32 %v1005, 1.442695
        %v1015 = vpow.pop %v1014
        %v1016 = vmul.f32 %v1006, 1.442695
        %v1017 = vpow.pop %v1016
        %v1018 = vmul.f32 %v1007, 1.442695
        %v1019 = vpow.pop %v1018
        %v1020 = vmul.f32 %v1008, 1.442695
        %v1021 = vpow.pop %v1020
        %v1022 = vmul.f32 %v1009, 1.442695
        %v1023 = vpow.pop %v1022
        %v1024 = vmul.f32 %v1010, 1.442695
        %v1025 = vpow.pop %v1024
        %v1026 = vmul.f32 %v1011, 1.442695
        %v1027 = vpow.pop %v1026
        %v1028 = vadd.f32 %v1013, 1.0
        %v1029 = vadd.f32 %v1015, 1.0
        %v1030 = vadd.f32 %v1017, 1.0
        %v1031 = vadd.f32 %v1019, 1.0
        %v1032 = vadd.f32 %v1021, 1.0
        %v1033 = vadd.f32 %v1023, 1.0
        %v1034 = vadd.f32 %v1025, 1.0
        %v1035 = vadd.f32 %v1027, 1.0
        %v1036 = vrcp.pop %v1028
        %v1037 = vmul.f32 1.0, %v1036
        %v1038 = vrcp.pop %v1029
        %v1039 = vmul.f32 1.0, %v1038
        %v1040 = vrcp.pop %v1030
        %v1041 = vmul.f32 1.0, %v1040
        %v1042 = vrcp.pop %v1031
        %v1043 = vmul.f32 1.0, %v1042
        %v1044 = vrcp.pop %v1032
        %v1045 = vmul.f32 1.0, %v1044
        %v1046 = vrcp.pop %v1033
        %v1047 = vmul.f32 1.0, %v1046
        %v1048 = vrcp.pop %v1034
        %v1049 = vmul.f32 1.0, %v1048
        %v1050 = vrcp.pop %v1035
        %v1051 = vmul.f32 1.0, %v1050
        %1052 = vrot.lane.b32.xlu0 %v975, 64
        %v1053 = vpop.permute.xlu0 %1052
        %1054 = vrot.lane.b32.xlu0 %v981, 64
        %v1055 = vpop.permute.xlu0 %1054
        %1056 = vrot.lane.b32.xlu0 %v982, 64
        %v1057 = vpop.permute.xlu0 %1056
        %1058 = vrot.lane.b32.xlu0 %v983, 64
        %v1059 = vpop.permute.xlu0 %1058
        %1060 = vrot.lane.b32.xlu0 %v984, 64
        %v1061 = vpop.permute.xlu0 %1060
        %1062 = vrot.lane.b32.xlu0 %v985, 64
        %v1063 = vpop.permute.xlu0 %1062
        %1064 = vrot.lane.b32.xlu0 %v986, 64
        %v1065 = vpop.permute.xlu0 %1064
        %1066 = vrot.lane.b32.xlu0 %v987, 64
        %v1067 = vpop.permute.xlu0 %1066
        %v1076 = vmul.f32 %v1037, %v1053
        %v1077 = vmul.f32 %v1039, %v1055
        %v1078 = vmul.f32 %v1041, %v1057
        %v1079 = vmul.f32 %v1043, %v1059
        %v1080 = vmul.f32 %v1045, %v1061
        %v1081 = vmul.f32 %v1047, %v1063
        %v1082 = vmul.f32 %v1049, %v1065
        %v1083 = vmul.f32 %v1051, %v1067
        %1092 = vrot.lane.b32.xlu0 %v1076, 64
        %v1093 = vpop.permute.xlu0 %1092
        %1094 = vrot.lane.b32.xlu0 %v1077, 64
        %v1095 = vpop.permute.xlu0 %1094
        %1096 = vrot.lane.b32.xlu0 %v1078, 64
        %v1097 = vpop.permute.xlu0 %1096
        %1098 = vrot.lane.b32.xlu0 %v1079, 64
        %v1099 = vpop.permute.xlu0 %1098
        %1100 = vrot.lane.b32.xlu0 %v1080, 64
        %v1101 = vpop.permute.xlu0 %1100
        %1102 = vrot.lane.b32.xlu0 %v1081, 64
        %v1103 = vpop.permute.xlu0 %1102
        %1104 = vrot.lane.b32.xlu0 %v1082, 64
        %v1105 = vpop.permute.xlu0 %1104
        %1106 = vrot.lane.b32.xlu0 %v1083, 64
        %v1107 = vpop.permute.xlu0 %1106
        %v1116 = vadd.f32 %v892, %v1093
        %v1117 = vadd.f32 %v893, %v1095
        %v1118 = vadd.f32 %v894, %v1097
        %v1119 = vadd.f32 %v895, %v1099
        %v1120 = vadd.f32 %v896, %v1101
        %v1121 = vadd.f32 %v897, %v1103
        %v1122 = vadd.f32 %v898, %v1105
        %v1123 = vadd.f32 %v899, %v1107
        %v1124 = vtanh.pop %v1116
        %v1125 = vtanh.pop %v1117
        %v1126 = vtanh.pop %v1118
        %v1127 = vtanh.pop %v1119
        %v1128 = vtanh.pop %v1120
        %v1129 = vtanh.pop %v1121
        %v1130 = vtanh.pop %v1122
        %v1131 = vtanh.pop %v1123
        %v1132 = vsub.f32 1.0, %v1037
        %v1133 = vsub.f32 1.0, %v1039
        %v1134 = vsub.f32 1.0, %v1041
        %v1135 = vsub.f32 1.0, %v1043
        %v1136 = vsub.f32 1.0, %v1045
        %v1137 = vsub.f32 1.0, %v1047
        %v1138 = vsub.f32 1.0, %v1049
        %v1139 = vsub.f32 1.0, %v1051
        %1148 = vrot.lane.b32.xlu0 %v1124, 96
        %v1149 = vpop.permute.xlu0 %1148
        %1150 = vrot.lane.b32.xlu0 %v1125, 96
        %v1151 = vpop.permute.xlu0 %1150
        %1152 = vrot.lane.b32.xlu0 %v1126, 96
        %v1153 = vpop.permute.xlu0 %1152
        %1154 = vrot.lane.b32.xlu0 %v1127, 96
        %v1155 = vpop.permute.xlu0 %1154
        %1156 = vrot.lane.b32.xlu0 %v1128, 96
        %v1157 = vpop.permute.xlu0 %1156
        %1158 = vrot.lane.b32.xlu0 %v1129, 96
        %v1159 = vpop.permute.xlu0 %1158
        %1160 = vrot.lane.b32.xlu0 %v1130, 96
        %v1161 = vpop.permute.xlu0 %1160
        %1162 = vrot.lane.b32.xlu0 %v1131, 96
        %v1163 = vpop.permute.xlu0 %1162
        %v1172 = vmul.f32 %v1132, %v1149
        %v1173 = vmul.f32 %v1133, %v1151
        %v1174 = vmul.f32 %v1134, %v1153
        %v1175 = vmul.f32 %v1135, %v1155
        %v1176 = vmul.f32 %v1136, %v1157
        %v1177 = vmul.f32 %v1137, %v1159
        %v1178 = vmul.f32 %v1138, %v1161
        %v1179 = vmul.f32 %v1139, %v1163
        %v1181 = vrot.slane %v915, 1
        %v1182 = vrot.slane %v915, 2
        %v1183 = vrot.slane %v915, 3
        %v1184 = vrot.slane %v915, 4
        %v1185 = vrot.slane %v915, 5
        %v1186 = vrot.slane %v915, 6
        %v1187 = vrot.slane %v915, 7
        %1188 = vrot.lane.b32.xlu0 %v915, 32
        %v1189 = vpop.permute.xlu0 %1188
        %1190 = vrot.lane.b32.xlu0 %v1181, 32
        %v1191 = vpop.permute.xlu0 %1190
        %1192 = vrot.lane.b32.xlu0 %v1182, 32
        %v1193 = vpop.permute.xlu0 %1192
        %1194 = vrot.lane.b32.xlu0 %v1183, 32
        %v1195 = vpop.permute.xlu0 %1194
        %1196 = vrot.lane.b32.xlu0 %v1184, 32
        %v1197 = vpop.permute.xlu0 %1196
        %1198 = vrot.lane.b32.xlu0 %v1185, 32
        %v1199 = vpop.permute.xlu0 %1198
        %1200 = vrot.lane.b32.xlu0 %v1186, 32
        %v1201 = vpop.permute.xlu0 %1200
        %1202 = vrot.lane.b32.xlu0 %v1187, 32
        %v1203 = vpop.permute.xlu0 %1202
        %v1212 = vmul.f32 %v1037, %v1189
        %v1213 = vmul.f32 %v1039, %v1191
        %v1214 = vmul.f32 %v1041, %v1193
        %v1215 = vmul.f32 %v1043, %v1195
        %v1216 = vmul.f32 %v1045, %v1197
        %v1217 = vmul.f32 %v1047, %v1199
        %v1218 = vmul.f32 %v1049, %v1201
        %v1219 = vmul.f32 %v1051, %v1203
        %v1220 = vadd.f32 %v1172, %v1212
        %v1221 = vadd.f32 %v1173, %v1213
        %v1222 = vadd.f32 %v1174, %v1214
        %v1223 = vadd.f32 %v1175, %v1215
        %v1224 = vadd.f32 %v1176, %v1216
        %v1225 = vadd.f32 %v1177, %v1217
        %v1226 = vadd.f32 %v1178, %v1218
        %v1227 = vadd.f32 %v1179, %v1219
        %v1228 = vpack.c.bf16 %v1220, %v1220
        %v1229 = vpack.c.bf16 %v1221, %v1221
        %v1230 = vpack.c.bf16 %v1222, %v1222
        %v1231 = vpack.c.bf16 %v1223, %v1223
        %v1232 = vpack.c.bf16 %v1224, %v1224
        %v1233 = vpack.c.bf16 %v1225, %v1225
        %v1234 = vpack.c.bf16 %v1226, %v1226
        %v1235 = vpack.c.bf16 %v1227, %v1227
        %v1237 = vlaneseq
        %v1238 = vshrl.u32 %v1237, 7
        %v1239 = vsub.s32 0, %v1238
        %v1240 = vrot.slane %v913, %v1239
        %v1250 = vunpack.c.l.b16 %v1228
        %v1251 = vunpack.c.l.b16 %v1229
        %v1252 = vunpack.c.l.b16 %v1230
        %v1253 = vunpack.c.l.b16 %v1231
        %v1254 = vunpack.c.l.b16 %v1232
        %v1255 = vunpack.c.l.b16 %v1233
        %v1256 = vunpack.c.l.b16 %v1234
        %v1257 = vunpack.c.l.b16 %v1235
        %v1258 = vrot.slane %v1251, 7
        %vm1259 = vcmask 1041409
        %v1260 = vsel %vm1259, %v1258, %v1250
        %v1261 = vrot.slane %v1252, 6
        %vm1262 = vcmask 1042434
        %v1263 = vsel %vm1262, %v1261, %v1260
        %v1264 = vrot.slane %v1253, 5
        %vm1265 = vcmask 1043459
        %v1266 = vsel %vm1265, %v1264, %v1263
        %v1267 = vrot.slane %v1254, 4
        %vm1268 = vcmask 1044484
        %v1269 = vsel %vm1268, %v1267, %v1266
        %v1270 = vrot.slane %v1255, 3
        %vm1271 = vcmask 1045509
        %v1272 = vsel %vm1271, %v1270, %v1269
        %v1273 = vrot.slane %v1256, 2
        %vm1274 = vcmask 1046534
        %v1275 = vsel %vm1274, %v1273, %v1272
        %v1276 = vrot.slane %v1257, 1
        %vm1277 = vcmask 1047559
        %v1278 = vsel %vm1277, %v1276, %v1275
        %v1279 = vpack.c.b16 %v1278, %v1278
        %1280 = vrot.lane.b32.xlu0 %v1279, 96
        %v1281 = vpop.permute.xlu0 %1280
        %v1286 = vunpack.c.l.b16 %v904
        %v1287 = vunpack.c.l.b16 %v905
        %v1288 = vunpack.c.l.b16 %v906
        %v1289 = vunpack.c.l.b16 %v907
        %v1290 = vpack.c.b16 %v1287, %v1286
        %v1291 = vpack.c.b16 %v1289, %v1288
        %v1295 = vsel %vm936, %v1281, 0
        %1297 = vmatprep.subr.bf16.mxu0 0
        %1298 = vmatpush1.bf16.msra.mxu0 0
        %1299 = vmatprep.subr.bf16.mxu0 0
        %1300 = vmatpush1.bf16.msra.mxu0 0
        %1301 = vmatprep.subr.bf16.mxu0 0
        %1302 = vmatpush1.bf16.msra.mxu0 0
        %1303 = vmatprep.subr.bf16.mxu0 0
        %1304 = vmatpush1.bf16.msra.mxu0 0
        %1305 = vmatprep.subr.bf16.mxu0 0
        %1306 = vmatpush1.bf16.msra.mxu0 0
        %1307 = vmatprep.subr.bf16.mxu0 0
        %1308 = vmatpush1.bf16.msra.mxu0 0
        %1309 = vmatprep.subr.bf16.mxu0 0
        %1310 = vmatpush1.bf16.msra.mxu0 %v1291
        %1311 = vmatprep.subr.bf16.mxu0 0
        %1312 = vmatpush1.bf16.msra.mxu0 %v1290
        %1313 = vmatprep.subr.bf16.mxu0 0
        %1314 = vmatpush2.bf16.msra.mxu0 0
        %1315 = vmatprep.subr.bf16.mxu0 0
        %1316 = vmatpush2.bf16.msra.mxu0 0
        %1317 = vmatprep.subr.bf16.mxu0 0
        %1318 = vmatpush2.bf16.msra.mxu0 0
        %1319 = vmatprep.subr.bf16.mxu0 0
        %1320 = vmatpush2.bf16.msra.mxu0 0
        %1321 = vmatprep.subr.bf16.mxu0 0
        %1322 = vmatpush2.bf16.msra.mxu0 0
        %1323 = vmatprep.subr.bf16.mxu0 0
        %1324 = vmatpush2.bf16.msra.mxu0 0
        %1325 = vmatprep.subr.bf16.mxu0 0
        %1326 = vmatpush2.bf16.msra.mxu0 0
        %1327 = vmatprep.subr.bf16.mxu0 0
        %1328 = vmatpush2.bf16.msra.mxu0 0
        %1329 = vmatprep.mubr.bf16.mxu0 0
        %1330 = vmatmul.mubr.bf16.gmra.mxu0 %v1295
        %v1331 = vpop.f32.mrf.mxu0
        %v1332 = vadd.f32 %v1240, %v1331
        %v1333 = vpop.f32.mrf.mxu0
        %v1334 = vpop.f32.mrf.mxu0
        %v1335 = vpop.f32.mrf.mxu0
        %1336 = vdwg.mxu0
        %v1337 = vpack.c.bf16 %v916, %v916
        %v1339 = vlaneseq
        %v1340 = vshrl.u32 %v1339, 7
        %v1341 = vsub.s32 0, %v1340
        %v1342 = vrot.slane %v914, %v1341
        %v1348 = vunpack.c.l.b16 %v908
        %v1349 = vunpack.c.l.b16 %v909
        %v1350 = vunpack.c.l.b16 %v910
        %v1351 = vunpack.c.l.b16 %v911
        %v1352 = vpack.c.b16 %v1349, %v1348
        %v1353 = vpack.c.b16 %v1351, %v1350
        %v1357 = vsel %vm936, %v1337, 0
        %1359 = vmatprep.subr.bf16.mxu0 0
        %1360 = vmatpush1.bf16.msra.mxu0 0
        %1361 = vmatprep.subr.bf16.mxu0 0
        %1362 = vmatpush1.bf16.msra.mxu0 0
        %1363 = vmatprep.subr.bf16.mxu0 0
        %1364 = vmatpush1.bf16.msra.mxu0 0
        %1365 = vmatprep.subr.bf16.mxu0 0
        %1366 = vmatpush1.bf16.msra.mxu0 0
        %1367 = vmatprep.subr.bf16.mxu0 0
        %1368 = vmatpush1.bf16.msra.mxu0 0
        %1369 = vmatprep.subr.bf16.mxu0 0
        %1370 = vmatpush1.bf16.msra.mxu0 0
        %1371 = vmatprep.subr.bf16.mxu0 0
        %1372 = vmatpush1.bf16.msra.mxu0 %v1353
        %1373 = vmatprep.subr.bf16.mxu0 0
        %1374 = vmatpush1.bf16.msra.mxu0 %v1352
        %1375 = vmatprep.subr.bf16.mxu0 0
        %1376 = vmatpush2.bf16.msra.mxu0 0
        %1377 = vmatprep.subr.bf16.mxu0 0
        %1378 = vmatpush2.bf16.msra.mxu0 0
        %1379 = vmatprep.subr.bf16.mxu0 0
        %1380 = vmatpush2.bf16.msra.mxu0 0
        %1381 = vmatprep.subr.bf16.mxu0 0
        %1382 = vmatpush2.bf16.msra.mxu0 0
        %1383 = vmatprep.subr.bf16.mxu0 0
        %1384 = vmatpush2.bf16.msra.mxu0 0
        %1385 = vmatprep.subr.bf16.mxu0 0
        %1386 = vmatpush2.bf16.msra.mxu0 0
        %1387 = vmatprep.subr.bf16.mxu0 0
        %1388 = vmatpush2.bf16.msra.mxu0 0
        %1389 = vmatprep.subr.bf16.mxu0 0
        %1390 = vmatpush2.bf16.msra.mxu0 0
        %1391 = vmatprep.mubr.bf16.mxu0 0
        %1392 = vmatmul.mubr.bf16.gmra.mxu0 %v1357
        %v1393 = vpop.f32.mrf.mxu0
        %v1394 = vadd.f32 %v1342, %v1393
        %v1395 = vpop.f32.mrf.mxu0
        %v1396 = vpop.f32.mrf.mxu0
        %v1397 = vpop.f32.mrf.mxu0
        %1398 = vdwg.mxu0
        %v1399 = vadd.f32 %v1332, %v1394
        %v1400 = vxor.u32 %v1399, 2147483648
        %v1401 = vmul.f32 %v1400, 1.442695
        %v1402 = vpow.pop %v1401
        %v1403 = vadd.f32 %v1402, 1.0
        %v1404 = vrcp.pop %v1403
        %v1405 = vmul.f32 1.0, %v1404
        %1407 = vrot.lane.b32.xlu0 %v1394, 64
        %v1408 = vpop.permute.xlu0 %1407
        %v1410 = vmul.f32 %v1405, %v1408
        %1412 = vrot.lane.b32.xlu0 %v1410, 64
        %v1413 = vpop.permute.xlu0 %1412
        %v1415 = vadd.f32 %v1332, %v1413
        %v1416 = vtanh.pop %v1415
        %v1417 = vsub.f32 1.0, %v1405
        %1419 = vrot.lane.b32.xlu0 %v1416, 96
        %v1420 = vpop.permute.xlu0 %1419
        %v1422 = vmul.f32 %v1417, %v1420
        %1424 = vrot.lane.b32.xlu0 %v916, 32
        %v1425 = vpop.permute.xlu0 %1424
        %v1427 = vmul.f32 %v1405, %v1425
        %v1428 = vadd.f32 %v1422, %v1427
        %v1430 = vcombine.high %v1428, %v1428
        %v1432 = vunpack.c.l.s4 1966171168
        %v1433 = vunpack.c.0.s8 %v1432
        %v1434 = vlaneseq
        %v1435 = vshrl.u32 %v1434, 7
        %v1436 = vsub.s32 %v1433, %v1435
        %v1437 = vrot.slane %v1428, %v1436
        %v1439 = vunpack.c.l.s4 1966171168
        %v1440 = vunpack.c.0.s8 %v1439
        %v1441 = vlaneseq
        %v1442 = vshrl.u32 %v1441, 7
        %v1443 = vsub.s32 %v1440, %v1442
        %v1444 = vrot.slane %v1430, %v1443
        %v1445 = vcombine.high %v1437, %v1437
        %v1446 = vcombine.high %v1444, %v1444
        %v1448 = vunpack.c.l.s4 1966171168
        %v1449 = vunpack.c.0.s8 %v1448
        %v1450 = vlaneseq
        %v1451 = vshrl.u32 %v1450, 7
        %v1452 = vsub.s32 %v1449, %v1451
        %v1453 = vrot.slane %v1437, %v1452
        %v1455 = vunpack.c.l.s4 1966171168
        %v1456 = vunpack.c.0.s8 %v1455
        %v1457 = vlaneseq
        %v1458 = vshrl.u32 %v1457, 7
        %v1459 = vsub.s32 %v1456, %v1458
        %v1460 = vrot.slane %v1444, %v1459
        %v1462 = vunpack.c.l.s4 1966171168
        %v1463 = vunpack.c.0.s8 %v1462
        %v1464 = vlaneseq
        %v1465 = vshrl.u32 %v1464, 7
        %v1466 = vsub.s32 %v1463, %v1465
        %v1467 = vrot.slane %v1445, %v1466
        %v1469 = vunpack.c.l.s4 1966171168
        %v1470 = vunpack.c.0.s8 %v1469
        %v1471 = vlaneseq
        %v1472 = vshrl.u32 %v1471, 7
        %v1473 = vsub.s32 %v1470, %v1472
        %v1474 = vrot.slane %v1446, %v1473
        %v1475 = vcombine.high %v1453, %v1453
        %v1476 = vcombine.high %v1460, %v1460
        %v1477 = vcombine.high %v1467, %v1467
        %v1478 = vcombine.high %v1474, %v1474
        %v1479 = vlaneseq
        %v1480 = vshrl.u32 %v1479, 7
        %v1481 = vsub.s32 0, %v1480
        %v1482 = vrot.slane %v1453, %v1481
        %v1483 = vlaneseq
        %v1484 = vshrl.u32 %v1483, 7
        %v1485 = vsub.s32 0, %v1484
        %v1486 = vrot.slane %v1467, %v1485
        %v1487 = vlaneseq
        %v1488 = vshrl.u32 %v1487, 7
        %v1489 = vsub.s32 0, %v1488
        %v1490 = vrot.slane %v1475, %v1489
        %v1491 = vlaneseq
        %v1492 = vshrl.u32 %v1491, 7
        %v1493 = vsub.s32 0, %v1492
        %v1494 = vrot.slane %v1477, %v1493
        %v1495 = vlaneseq
        %v1496 = vshrl.u32 %v1495, 7
        %v1497 = vsub.s32 0, %v1496
        %v1498 = vrot.slane %v1460, %v1497
        %v1499 = vlaneseq
        %v1500 = vshrl.u32 %v1499, 7
        %v1501 = vsub.s32 0, %v1500
        %v1502 = vrot.slane %v1474, %v1501
        %v1503 = vlaneseq
        %v1504 = vshrl.u32 %v1503, 7
        %v1505 = vsub.s32 0, %v1504
        %v1506 = vrot.slane %v1476, %v1505
        %v1507 = vlaneseq
        %v1508 = vshrl.u32 %v1507, 7
        %v1509 = vsub.s32 0, %v1508
        %v1510 = vrot.slane %v1478, %v1509
        %1511 = vrot.lane.b32.xlu0 %v1482, 96
        %v1512 = vpop.permute.xlu0 %1511
        %1513 = vrot.lane.b32.xlu0 %v1486, 96
        %v1514 = vpop.permute.xlu0 %1513
        %1515 = vrot.lane.b32.xlu0 %v1490, 96
        %v1516 = vpop.permute.xlu0 %1515
        %1517 = vrot.lane.b32.xlu0 %v1494, 96
        %v1518 = vpop.permute.xlu0 %1517
        %1519 = vrot.lane.b32.xlu0 %v1498, 96
        %v1520 = vpop.permute.xlu0 %1519
        %1521 = vrot.lane.b32.xlu0 %v1502, 96
        %v1522 = vpop.permute.xlu0 %1521
        %1523 = vrot.lane.b32.xlu0 %v1506, 96
        %v1524 = vpop.permute.xlu0 %1523
        %1525 = vrot.lane.b32.xlu0 %v1510, 96
        %v1526 = vpop.permute.xlu0 %1525
        %vm1535 = vcmask 253952
        %1536 = vst.msk [vmem:[#allocation4] sm:$0x1] %vm1535, %v1512
        %1537 = vst.msk [vmem:[#allocation4 + $0x8] sm:$0x1] %vm1535, %v1514
        %1538 = vst.msk [vmem:[#allocation4 + $0x10] sm:$0x1] %vm1535, %v1516
        %1539 = vst.msk [vmem:[#allocation4 + $0x18] sm:$0x1] %vm1535, %v1518
        %1540 = vst.msk [vmem:[#allocation4 + $0x20] sm:$0x1] %vm1535, %v1520
        %1541 = vst.msk [vmem:[#allocation4 + $0x28] sm:$0x1] %vm1535, %v1522
        %1542 = vst.msk [vmem:[#allocation4 + $0x30] sm:$0x1] %vm1535, %v1524
        %1543 = vst.msk [vmem:[#allocation4 + $0x38] sm:$0x1] %vm1535, %v1526
        %1544 = vmatprep.subr.bf16.mxu0 0
        %1545 = vmatpush1.bf16.msra.mxu0 0
        %1546 = vmatprep.subr.bf16.mxu0 0
        %1547 = vmatpush1.bf16.msra.mxu0 0
        %1548 = vmatprep.subr.bf16.mxu0 0
        %1549 = vmatpush1.bf16.msra.mxu0 0
        %1550 = vmatprep.subr.bf16.mxu0 0
        %1551 = vmatpush1.bf16.msra.mxu0 0
        %1552 = vmatprep.subr.bf16.mxu0 0
        %1553 = vmatpush1.bf16.msra.mxu0 0
        %1554 = vmatprep.subr.bf16.mxu0 0
        %1555 = vmatpush1.bf16.msra.mxu0 0
        %1556 = vmatprep.subr.bf16.mxu0 0
        %1557 = vmatpush1.bf16.msra.mxu0 %v933
        %1558 = vmatprep.subr.bf16.mxu0 0
        %1559 = vmatpush1.bf16.msra.mxu0 %v932
        %1560 = vmatprep.subr.bf16.mxu0 0
        %1561 = vmatpush2.bf16.msra.mxu0 0
        %1562 = vmatprep.subr.bf16.mxu0 0
        %1563 = vmatpush2.bf16.msra.mxu0 0
        %1564 = vmatprep.subr.bf16.mxu0 0
        %1565 = vmatpush2.bf16.msra.mxu0 0
        %1566 = vmatprep.subr.bf16.mxu0 0
        %1567 = vmatpush2.bf16.msra.mxu0 0
        %1568 = vmatprep.subr.bf16.mxu0 0
        %1569 = vmatpush2.bf16.msra.mxu0 0
        %1570 = vmatprep.subr.bf16.mxu0 0
        %1571 = vmatpush2.bf16.msra.mxu0 0
        %1572 = vmatprep.subr.bf16.mxu0 0
        %1573 = vmatpush2.bf16.msra.mxu0 0
        %1574 = vmatprep.subr.bf16.mxu0 0
        %1575 = vmatpush2.bf16.msra.mxu0 0
        %1576 = vmatprep.mubr.bf16.mxu0 0
        %1577 = vmatmul.mubr.bf16.gmra.mxu0 %v1295
        %v1578 = vpop.f32.mrf.mxu0
        %v1579 = vadd.f32 %v922, %v1578
        %v1580 = vpop.f32.mrf.mxu0
        %v1581 = vpop.f32.mrf.mxu0
        %v1582 = vpop.f32.mrf.mxu0
        %1583 = vdwg.mxu0
        %v1585 = vrot.slane %v1579, 7
        %v1586 = vrot.slane %v1579, 1
        %v1587 = vrot.slane %v1579, 2
        %v1588 = vrot.slane %v1579, 3
        %v1589 = vrot.slane %v1579, 4
        %v1590 = vrot.slane %v1579, 5
        %v1591 = vrot.slane %v1579, 6
        %v1600 = vadd.f32 %v892, %v1585
        %v1601 = vadd.f32 %v893, %v1579
        %v1602 = vadd.f32 %v894, %v1586
        %v1603 = vadd.f32 %v895, %v1587
        %v1604 = vadd.f32 %v896, %v1588
        %v1605 = vadd.f32 %v897, %v1589
        %v1606 = vadd.f32 %v898, %v1590
        %v1607 = vadd.f32 %v899, %v1591
        %v1608 = vxor.u32 %v1600, 2147483648
        %v1609 = vxor.u32 %v1601, 2147483648
        %v1610 = vxor.u32 %v1602, 2147483648
        %v1611 = vxor.u32 %v1603, 2147483648
        %v1612 = vxor.u32 %v1604, 2147483648
        %v1613 = vxor.u32 %v1605, 2147483648
        %v1614 = vxor.u32 %v1606, 2147483648
        %v1615 = vxor.u32 %v1607, 2147483648
        %v1616 = vmul.f32 %v1608, 1.442695
        %v1617 = vpow.pop %v1616
        %v1618 = vmul.f32 %v1609, 1.442695
        %v1619 = vpow.pop %v1618
        %v1620 = vmul.f32 %v1610, 1.442695
        %v1621 = vpow.pop %v1620
        %v1622 = vmul.f32 %v1611, 1.442695
        %v1623 = vpow.pop %v1622
        %v1624 = vmul.f32 %v1612, 1.442695
        %v1625 = vpow.pop %v1624
        %v1626 = vmul.f32 %v1613, 1.442695
        %v1627 = vpow.pop %v1626
        %v1628 = vmul.f32 %v1614, 1.442695
        %v1629 = vpow.pop %v1628
        %v1630 = vmul.f32 %v1615, 1.442695
        %v1631 = vpow.pop %v1630
        %v1632 = vadd.f32 %v1617, 1.0
        %v1633 = vadd.f32 %v1619, 1.0
        %v1634 = vadd.f32 %v1621, 1.0
        %v1635 = vadd.f32 %v1623, 1.0
        %v1636 = vadd.f32 %v1625, 1.0
        %v1637 = vadd.f32 %v1627, 1.0
        %v1638 = vadd.f32 %v1629, 1.0
        %v1639 = vadd.f32 %v1631, 1.0
        %v1640 = vrcp.pop %v1632
        %v1641 = vmul.f32 1.0, %v1640
        %v1642 = vrcp.pop %v1633
        %v1643 = vmul.f32 1.0, %v1642
        %v1644 = vrcp.pop %v1634
        %v1645 = vmul.f32 1.0, %v1644
        %v1646 = vrcp.pop %v1635
        %v1647 = vmul.f32 1.0, %v1646
        %v1648 = vrcp.pop %v1636
        %v1649 = vmul.f32 1.0, %v1648
        %v1650 = vrcp.pop %v1637
        %v1651 = vmul.f32 1.0, %v1650
        %v1652 = vrcp.pop %v1638
        %v1653 = vmul.f32 1.0, %v1652
        %v1654 = vrcp.pop %v1639
        %v1655 = vmul.f32 1.0, %v1654
        %1656 = vrot.lane.b32.xlu0 %v1585, 64
        %v1657 = vpop.permute.xlu0 %1656
        %1658 = vrot.lane.b32.xlu0 %v1579, 64
        %v1659 = vpop.permute.xlu0 %1658
        %1660 = vrot.lane.b32.xlu0 %v1586, 64
        %v1661 = vpop.permute.xlu0 %1660
        %1662 = vrot.lane.b32.xlu0 %v1587, 64
        %v1663 = vpop.permute.xlu0 %1662
        %1664 = vrot.lane.b32.xlu0 %v1588, 64
        %v1665 = vpop.permute.xlu0 %1664
        %1666 = vrot.lane.b32.xlu0 %v1589, 64
        %v1667 = vpop.permute.xlu0 %1666
        %1668 = vrot.lane.b32.xlu0 %v1590, 64
        %v1669 = vpop.permute.xlu0 %1668
        %1670 = vrot.lane.b32.xlu0 %v1591, 64
        %v1671 = vpop.permute.xlu0 %1670
        %v1680 = vmul.f32 %v1641, %v1657
        %v1681 = vmul.f32 %v1643, %v1659
        %v1682 = vmul.f32 %v1645, %v1661
        %v1683 = vmul.f32 %v1647, %v1663
        %v1684 = vmul.f32 %v1649, %v1665
        %v1685 = vmul.f32 %v1651, %v1667
        %v1686 = vmul.f32 %v1653, %v1669
        %v1687 = vmul.f32 %v1655, %v1671
        %1696 = vrot.lane.b32.xlu0 %v1680, 64
        %v1697 = vpop.permute.xlu0 %1696
        %1698 = vrot.lane.b32.xlu0 %v1681, 64
        %v1699 = vpop.permute.xlu0 %1698
        %1700 = vrot.lane.b32.xlu0 %v1682, 64
        %v1701 = vpop.permute.xlu0 %1700
        %1702 = vrot.lane.b32.xlu0 %v1683, 64
        %v1703 = vpop.permute.xlu0 %1702
        %1704 = vrot.lane.b32.xlu0 %v1684, 64
        %v1705 = vpop.permute.xlu0 %1704
        %1706 = vrot.lane.b32.xlu0 %v1685, 64
        %v1707 = vpop.permute.xlu0 %1706
        %1708 = vrot.lane.b32.xlu0 %v1686, 64
        %v1709 = vpop.permute.xlu0 %1708
        %1710 = vrot.lane.b32.xlu0 %v1687, 64
        %v1711 = vpop.permute.xlu0 %1710
        %v1720 = vadd.f32 %v892, %v1697
        %v1721 = vadd.f32 %v893, %v1699
        %v1722 = vadd.f32 %v894, %v1701
        %v1723 = vadd.f32 %v895, %v1703
        %v1724 = vadd.f32 %v896, %v1705
        %v1725 = vadd.f32 %v897, %v1707
        %v1726 = vadd.f32 %v898, %v1709
        %v1727 = vadd.f32 %v899, %v1711
        %v1728 = vtanh.pop %v1720
        %v1729 = vtanh.pop %v1721
        %v1730 = vtanh.pop %v1722
        %v1731 = vtanh.pop %v1723
        %v1732 = vtanh.pop %v1724
        %v1733 = vtanh.pop %v1725
        %v1734 = vtanh.pop %v1726
        %v1735 = vtanh.pop %v1727
        %v1736 = vsub.f32 1.0, %v1641
        %v1737 = vsub.f32 1.0, %v1643
        %v1738 = vsub.f32 1.0, %v1645
        %v1739 = vsub.f32 1.0, %v1647
        %v1740 = vsub.f32 1.0, %v1649
        %v1741 = vsub.f32 1.0, %v1651
        %v1742 = vsub.f32 1.0, %v1653
        %v1743 = vsub.f32 1.0, %v1655
        %1752 = vrot.lane.b32.xlu0 %v1728, 96
        %v1753 = vpop.permute.xlu0 %1752
        %1754 = vrot.lane.b32.xlu0 %v1729, 96
        %v1755 = vpop.permute.xlu0 %1754
        %1756 = vrot.lane.b32.xlu0 %v1730, 96
        %v1757 = vpop.permute.xlu0 %1756
        %1758 = vrot.lane.b32.xlu0 %v1731, 96
        %v1759 = vpop.permute.xlu0 %1758
        %1760 = vrot.lane.b32.xlu0 %v1732, 96
        %v1761 = vpop.permute.xlu0 %1760
        %1762 = vrot.lane.b32.xlu0 %v1733, 96
        %v1763 = vpop.permute.xlu0 %1762
        %1764 = vrot.lane.b32.xlu0 %v1734, 96
        %v1765 = vpop.permute.xlu0 %1764
        %1766 = vrot.lane.b32.xlu0 %v1735, 96
        %v1767 = vpop.permute.xlu0 %1766
        %v1776 = vmul.f32 %v1736, %v1753
        %v1777 = vmul.f32 %v1737, %v1755
        %v1778 = vmul.f32 %v1738, %v1757
        %v1779 = vmul.f32 %v1739, %v1759
        %v1780 = vmul.f32 %v1740, %v1761
        %v1781 = vmul.f32 %v1741, %v1763
        %v1782 = vmul.f32 %v1742, %v1765
        %v1783 = vmul.f32 %v1743, %v1767
        %v1792 = vrot.slane %v1220, 7
        %v1793 = vrot.slane %v1221, 7
        %v1794 = vrot.slane %v1222, 7
        %v1795 = vrot.slane %v1223, 7
        %v1796 = vrot.slane %v1224, 7
        %v1797 = vrot.slane %v1225, 7
        %v1798 = vrot.slane %v1226, 7
        %v1799 = vrot.slane %v1227, 7
        %v1808 = vmul.f32 %v1641, %v1792
        %v1809 = vmul.f32 %v1643, %v1793
        %v1810 = vmul.f32 %v1645, %v1794
        %v1811 = vmul.f32 %v1647, %v1795
        %v1812 = vmul.f32 %v1649, %v1796
        %v1813 = vmul.f32 %v1651, %v1797
        %v1814 = vmul.f32 %v1653, %v1798
        %v1815 = vmul.f32 %v1655, %v1799
        %v1816 = vadd.f32 %v1776, %v1808
        %v1817 = vadd.f32 %v1777, %v1809
        %v1818 = vadd.f32 %v1778, %v1810
        %v1819 = vadd.f32 %v1779, %v1811
        %v1820 = vadd.f32 %v1780, %v1812
        %v1821 = vadd.f32 %v1781, %v1813
        %v1822 = vadd.f32 %v1782, %v1814
        %v1823 = vadd.f32 %v1783, %v1815
        %v1824 = vpack.c.bf16 %v1816, %v1816
        %v1825 = vpack.c.bf16 %v1817, %v1817
        %v1826 = vpack.c.bf16 %v1818, %v1818
        %v1827 = vpack.c.bf16 %v1819, %v1819
        %v1828 = vpack.c.bf16 %v1820, %v1820
        %v1829 = vpack.c.bf16 %v1821, %v1821
        %v1830 = vpack.c.bf16 %v1822, %v1822
        %v1831 = vpack.c.bf16 %v1823, %v1823
        %v1840 = vunpack.c.l.b16 %v1824
        %v1841 = vunpack.c.l.b16 %v1825
        %v1842 = vunpack.c.l.b16 %v1826
        %v1843 = vunpack.c.l.b16 %v1827
        %v1844 = vunpack.c.l.b16 %v1828
        %v1845 = vunpack.c.l.b16 %v1829
        %v1846 = vunpack.c.l.b16 %v1830
        %v1847 = vunpack.c.l.b16 %v1831
        %v1848 = vrot.slane %v1840, 1
        %v1849 = vsel %vm1259, %v1841, %v1848
        %v1850 = vrot.slane %v1842, 7
        %v1851 = vsel %vm1262, %v1850, %v1849
        %v1852 = vrot.slane %v1843, 6
        %v1853 = vsel %vm1265, %v1852, %v1851
        %v1854 = vrot.slane %v1844, 5
        %v1855 = vsel %vm1268, %v1854, %v1853
        %v1856 = vrot.slane %v1845, 4
        %v1857 = vsel %vm1271, %v1856, %v1855
        %v1858 = vrot.slane %v1846, 3
        %v1859 = vsel %vm1274, %v1858, %v1857
        %v1860 = vrot.slane %v1847, 2
        %v1861 = vsel %vm1277, %v1860, %v1859
        %v1862 = vpack.c.b16 %v1861, %v1861
        %1863 = vrot.lane.b32.xlu0 %v1862, 96
        %v1864 = vpop.permute.xlu0 %1863
        %v1866 = vsel %vm936, %v1864, 0
        %1868 = vmatprep.subr.bf16.mxu0 0
        %1869 = vmatpush1.bf16.msra.mxu0 0
        %1870 = vmatprep.subr.bf16.mxu0 0
        %1871 = vmatpush1.bf16.msra.mxu0 0
        %1872 = vmatprep.subr.bf16.mxu0 0
        %1873 = vmatpush1.bf16.msra.mxu0 0
        %1874 = vmatprep.subr.bf16.mxu0 0
        %1875 = vmatpush1.bf16.msra.mxu0 0
        %1876 = vmatprep.subr.bf16.mxu0 0
        %1877 = vmatpush1.bf16.msra.mxu0 0
        %1878 = vmatprep.subr.bf16.mxu0 0
        %1879 = vmatpush1.bf16.msra.mxu0 0
        %1880 = vmatprep.subr.bf16.mxu0 0
        %1881 = vmatpush1.bf16.msra.mxu0 %v1291
        %1882 = vmatprep.subr.bf16.mxu0 0
        %1883 = vmatpush1.bf16.msra.mxu0 %v1290
        %1884 = vmatprep.subr.bf16.mxu0 0
        %1885 = vmatpush2.bf16.msra.mxu0 0
        %1886 = vmatprep.subr.bf16.mxu0 0
        %1887 = vmatpush2.bf16.msra.mxu0 0
        %1888 = vmatprep.subr.bf16.mxu0 0
        %1889 = vmatpush2.bf16.msra.mxu0 0
        %1890 = vmatprep.subr.bf16.mxu0 0
        %1891 = vmatpush2.bf16.msra.mxu0 0
        %1892 = vmatprep.subr.bf16.mxu0 0
        %1893 = vmatpush2.bf16.msra.mxu0 0
        %1894 = vmatprep.subr.bf16.mxu0 0
        %1895 = vmatpush2.bf16.msra.mxu0 0
        %1896 = vmatprep.subr.bf16.mxu0 0
        %1897 = vmatpush2.bf16.msra.mxu0 0
        %1898 = vmatprep.subr.bf16.mxu0 0
        %1899 = vmatpush2.bf16.msra.mxu0 0
        %1900 = vmatprep.mubr.bf16.mxu0 0
        %1901 = vmatmul.mubr.bf16.gmra.mxu0 %v1866
        %v1902 = vpop.f32.mrf.mxu0
        %v1903 = vadd.f32 %v1240, %v1902
        %v1904 = vpop.f32.mrf.mxu0
        %v1905 = vpop.f32.mrf.mxu0
        %v1906 = vpop.f32.mrf.mxu0
        %1907 = vdwg.mxu0
        %v1908 = vpack.c.bf16 %v1428, %v1428
        %1910 = vrot.lane.b32.xlu0 %v1908, 96
        %v1911 = vpop.permute.xlu0 %1910
        %v1913 = vsel %vm936, %v1911, 0
        %1915 = vmatprep.subr.bf16.mxu0 0
        %1916 = vmatpush1.bf16.msra.mxu0 0
        %1917 = vmatprep.subr.bf16.mxu0 0
        %1918 = vmatpush1.bf16.msra.mxu0 0
        %1919 = vmatprep.subr.bf16.mxu0 0
        %1920 = vmatpush1.bf16.msra.mxu0 0
        %1921 = vmatprep.subr.bf16.mxu0 0
        %1922 = vmatpush1.bf16.msra.mxu0 0
        %1923 = vmatprep.subr.bf16.mxu0 0
        %1924 = vmatpush1.bf16.msra.mxu0 0
        %1925 = vmatprep.subr.bf16.mxu0 0
        %1926 = vmatpush1.bf16.msra.mxu0 0
        %1927 = vmatprep.subr.bf16.mxu0 0
        %1928 = vmatpush1.bf16.msra.mxu0 %v1353
        %1929 = vmatprep.subr.bf16.mxu0 0
        %1930 = vmatpush1.bf16.msra.mxu0 %v1352
        %1931 = vmatprep.subr.bf16.mxu0 0
        %1932 = vmatpush2.bf16.msra.mxu0 0
        %1933 = vmatprep.subr.bf16.mxu0 0
        %1934 = vmatpush2.bf16.msra.mxu0 0
        %1935 = vmatprep.subr.bf16.mxu0 0
        %1936 = vmatpush2.bf16.msra.mxu0 0
        %1937 = vmatprep.subr.bf16.mxu0 0
        %1938 = vmatpush2.bf16.msra.mxu0 0
        %1939 = vmatprep.subr.bf16.mxu0 0
        %1940 = vmatpush2.bf16.msra.mxu0 0
        %1941 = vmatprep.subr.bf16.mxu0 0
        %1942 = vmatpush2.bf16.msra.mxu0 0
        %1943 = vmatprep.subr.bf16.mxu0 0
        %1944 = vmatpush2.bf16.msra.mxu0 0
        %1945 = vmatprep.subr.bf16.mxu0 0
        %1946 = vmatpush2.bf16.msra.mxu0 0
        %1947 = vmatprep.mubr.bf16.mxu0 0
        %1948 = vmatmul.mubr.bf16.gmra.mxu0 %v1913
        %v1949 = vpop.f32.mrf.mxu0
        %v1950 = vadd.f32 %v1342, %v1949
        %v1951 = vpop.f32.mrf.mxu0
        %v1952 = vpop.f32.mrf.mxu0
        %v1953 = vpop.f32.mrf.mxu0
        %1954 = vdwg.mxu0
        %v1955 = vadd.f32 %v1903, %v1950
        %v1956 = vxor.u32 %v1955, 2147483648
        %v1957 = vmul.f32 %v1956, 1.442695
        %v1958 = vpow.pop %v1957
        %v1959 = vadd.f32 %v1958, 1.0
        %v1960 = vrcp.pop %v1959
        %v1961 = vmul.f32 1.0, %v1960
        %1963 = vrot.lane.b32.xlu0 %v1950, 64
        %v1964 = vpop.permute.xlu0 %1963
        %v1966 = vmul.f32 %v1961, %v1964
        %1968 = vrot.lane.b32.xlu0 %v1966, 64
        %v1969 = vpop.permute.xlu0 %1968
        %v1971 = vadd.f32 %v1903, %v1969
        %v1972 = vtanh.pop %v1971
        %v1973 = vsub.f32 1.0, %v1961
        %1975 = vrot.lane.b32.xlu0 %v1972, 96
        %v1976 = vpop.permute.xlu0 %1975
        %v1978 = vmul.f32 %v1973, %v1976
        %v1979 = vmul.f32 %v1961, %v1428
        %v1980 = vadd.f32 %v1978, %v1979
        %v1982 = vcombine.high %v1980, %v1980
        %v1984 = vunpack.c.l.s4 1966171168
        %v1985 = vunpack.c.0.s8 %v1984
        %v1986 = vlaneseq
        %v1987 = vshrl.u32 %v1986, 7
        %v1988 = vsub.s32 %v1985, %v1987
        %v1989 = vrot.slane %v1980, %v1988
        %v1991 = vunpack.c.l.s4 1966171168
        %v1992 = vunpack.c.0.s8 %v1991
        %v1993 = vlaneseq
        %v1994 = vshrl.u32 %v1993, 7
        %v1995 = vsub.s32 %v1992, %v1994
        %v1996 = vrot.slane %v1982, %v1995
        %v1997 = vcombine.high %v1989, %v1989
        %v1998 = vcombine.high %v1996, %v1996
        %v2000 = vunpack.c.l.s4 1966171168
        %v2001 = vunpack.c.0.s8 %v2000
        %v2002 = vlaneseq
        %v2003 = vshrl.u32 %v2002, 7
        %v2004 = vsub.s32 %v2001, %v2003
        %v2005 = vrot.slane %v1989, %v2004
        %v2007 = vunpack.c.l.s4 1966171168
        %v2008 = vunpack.c.0.s8 %v2007
        %v2009 = vlaneseq
        %v2010 = vshrl.u32 %v2009, 7
        %v2011 = vsub.s32 %v2008, %v2010
        %v2012 = vrot.slane %v1996, %v2011
        %v2014 = vunpack.c.l.s4 1966171168
        %v2015 = vunpack.c.0.s8 %v2014
        %v2016 = vlaneseq
        %v2017 = vshrl.u32 %v2016, 7
        %v2018 = vsub.s32 %v2015, %v2017
        %v2019 = vrot.slane %v1997, %v2018
        %v2021 = vunpack.c.l.s4 1966171168
        %v2022 = vunpack.c.0.s8 %v2021
        %v2023 = vlaneseq
        %v2024 = vshrl.u32 %v2023, 7
        %v2025 = vsub.s32 %v2022, %v2024
        %v2026 = vrot.slane %v1998, %v2025
        %v2027 = vcombine.high %v2005, %v2005
        %v2028 = vcombine.high %v2012, %v2012
        %v2029 = vcombine.high %v2019, %v2019
        %v2030 = vcombine.high %v2026, %v2026
        %v2031 = vlaneseq
        %v2032 = vshrl.u32 %v2031, 7
        %v2033 = vsub.s32 0, %v2032
        %v2034 = vrot.slane %v2005, %v2033
        %v2035 = vlaneseq
        %v2036 = vshrl.u32 %v2035, 7
        %v2037 = vsub.s32 0, %v2036
        %v2038 = vrot.slane %v2019, %v2037
        %v2039 = vlaneseq
        %v2040 = vshrl.u32 %v2039, 7
        %v2041 = vsub.s32 0, %v2040
        %v2042 = vrot.slane %v2027, %v2041
        %v2043 = vlaneseq
        %v2044 = vshrl.u32 %v2043, 7
        %v2045 = vsub.s32 0, %v2044
        %v2046 = vrot.slane %v2029, %v2045
        %v2047 = vlaneseq
        %v2048 = vshrl.u32 %v2047, 7
        %v2049 = vsub.s32 0, %v2048
        %v2050 = vrot.slane %v2012, %v2049
        %v2051 = vlaneseq
        %v2052 = vshrl.u32 %v2051, 7
        %v2053 = vsub.s32 0, %v2052
        %v2054 = vrot.slane %v2026, %v2053
        %v2055 = vlaneseq
        %v2056 = vshrl.u32 %v2055, 7
        %v2057 = vsub.s32 0, %v2056
        %v2058 = vrot.slane %v2028, %v2057
        %v2059 = vlaneseq
        %v2060 = vshrl.u32 %v2059, 7
        %v2061 = vsub.s32 0, %v2060
        %v2062 = vrot.slane %v2030, %v2061
        %2063 = vrot.lane.b32.xlu0 %v2034, 96
        %v2064 = vpop.permute.xlu0 %2063
        %2065 = vrot.lane.b32.xlu0 %v2038, 96
        %v2066 = vpop.permute.xlu0 %2065
        %2067 = vrot.lane.b32.xlu0 %v2042, 96
        %v2068 = vpop.permute.xlu0 %2067
        %2069 = vrot.lane.b32.xlu0 %v2046, 96
        %v2070 = vpop.permute.xlu0 %2069
        %2071 = vrot.lane.b32.xlu0 %v2050, 96
        %v2072 = vpop.permute.xlu0 %2071
        %2073 = vrot.lane.b32.xlu0 %v2054, 96
        %v2074 = vpop.permute.xlu0 %2073
        %2075 = vrot.lane.b32.xlu0 %v2058, 96
        %v2076 = vpop.permute.xlu0 %2075
        %2077 = vrot.lane.b32.xlu0 %v2062, 96
        %v2078 = vpop.permute.xlu0 %2077
        %2087 = vst.msk [vmem:[#allocation4 + $0x1] sm:$0x1] %vm1535, %v2064
        %2088 = vst.msk [vmem:[#allocation4 + $0x9] sm:$0x1] %vm1535, %v2066
        %2089 = vst.msk [vmem:[#allocation4 + $0x11] sm:$0x1] %vm1535, %v2068
        %2090 = vst.msk [vmem:[#allocation4 + $0x19] sm:$0x1] %vm1535, %v2070
        %2091 = vst.msk [vmem:[#allocation4 + $0x21] sm:$0x1] %vm1535, %v2072
        %2092 = vst.msk [vmem:[#allocation4 + $0x29] sm:$0x1] %vm1535, %v2074
        %2093 = vst.msk [vmem:[#allocation4 + $0x31] sm:$0x1] %vm1535, %v2076
        %2094 = vst.msk [vmem:[#allocation4 + $0x39] sm:$0x1] %vm1535, %v2078
        %2095 = vmatprep.subr.bf16.mxu0 0
        %2096 = vmatpush1.bf16.msra.mxu0 0
        %2097 = vmatprep.subr.bf16.mxu0 0
        %2098 = vmatpush1.bf16.msra.mxu0 0
        %2099 = vmatprep.subr.bf16.mxu0 0
        %2100 = vmatpush1.bf16.msra.mxu0 0
        %2101 = vmatprep.subr.bf16.mxu0 0
        %2102 = vmatpush1.bf16.msra.mxu0 0
        %2103 = vmatprep.subr.bf16.mxu0 0
        %2104 = vmatpush1.bf16.msra.mxu0 0
        %2105 = vmatprep.subr.bf16.mxu0 0
        %2106 = vmatpush1.bf16.msra.mxu0 0
        %2107 = vmatprep.subr.bf16.mxu0 0
        %2108 = vmatpush1.bf16.msra.mxu0 %v933
        %2109 = vmatprep.subr.bf16.mxu0 0
        %2110 = vmatpush1.bf16.msra.mxu0 %v932
        %2111 = vmatprep.subr.bf16.mxu0 0
        %2112 = vmatpush2.bf16.msra.mxu0 0
        %2113 = vmatprep.subr.bf16.mxu0 0
        %2114 = vmatpush2.bf16.msra.mxu0 0
        %2115 = vmatprep.subr.bf16.mxu0 0
        %2116 = vmatpush2.bf16.msra.mxu0 0
        %2117 = vmatprep.subr.bf16.mxu0 0
        %2118 = vmatpush2.bf16.msra.mxu0 0
        %2119 = vmatprep.subr.bf16.mxu0 0
        %2120 = vmatpush2.bf16.msra.mxu0 0
        %2121 = vmatprep.subr.bf16.mxu0 0
        %2122 = vmatpush2.bf16.msra.mxu0 0
        %2123 = vmatprep.subr.bf16.mxu0 0
        %2124 = vmatpush2.bf16.msra.mxu0 0
        %2125 = vmatprep.subr.bf16.mxu0 0
        %2126 = vmatpush2.bf16.msra.mxu0 0
        %2127 = vmatprep.mubr.bf16.mxu0 0
        %2128 = vmatmul.mubr.bf16.gmra.mxu0 %v1866
        %v2129 = vpop.f32.mrf.mxu0
        %v2130 = vadd.f32 %v922, %v2129
        %v2131 = vpop.f32.mrf.mxu0
        %v2132 = vpop.f32.mrf.mxu0
        %v2133 = vpop.f32.mrf.mxu0
        %2134 = vdwg.mxu0
        %v2136 = vrot.slane %v2130, 6
        %v2137 = vrot.slane %v2130, 7
        %v2138 = vrot.slane %v2130, 1
        %v2139 = vrot.slane %v2130, 2
        %v2140 = vrot.slane %v2130, 3
        %v2141 = vrot.slane %v2130, 4
        %v2142 = vrot.slane %v2130, 5
        %v2151 = vadd.f32 %v892, %v2136
        %v2152 = vadd.f32 %v893, %v2137
        %v2153 = vadd.f32 %v894, %v2130
        %v2154 = vadd.f32 %v895, %v2138
        %v2155 = vadd.f32 %v896, %v2139
        %v2156 = vadd.f32 %v897, %v2140
        %v2157 = vadd.f32 %v898, %v2141
        %v2158 = vadd.f32 %v899, %v2142
        %v2159 = vxor.u32 %v2151, 2147483648
        %v2160 = vxor.u32 %v2152, 2147483648
        %v2161 = vxor.u32 %v2153, 2147483648
        %v2162 = vxor.u32 %v2154, 2147483648
        %v2163 = vxor.u32 %v2155, 2147483648
        %v2164 = vxor.u32 %v2156, 2147483648
        %v2165 = vxor.u32 %v2157, 2147483648
        %v2166 = vxor.u32 %v2158, 2147483648
        %v2167 = vmul.f32 %v2159, 1.442695
        %v2168 = vpow.pop %v2167
        %v2169 = vmul.f32 %v2160, 1.442695
        %v2170 = vpow.pop %v2169
        %v2171 = vmul.f32 %v2161, 1.442695
        %v2172 = vpow.pop %v2171
        %v2173 = vmul.f32 %v2162, 1.442695
        %v2174 = vpow.pop %v2173
        %v2175 = vmul.f32 %v2163, 1.442695
        %v2176 = vpow.pop %v2175
        %v2177 = vmul.f32 %v2164, 1.442695
        %v2178 = vpow.pop %v2177
        %v2179 = vmul.f32 %v2165, 1.442695
        %v2180 = vpow.pop %v2179
        %v2181 = vmul.f32 %v2166, 1.442695
        %v2182 = vpow.pop %v2181
        %v2183 = vadd.f32 %v2168, 1.0
        %v2184 = vadd.f32 %v2170, 1.0
        %v2185 = vadd.f32 %v2172, 1.0
        %v2186 = vadd.f32 %v2174, 1.0
        %v2187 = vadd.f32 %v2176, 1.0
        %v2188 = vadd.f32 %v2178, 1.0
        %v2189 = vadd.f32 %v2180, 1.0
        %v2190 = vadd.f32 %v2182, 1.0
        %v2191 = vrcp.pop %v2183
        %v2192 = vmul.f32 1.0, %v2191
        %v2193 = vrcp.pop %v2184
        %v2194 = vmul.f32 1.0, %v2193
        %v2195 = vrcp.pop %v2185
        %v2196 = vmul.f32 1.0, %v2195
        %v2197 = vrcp.pop %v2186
        %v2198 = vmul.f32 1.0, %v2197
        %v2199 = vrcp.pop %v2187
        %v2200 = vmul.f32 1.0, %v2199
        %v2201 = vrcp.pop %v2188
        %v2202 = vmul.f32 1.0, %v2201
        %v2203 = vrcp.pop %v2189
        %v2204 = vmul.f32 1.0, %v2203
        %v2205 = vrcp.pop %v2190
        %v2206 = vmul.f32 1.0, %v2205
        %2207 = vrot.lane.b32.xlu0 %v2136, 64
        %v2208 = vpop.permute.xlu0 %2207
        %2209 = vrot.lane.b32.xlu0 %v2137, 64
        %v2210 = vpop.permute.xlu0 %2209
        %2211 = vrot.lane.b32.xlu0 %v2130, 64
        %v2212 = vpop.permute.xlu0 %2211
        %2213 = vrot.lane.b32.xlu0 %v2138, 64
        %v2214 = vpop.permute.xlu0 %2213
        %2215 = vrot.lane.b32.xlu0 %v2139, 64
        %v2216 = vpop.permute.xlu0 %2215
        %2217 = vrot.lane.b32.xlu0 %v2140, 64
        %v2218 = vpop.permute.xlu0 %2217
        %2219 = vrot.lane.b32.xlu0 %v2141, 64
        %v2220 = vpop.permute.xlu0 %2219
        %2221 = vrot.lane.b32.xlu0 %v2142, 64
        %v2222 = vpop.permute.xlu0 %2221
        %v2231 = vmul.f32 %v2192, %v2208
        %v2232 = vmul.f32 %v2194, %v2210
        %v2233 = vmul.f32 %v2196, %v2212
        %v2234 = vmul.f32 %v2198, %v2214
        %v2235 = vmul.f32 %v2200, %v2216
        %v2236 = vmul.f32 %v2202, %v2218
        %v2237 = vmul.f32 %v2204, %v2220
        %v2238 = vmul.f32 %v2206, %v2222
        %2247 = vrot.lane.b32.xlu0 %v2231, 64
        %v2248 = vpop.permute.xlu0 %2247
        %2249 = vrot.lane.b32.xlu0 %v2232, 64
        %v2250 = vpop.permute.xlu0 %2249
        %2251 = vrot.lane.b32.xlu0 %v2233, 64
        %v2252 = vpop.permute.xlu0 %2251
        %2253 = vrot.lane.b32.xlu0 %v2234, 64
        %v2254 = vpop.permute.xlu0 %2253
        %2255 = vrot.lane.b32.xlu0 %v2235, 64
        %v2256 = vpop.permute.xlu0 %2255
        %2257 = vrot.lane.b32.xlu0 %v2236, 64
        %v2258 = vpop.permute.xlu0 %2257
        %2259 = vrot.lane.b32.xlu0 %v2237, 64
        %v2260 = vpop.permute.xlu0 %2259
        %2261 = vrot.lane.b32.xlu0 %v2238, 64
        %v2262 = vpop.permute.xlu0 %2261
        %v2271 = vadd.f32 %v892, %v2248
        %v2272 = vadd.f32 %v893, %v2250
        %v2273 = vadd.f32 %v894, %v2252
        %v2274 = vadd.f32 %v895, %v2254
        %v2275 = vadd.f32 %v896, %v2256
        %v2276 = vadd.f32 %v897, %v2258
        %v2277 = vadd.f32 %v898, %v2260
        %v2278 = vadd.f32 %v899, %v2262
        %v2279 = vtanh.pop %v2271
        %v2280 = vtanh.pop %v2272
        %v2281 = vtanh.pop %v2273
        %v2282 = vtanh.pop %v2274
        %v2283 = vtanh.pop %v2275
        %v2284 = vtanh.pop %v2276
        %v2285 = vtanh.pop %v2277
        %v2286 = vtanh.pop %v2278
        %v2287 = vsub.f32 1.0, %v2192
        %v2288 = vsub.f32 1.0, %v2194
        %v2289 = vsub.f32 1.0, %v2196
        %v2290 = vsub.f32 1.0, %v2198
        %v2291 = vsub.f32 1.0, %v2200
        %v2292 = vsub.f32 1.0, %v2202
        %v2293 = vsub.f32 1.0, %v2204
        %v2294 = vsub.f32 1.0, %v2206
        %2303 = vrot.lane.b32.xlu0 %v2279, 96
        %v2304 = vpop.permute.xlu0 %2303
        %2305 = vrot.lane.b32.xlu0 %v2280, 96
        %v2306 = vpop.permute.xlu0 %2305
        %2307 = vrot.lane.b32.xlu0 %v2281, 96
        %v2308 = vpop.permute.xlu0 %2307
        %2309 = vrot.lane.b32.xlu0 %v2282, 96
        %v2310 = vpop.permute.xlu0 %2309
        %2311 = vrot.lane.b32.xlu0 %v2283, 96
        %v2312 = vpop.permute.xlu0 %2311
        %2313 = vrot.lane.b32.xlu0 %v2284, 96
        %v2314 = vpop.permute.xlu0 %2313
        %2315 = vrot.lane.b32.xlu0 %v2285, 96
        %v2316 = vpop.permute.xlu0 %2315
        %2317 = vrot.lane.b32.xlu0 %v2286, 96
        %v2318 = vpop.permute.xlu0 %2317
        %v2327 = vmul.f32 %v2287, %v2304
        %v2328 = vmul.f32 %v2288, %v2306
        %v2329 = vmul.f32 %v2289, %v2308
        %v2330 = vmul.f32 %v2290, %v2310
        %v2331 = vmul.f32 %v2291, %v2312
        %v2332 = vmul.f32 %v2292, %v2314
        %v2333 = vmul.f32 %v2293, %v2316
        %v2334 = vmul.f32 %v2294, %v2318
        %v2343 = vrot.slane %v1816, 7
        %v2344 = vrot.slane %v1817, 7
        %v2345 = vrot.slane %v1818, 7
        %v2346 = vrot.slane %v1819, 7
        %v2347 = vrot.slane %v1820, 7
        %v2348 = vrot.slane %v1821, 7
        %v2349 = vrot.slane %v1822, 7
        %v2350 = vrot.slane %v1823, 7
        %v2359 = vmul.f32 %v2192, %v2343
        %v2360 = vmul.f32 %v2194, %v2344
        %v2361 = vmul.f32 %v2196, %v2345
        %v2362 = vmul.f32 %v2198, %v2346
        %v2363 = vmul.f32 %v2200, %v2347
        %v2364 = vmul.f32 %v2202, %v2348
        %v2365 = vmul.f32 %v2204, %v2349
        %v2366 = vmul.f32 %v2206, %v2350
        %v2367 = vadd.f32 %v2327, %v2359
        %v2368 = vadd.f32 %v2328, %v2360
        %v2369 = vadd.f32 %v2329, %v2361
        %v2370 = vadd.f32 %v2330, %v2362
        %v2371 = vadd.f32 %v2331, %v2363
        %v2372 = vadd.f32 %v2332, %v2364
        %v2373 = vadd.f32 %v2333, %v2365
        %v2374 = vadd.f32 %v2334, %v2366
        %v2375 = vpack.c.bf16 %v2367, %v2367
        %v2376 = vpack.c.bf16 %v2368, %v2368
        %v2377 = vpack.c.bf16 %v2369, %v2369
        %v2378 = vpack.c.bf16 %v2370, %v2370
        %v2379 = vpack.c.bf16 %v2371, %v2371
        %v2380 = vpack.c.bf16 %v2372, %v2372
        %v2381 = vpack.c.bf16 %v2373, %v2373
        %v2382 = vpack.c.bf16 %v2374, %v2374
        %v2391 = vunpack.c.l.b16 %v2375
        %v2392 = vunpack.c.l.b16 %v2376
        %v2393 = vunpack.c.l.b16 %v2377
        %v2394 = vunpack.c.l.b16 %v2378
        %v2395 = vunpack.c.l.b16 %v2379
        %v2396 = vunpack.c.l.b16 %v2380
        %v2397 = vunpack.c.l.b16 %v2381
        %v2398 = vunpack.c.l.b16 %v2382
        %v2399 = vrot.slane %v2391, 2
        %v2400 = vrot.slane %v2392, 1
        %v2401 = vsel %vm1259, %v2400, %v2399
        %v2402 = vsel %vm1262, %v2393, %v2401
        %v2403 = vrot.slane %v2394, 7
        %v2404 = vsel %vm1265, %v2403, %v2402
        %v2405 = vrot.slane %v2395, 6
        %v2406 = vsel %vm1268, %v2405, %v2404
        %v2407 = vrot.slane %v2396, 5
        %v2408 = vsel %vm1271, %v2407, %v2406
        %v2409 = vrot.slane %v2397, 4
        %v2410 = vsel %vm1274, %v2409, %v2408
        %v2411 = vrot.slane %v2398, 3
        %v2412 = vsel %vm1277, %v2411, %v2410
        %v2413 = vpack.c.b16 %v2412, %v2412
        %2414 = vrot.lane.b32.xlu0 %v2413, 96
        %v2415 = vpop.permute.xlu0 %2414
        %v2417 = vsel %vm936, %v2415, 0
        %2419 = vmatprep.subr.bf16.mxu0 0
        %2420 = vmatpush1.bf16.msra.mxu0 0
        %2421 = vmatprep.subr.bf16.mxu0 0
        %2422 = vmatpush1.bf16.msra.mxu0 0
        %2423 = vmatprep.subr.bf16.mxu0 0
        %2424 = vmatpush1.bf16.msra.mxu0 0
        %2425 = vmatprep.subr.bf16.mxu0 0
        %2426 = vmatpush1.bf16.msra.mxu0 0
        %2427 = vmatprep.subr.bf16.mxu0 0
        %2428 = vmatpush1.bf16.msra.mxu0 0
        %2429 = vmatprep.subr.bf16.mxu0 0
        %2430 = vmatpush1.bf16.msra.mxu0 0
        %2431 = vmatprep.subr.bf16.mxu0 0
        %2432 = vmatpush1.bf16.msra.mxu0 %v1291
        %2433 = vmatprep.subr.bf16.mxu0 0
        %2434 = vmatpush1.bf16.msra.mxu0 %v1290
        %2435 = vmatprep.subr.bf16.mxu0 0
        %2436 = vmatpush2.bf16.msra.mxu0 0
        %2437 = vmatprep.subr.bf16.mxu0 0
        %2438 = vmatpush2.bf16.msra.mxu0 0
        %2439 = vmatprep.subr.bf16.mxu0 0
        %2440 = vmatpush2.bf16.msra.mxu0 0
        %2441 = vmatprep.subr.bf16.mxu0 0
        %2442 = vmatpush2.bf16.msra.mxu0 0
        %2443 = vmatprep.subr.bf16.mxu0 0
        %2444 = vmatpush2.bf16.msra.mxu0 0
        %2445 = vmatprep.subr.bf16.mxu0 0
        %2446 = vmatpush2.bf16.msra.mxu0 0
        %2447 = vmatprep.subr.bf16.mxu0 0
        %2448 = vmatpush2.bf16.msra.mxu0 0
        %2449 = vmatprep.subr.bf16.mxu0 0
        %2450 = vmatpush2.bf16.msra.mxu0 0
        %2451 = vmatprep.mubr.bf16.mxu0 0
        %2452 = vmatmul.mubr.bf16.gmra.mxu0 %v2417
        %v2453 = vpop.f32.mrf.mxu0
        %v2454 = vadd.f32 %v1240, %v2453
        %v2455 = vpop.f32.mrf.mxu0
        %v2456 = vpop.f32.mrf.mxu0
        %v2457 = vpop.f32.mrf.mxu0
        %2458 = vdwg.mxu0
        %v2459 = vpack.c.bf16 %v1980, %v1980
        %2461 = vrot.lane.b32.xlu0 %v2459, 96
        %v2462 = vpop.permute.xlu0 %2461
        %v2464 = vsel %vm936, %v2462, 0
        %2466 = vmatprep.subr.bf16.mxu0 0
        %2467 = vmatpush1.bf16.msra.mxu0 0
        %2468 = vmatprep.subr.bf16.mxu0 0
        %2469 = vmatpush1.bf16.msra.mxu0 0
        %2470 = vmatprep.subr.bf16.mxu0 0
        %2471 = vmatpush1.bf16.msra.mxu0 0
        %2472 = vmatprep.subr.bf16.mxu0 0
        %2473 = vmatpush1.bf16.msra.mxu0 0
        %2474 = vmatprep.subr.bf16.mxu0 0
        %2475 = vmatpush1.bf16.msra.mxu0 0
        %2476 = vmatprep.subr.bf16.mxu0 0
        %2477 = vmatpush1.bf16.msra.mxu0 0
        %2478 = vmatprep.subr.bf16.mxu0 0
        %2479 = vmatpush1.bf16.msra.mxu0 %v1353
        %2480 = vmatprep.subr.bf16.mxu0 0
        %2481 = vmatpush1.bf16.msra.mxu0 %v1352
        %2482 = vmatprep.subr.bf16.mxu0 0
        %2483 = vmatpush2.bf16.msra.mxu0 0
        %2484 = vmatprep.subr.bf16.mxu0 0
        %2485 = vmatpush2.bf16.msra.mxu0 0
        %2486 = vmatprep.subr.bf16.mxu0 0
        %2487 = vmatpush2.bf16.msra.mxu0 0
        %2488 = vmatprep.subr.bf16.mxu0 0
        %2489 = vmatpush2.bf16.msra.mxu0 0
        %2490 = vmatprep.subr.bf16.mxu0 0
        %2491 = vmatpush2.bf16.msra.mxu0 0
        %2492 = vmatprep.subr.bf16.mxu0 0
        %2493 = vmatpush2.bf16.msra.mxu0 0
        %2494 = vmatprep.subr.bf16.mxu0 0
        %2495 = vmatpush2.bf16.msra.mxu0 0
        %2496 = vmatprep.subr.bf16.mxu0 0
        %2497 = vmatpush2.bf16.msra.mxu0 0
        %2498 = vmatprep.mubr.bf16.mxu0 0
        %2499 = vmatmul.mubr.bf16.gmra.mxu0 %v2464
        %v2500 = vpop.f32.mrf.mxu0
        %v2501 = vadd.f32 %v1342, %v2500
        %v2502 = vpop.f32.mrf.mxu0
        %v2503 = vpop.f32.mrf.mxu0
        %v2504 = vpop.f32.mrf.mxu0
        %2505 = vdwg.mxu0
        %v2506 = vadd.f32 %v2454, %v2501
        %v2507 = vxor.u32 %v2506, 2147483648
        %v2508 = vmul.f32 %v2507, 1.442695
        %v2509 = vpow.pop %v2508
        %v2510 = vadd.f32 %v2509, 1.0
        %v2511 = vrcp.pop %v2510
        %v2512 = vmul.f32 1.0, %v2511
        %2514 = vrot.lane.b32.xlu0 %v2501, 64
        %v2515 = vpop.permute.xlu0 %2514
        %v2517 = vmul.f32 %v2512, %v2515
        %2519 = vrot.lane.b32.xlu0 %v2517, 64
        %v2520 = vpop.permute.xlu0 %2519
        %v2522 = vadd.f32 %v2454, %v2520
        %v2523 = vtanh.pop %v2522
        %v2524 = vsub.f32 1.0, %v2512
        %2526 = vrot.lane.b32.xlu0 %v2523, 96
        %v2527 = vpop.permute.xlu0 %2526
        %v2529 = vmul.f32 %v2524, %v2527
        %v2530 = vmul.f32 %v2512, %v1980
        %v2531 = vadd.f32 %v2529, %v2530
        %v2533 = vcombine.high %v2531, %v2531
        %v2535 = vunpack.c.l.s4 1966171168
        %v2536 = vunpack.c.0.s8 %v2535
        %v2537 = vlaneseq
        %v2538 = vshrl.u32 %v2537, 7
        %v2539 = vsub.s32 %v2536, %v2538
        %v2540 = vrot.slane %v2531, %v2539
        %v2542 = vunpack.c.l.s4 1966171168
        %v2543 = vunpack.c.0.s8 %v2542
        %v2544 = vlaneseq
        %v2545 = vshrl.u32 %v2544, 7
        %v2546 = vsub.s32 %v2543, %v2545
        %v2547 = vrot.slane %v2533, %v2546
        %v2548 = vcombine.high %v2540, %v2540
        %v2549 = vcombine.high %v2547, %v2547
        %v2551 = vunpack.c.l.s4 1966171168
        %v2552 = vunpack.c.0.s8 %v2551
        %v2553 = vlaneseq
        %v2554 = vshrl.u32 %v2553, 7
        %v2555 = vsub.s32 %v2552, %v2554
        %v2556 = vrot.slane %v2540, %v2555
        %v2558 = vunpack.c.l.s4 1966171168
        %v2559 = vunpack.c.0.s8 %v2558
        %v2560 = vlaneseq
        %v2561 = vshrl.u32 %v2560, 7
        %v2562 = vsub.s32 %v2559, %v2561
        %v2563 = vrot.slane %v2547, %v2562
        %v2565 = vunpack.c.l.s4 1966171168
        %v2566 = vunpack.c.0.s8 %v2565
        %v2567 = vlaneseq
        %v2568 = vshrl.u32 %v2567, 7
        %v2569 = vsub.s32 %v2566, %v2568
        %v2570 = vrot.slane %v2548, %v2569
        %v2572 = vunpack.c.l.s4 1966171168
        %v2573 = vunpack.c.0.s8 %v2572
        %v2574 = vlaneseq
        %v2575 = vshrl.u32 %v2574, 7
        %v2576 = vsub.s32 %v2573, %v2575
        %v2577 = vrot.slane %v2549, %v2576
        %v2578 = vcombine.high %v2556, %v2556
        %v2579 = vcombine.high %v2563, %v2563
        %v2580 = vcombine.high %v2570, %v2570
        %v2581 = vcombine.high %v2577, %v2577
        %v2582 = vlaneseq
        %v2583 = vshrl.u32 %v2582, 7
        %v2584 = vsub.s32 0, %v2583
        %v2585 = vrot.slane %v2556, %v2584
        %v2586 = vlaneseq
        %v2587 = vshrl.u32 %v2586, 7
        %v2588 = vsub.s32 0, %v2587
        %v2589 = vrot.slane %v2570, %v2588
        %v2590 = vlaneseq
        %v2591 = vshrl.u32 %v2590, 7
        %v2592 = vsub.s32 0, %v2591
        %v2593 = vrot.slane %v2578, %v2592
        %v2594 = vlaneseq
        %v2595 = vshrl.u32 %v2594, 7
        %v2596 = vsub.s32 0, %v2595
        %v2597 = vrot.slane %v2580, %v2596
        %v2598 = vlaneseq
        %v2599 = vshrl.u32 %v2598, 7
        %v2600 = vsub.s32 0, %v2599
        %v2601 = vrot.slane %v2563, %v2600
        %v2602 = vlaneseq
        %v2603 = vshrl.u32 %v2602, 7
        %v2604 = vsub.s32 0, %v2603
        %v2605 = vrot.slane %v2577, %v2604
        %v2606 = vlaneseq
        %v2607 = vshrl.u32 %v2606, 7
        %v2608 = vsub.s32 0, %v2607
        %v2609 = vrot.slane %v2579, %v2608
        %v2610 = vlaneseq
        %v2611 = vshrl.u32 %v2610, 7
        %v2612 = vsub.s32 0, %v2611
        %v2613 = vrot.slane %v2581, %v2612
        %2614 = vrot.lane.b32.xlu0 %v2585, 96
        %v2615 = vpop.permute.xlu0 %2614
        %2616 = vrot.lane.b32.xlu0 %v2589, 96
        %v2617 = vpop.permute.xlu0 %2616
        %2618 = vrot.lane.b32.xlu0 %v2593, 96
        %v2619 = vpop.permute.xlu0 %2618
        %2620 = vrot.lane.b32.xlu0 %v2597, 96
        %v2621 = vpop.permute.xlu0 %2620
        %2622 = vrot.lane.b32.xlu0 %v2601, 96
        %v2623 = vpop.permute.xlu0 %2622
        %2624 = vrot.lane.b32.xlu0 %v2605, 96
        %v2625 = vpop.permute.xlu0 %2624
        %2626 = vrot.lane.b32.xlu0 %v2609, 96
        %v2627 = vpop.permute.xlu0 %2626
        %2628 = vrot.lane.b32.xlu0 %v2613, 96
        %v2629 = vpop.permute.xlu0 %2628
        %2638 = vst.msk [vmem:[#allocation4 + $0x2] sm:$0x1] %vm1535, %v2615
        %2639 = vst.msk [vmem:[#allocation4 + $0xa] sm:$0x1] %vm1535, %v2617
        %2640 = vst.msk [vmem:[#allocation4 + $0x12] sm:$0x1] %vm1535, %v2619
        %2641 = vst.msk [vmem:[#allocation4 + $0x1a] sm:$0x1] %vm1535, %v2621
        %2642 = vst.msk [vmem:[#allocation4 + $0x22] sm:$0x1] %vm1535, %v2623
        %2643 = vst.msk [vmem:[#allocation4 + $0x2a] sm:$0x1] %vm1535, %v2625
        %2644 = vst.msk [vmem:[#allocation4 + $0x32] sm:$0x1] %vm1535, %v2627
        %2645 = vst.msk [vmem:[#allocation4 + $0x3a] sm:$0x1] %vm1535, %v2629
        %2646 = vmatprep.subr.bf16.mxu0 0
        %2647 = vmatpush1.bf16.msra.mxu0 0
        %2648 = vmatprep.subr.bf16.mxu0 0
        %2649 = vmatpush1.bf16.msra.mxu0 0
        %2650 = vmatprep.subr.bf16.mxu0 0
        %2651 = vmatpush1.bf16.msra.mxu0 0
        %2652 = vmatprep.subr.bf16.mxu0 0
        %2653 = vmatpush1.bf16.msra.mxu0 0
        %2654 = vmatprep.subr.bf16.mxu0 0
        %2655 = vmatpush1.bf16.msra.mxu0 0
        %2656 = vmatprep.subr.bf16.mxu0 0
        %2657 = vmatpush1.bf16.msra.mxu0 0
        %2658 = vmatprep.subr.bf16.mxu0 0
        %2659 = vmatpush1.bf16.msra.mxu0 %v933
        %2660 = vmatprep.subr.bf16.mxu0 0
        %2661 = vmatpush1.bf16.msra.mxu0 %v932
        %2662 = vmatprep.subr.bf16.mxu0 0
        %2663 = vmatpush2.bf16.msra.mxu0 0
        %2664 = vmatprep.subr.bf16.mxu0 0
        %2665 = vmatpush2.bf16.msra.mxu0 0
        %2666 = vmatprep.subr.bf16.mxu0 0
        %2667 = vmatpush2.bf16.msra.mxu0 0
        %2668 = vmatprep.subr.bf16.mxu0 0
        %2669 = vmatpush2.bf16.msra.mxu0 0
        %2670 = vmatprep.subr.bf16.mxu0 0
        %2671 = vmatpush2.bf16.msra.mxu0 0
        %2672 = vmatprep.subr.bf16.mxu0 0
        %2673 = vmatpush2.bf16.msra.mxu0 0
        %2674 = vmatprep.subr.bf16.mxu0 0
        %2675 = vmatpush2.bf16.msra.mxu0 0
        %2676 = vmatprep.subr.bf16.mxu0 0
        %2677 = vmatpush2.bf16.msra.mxu0 0
        %2678 = vmatprep.mubr.bf16.mxu0 0
        %2679 = vmatmul.mubr.bf16.gmra.mxu0 %v2417
        %v2680 = vpop.f32.mrf.mxu0
        %v2681 = vadd.f32 %v922, %v2680
        %v2682 = vpop.f32.mrf.mxu0
        %v2683 = vpop.f32.mrf.mxu0
        %v2684 = vpop.f32.mrf.mxu0
        %2685 = vdwg.mxu0
        %v2687 = vrot.slane %v2681, 5
        %v2688 = vrot.slane %v2681, 6
        %v2689 = vrot.slane %v2681, 7
        %v2690 = vrot.slane %v2681, 1
        %v2691 = vrot.slane %v2681, 2
        %v2692 = vrot.slane %v2681, 3
        %v2693 = vrot.slane %v2681, 4
        %v2702 = vadd.f32 %v892, %v2687
        %v2703 = vadd.f32 %v893, %v2688
        %v2704 = vadd.f32 %v894, %v2689
        %v2705 = vadd.f32 %v895, %v2681
        %v2706 = vadd.f32 %v896, %v2690
        %v2707 = vadd.f32 %v897, %v2691
        %v2708 = vadd.f32 %v898, %v2692
        %v2709 = vadd.f32 %v899, %v2693
        %v2710 = vxor.u32 %v2702, 2147483648
        %v2711 = vxor.u32 %v2703, 2147483648
        %v2712 = vxor.u32 %v2704, 2147483648
        %v2713 = vxor.u32 %v2705, 2147483648
        %v2714 = vxor.u32 %v2706, 2147483648
        %v2715 = vxor.u32 %v2707, 2147483648
        %v2716 = vxor.u32 %v2708, 2147483648
        %v2717 = vxor.u32 %v2709, 2147483648
        %v2718 = vmul.f32 %v2710, 1.442695
        %v2719 = vpow.pop %v2718
        %v2720 = vmul.f32 %v2711, 1.442695
        %v2721 = vpow.pop %v2720
        %v2722 = vmul.f32 %v2712, 1.442695
        %v2723 = vpow.pop %v2722
        %v2724 = vmul.f32 %v2713, 1.442695
        %v2725 = vpow.pop %v2724
        %v2726 = vmul.f32 %v2714, 1.442695
        %v2727 = vpow.pop %v2726
        %v2728 = vmul.f32 %v2715, 1.442695
        %v2729 = vpow.pop %v2728
        %v2730 = vmul.f32 %v2716, 1.442695
        %v2731 = vpow.pop %v2730
        %v2732 = vmul.f32 %v2717, 1.442695
        %v2733 = vpow.pop %v2732
        %v2734 = vadd.f32 %v2719, 1.0
        %v2735 = vadd.f32 %v2721, 1.0
        %v2736 = vadd.f32 %v2723, 1.0
        %v2737 = vadd.f32 %v2725, 1.0
        %v2738 = vadd.f32 %v2727, 1.0
        %v2739 = vadd.f32 %v2729, 1.0
        %v2740 = vadd.f32 %v2731, 1.0
        %v2741 = vadd.f32 %v2733, 1.0
        %v2742 = vrcp.pop %v2734
        %v2743 = vmul.f32 1.0, %v2742
        %v2744 = vrcp.pop %v2735
        %v2745 = vmul.f32 1.0, %v2744
        %v2746 = vrcp.pop %v2736
        %v2747 = vmul.f32 1.0, %v2746
        %v2748 = vrcp.pop %v2737
        %v2749 = vmul.f32 1.0, %v2748
        %v2750 = vrcp.pop %v2738
        %v2751 = vmul.f32 1.0, %v2750
        %v2752 = vrcp.pop %v2739
        %v2753 = vmul.f32 1.0, %v2752
        %v2754 = vrcp.pop %v2740
        %v2755 = vmul.f32 1.0, %v2754
        %v2756 = vrcp.pop %v2741
        %v2757 = vmul.f32 1.0, %v2756
        %2758 = vrot.lane.b32.xlu0 %v2687, 64
        %v2759 = vpop.permute.xlu0 %2758
        %2760 = vrot.lane.b32.xlu0 %v2688, 64
        %v2761 = vpop.permute.xlu0 %2760
        %2762 = vrot.lane.b32.xlu0 %v2689, 64
        %v2763 = vpop.permute.xlu0 %2762
        %2764 = vrot.lane.b32.xlu0 %v2681, 64
        %v2765 = vpop.permute.xlu0 %2764
        %2766 = vrot.lane.b32.xlu0 %v2690, 64
        %v2767 = vpop.permute.xlu0 %2766
        %2768 = vrot.lane.b32.xlu0 %v2691, 64
        %v2769 = vpop.permute.xlu0 %2768
        %2770 = vrot.lane.b32.xlu0 %v2692, 64
        %v2771 = vpop.permute.xlu0 %2770
        %2772 = vrot.lane.b32.xlu0 %v2693, 64
        %v2773 = vpop.permute.xlu0 %2772
        %v2782 = vmul.f32 %v2743, %v2759
        %v2783 = vmul.f32 %v2745, %v2761
        %v2784 = vmul.f32 %v2747, %v2763
        %v2785 = vmul.f32 %v2749, %v2765
        %v2786 = vmul.f32 %v2751, %v2767
        %v2787 = vmul.f32 %v2753, %v2769
        %v2788 = vmul.f32 %v2755, %v2771
        %v2789 = vmul.f32 %v2757, %v2773
        %2798 = vrot.lane.b32.xlu0 %v2782, 64
        %v2799 = vpop.permute.xlu0 %2798
        %2800 = vrot.lane.b32.xlu0 %v2783, 64
        %v2801 = vpop.permute.xlu0 %2800
        %2802 = vrot.lane.b32.xlu0 %v2784, 64
        %v2803 = vpop.permute.xlu0 %2802
        %2804 = vrot.lane.b32.xlu0 %v2785, 64
        %v2805 = vpop.permute.xlu0 %2804
        %2806 = vrot.lane.b32.xlu0 %v2786, 64
        %v2807 = vpop.permute.xlu0 %2806
        %2808 = vrot.lane.b32.xlu0 %v2787, 64
        %v2809 = vpop.permute.xlu0 %2808
        %2810 = vrot.lane.b32.xlu0 %v2788, 64
        %v2811 = vpop.permute.xlu0 %2810
        %2812 = vrot.lane.b32.xlu0 %v2789, 64
        %v2813 = vpop.permute.xlu0 %2812
        %v2822 = vadd.f32 %v892, %v2799
        %v2823 = vadd.f32 %v893, %v2801
        %v2824 = vadd.f32 %v894, %v2803
        %v2825 = vadd.f32 %v895, %v2805
        %v2826 = vadd.f32 %v896, %v2807
        %v2827 = vadd.f32 %v897, %v2809
        %v2828 = vadd.f32 %v898, %v2811
        %v2829 = vadd.f32 %v899, %v2813
        %v2830 = vtanh.pop %v2822
        %v2831 = vtanh.pop %v2823
        %v2832 = vtanh.pop %v2824
        %v2833 = vtanh.pop %v2825
        %v2834 = vtanh.pop %v2826
        %v2835 = vtanh.pop %v2827
        %v2836 = vtanh.pop %v2828
        %v2837 = vtanh.pop %v2829
        %v2838 = vsub.f32 1.0, %v2743
        %v2839 = vsub.f32 1.0, %v2745
        %v2840 = vsub.f32 1.0, %v2747
        %v2841 = vsub.f32 1.0, %v2749
        %v2842 = vsub.f32 1.0, %v2751
        %v2843 = vsub.f32 1.0, %v2753
        %v2844 = vsub.f32 1.0, %v2755
        %v2845 = vsub.f32 1.0, %v2757
        %2854 = vrot.lane.b32.xlu0 %v2830, 96
        %v2855 = vpop.permute.xlu0 %2854
        %2856 = vrot.lane.b32.xlu0 %v2831, 96
        %v2857 = vpop.permute.xlu0 %2856
        %2858 = vrot.lane.b32.xlu0 %v2832, 96
        %v2859 = vpop.permute.xlu0 %2858
        %2860 = vrot.lane.b32.xlu0 %v2833, 96
        %v2861 = vpop.permute.xlu0 %2860
        %2862 = vrot.lane.b32.xlu0 %v2834, 96
        %v2863 = vpop.permute.xlu0 %2862
        %2864 = vrot.lane.b32.xlu0 %v2835, 96
        %v2865 = vpop.permute.xlu0 %2864
        %2866 = vrot.lane.b32.xlu0 %v2836, 96
        %v2867 = vpop.permute.xlu0 %2866
        %2868 = vrot.lane.b32.xlu0 %v2837, 96
        %v2869 = vpop.permute.xlu0 %2868
        %v2878 = vmul.f32 %v2838, %v2855
        %v2879 = vmul.f32 %v2839, %v2857
        %v2880 = vmul.f32 %v2840, %v2859
        %v2881 = vmul.f32 %v2841, %v2861
        %v2882 = vmul.f32 %v2842, %v2863
        %v2883 = vmul.f32 %v2843, %v2865
        %v2884 = vmul.f32 %v2844, %v2867
        %v2885 = vmul.f32 %v2845, %v2869
        %v2894 = vrot.slane %v2367, 7
        %v2895 = vrot.slane %v2368, 7
        %v2896 = vrot.slane %v2369, 7
        %v2897 = vrot.slane %v2370, 7
        %v2898 = vrot.slane %v2371, 7
        %v2899 = vrot.slane %v2372, 7
        %v2900 = vrot.slane %v2373, 7
        %v2901 = vrot.slane %v2374, 7
        %v2910 = vmul.f32 %v2743, %v2894
        %v2911 = vmul.f32 %v2745, %v2895
        %v2912 = vmul.f32 %v2747, %v2896
        %v2913 = vmul.f32 %v2749, %v2897
        %v2914 = vmul.f32 %v2751, %v2898
        %v2915 = vmul.f32 %v2753, %v2899
        %v2916 = vmul.f32 %v2755, %v2900
        %v2917 = vmul.f32 %v2757, %v2901
        %v2918 = vadd.f32 %v2878, %v2910
        %v2919 = vadd.f32 %v2879, %v2911
        %v2920 = vadd.f32 %v2880, %v2912
        %v2921 = vadd.f32 %v2881, %v2913
        %v2922 = vadd.f32 %v2882, %v2914
        %v2923 = vadd.f32 %v2883, %v2915
        %v2924 = vadd.f32 %v2884, %v2916
        %v2925 = vadd.f32 %v2885, %v2917
        %v2926 = vpack.c.bf16 %v2918, %v2918
        %v2927 = vpack.c.bf16 %v2919, %v2919
        %v2928 = vpack.c.bf16 %v2920, %v2920
        %v2929 = vpack.c.bf16 %v2921, %v2921
        %v2930 = vpack.c.bf16 %v2922, %v2922
        %v2931 = vpack.c.bf16 %v2923, %v2923
        %v2932 = vpack.c.bf16 %v2924, %v2924
        %v2933 = vpack.c.bf16 %v2925, %v2925
        %v2942 = vunpack.c.l.b16 %v2926
        %v2943 = vunpack.c.l.b16 %v2927
        %v2944 = vunpack.c.l.b16 %v2928
        %v2945 = vunpack.c.l.b16 %v2929
        %v2946 = vunpack.c.l.b16 %v2930
        %v2947 = vunpack.c.l.b16 %v2931
        %v2948 = vunpack.c.l.b16 %v2932
        %v2949 = vunpack.c.l.b16 %v2933
        %v2950 = vrot.slane %v2942, 3
        %v2951 = vrot.slane %v2943, 2
        %v2952 = vsel %vm1259, %v2951, %v2950
        %v2953 = vrot.slane %v2944, 1
        %v2954 = vsel %vm1262, %v2953, %v2952
        %v2955 = vsel %vm1265, %v2945, %v2954
        %v2956 = vrot.slane %v2946, 7
        %v2957 = vsel %vm1268, %v2956, %v2955
        %v2958 = vrot.slane %v2947, 6
        %v2959 = vsel %vm1271, %v2958, %v2957
        %v2960 = vrot.slane %v2948, 5
        %v2961 = vsel %vm1274, %v2960, %v2959
        %v2962 = vrot.slane %v2949, 4
        %v2963 = vsel %vm1277, %v2962, %v2961
        %v2964 = vpack.c.b16 %v2963, %v2963
        %2965 = vrot.lane.b32.xlu0 %v2964, 96
        %v2966 = vpop.permute.xlu0 %2965
        %v2968 = vsel %vm936, %v2966, 0
        %2970 = vmatprep.subr.bf16.mxu0 0
        %2971 = vmatpush1.bf16.msra.mxu0 0
        %2972 = vmatprep.subr.bf16.mxu0 0
        %2973 = vmatpush1.bf16.msra.mxu0 0
        %2974 = vmatprep.subr.bf16.mxu0 0
        %2975 = vmatpush1.bf16.msra.mxu0 0
        %2976 = vmatprep.subr.bf16.mxu0 0
        %2977 = vmatpush1.bf16.msra.mxu0 0
        %2978 = vmatprep.subr.bf16.mxu0 0
        %2979 = vmatpush1.bf16.msra.mxu0 0
        %2980 = vmatprep.subr.bf16.mxu0 0
        %2981 = vmatpush1.bf16.msra.mxu0 0
        %2982 = vmatprep.subr.bf16.mxu0 0
        %2983 = vmatpush1.bf16.msra.mxu0 %v1291
        %2984 = vmatprep.subr.bf16.mxu0 0
        %2985 = vmatpush1.bf16.msra.mxu0 %v1290
        %2986 = vmatprep.subr.bf16.mxu0 0
        %2987 = vmatpush2.bf16.msra.mxu0 0
        %2988 = vmatprep.subr.bf16.mxu0 0
        %2989 = vmatpush2.bf16.msra.mxu0 0
        %2990 = vmatprep.subr.bf16.mxu0 0
        %2991 = vmatpush2.bf16.msra.mxu0 0
        %2992 = vmatprep.subr.bf16.mxu0 0
        %2993 = vmatpush2.bf16.msra.mxu0 0
        %2994 = vmatprep.subr.bf16.mxu0 0
        %2995 = vmatpush2.bf16.msra.mxu0 0
        %2996 = vmatprep.subr.bf16.mxu0 0
        %2997 = vmatpush2.bf16.msra.mxu0 0
        %2998 = vmatprep.subr.bf16.mxu0 0
        %2999 = vmatpush2.bf16.msra.mxu0 0
        %3000 = vmatprep.subr.bf16.mxu0 0
        %3001 = vmatpush2.bf16.msra.mxu0 0
        %3002 = vmatprep.mubr.bf16.mxu0 0
        %3003 = vmatmul.mubr.bf16.gmra.mxu0 %v2968
        %v3004 = vpop.f32.mrf.mxu0
        %v3005 = vadd.f32 %v1240, %v3004
        %v3006 = vpop.f32.mrf.mxu0
        %v3007 = vpop.f32.mrf.mxu0
        %v3008 = vpop.f32.mrf.mxu0
        %3009 = vdwg.mxu0
        %v3010 = vpack.c.bf16 %v2531, %v2531
        %3012 = vrot.lane.b32.xlu0 %v3010, 96
        %v3013 = vpop.permute.xlu0 %3012
        %v3015 = vsel %vm936, %v3013, 0
        %3017 = vmatprep.subr.bf16.mxu0 0
        %3018 = vmatpush1.bf16.msra.mxu0 0
        %3019 = vmatprep.subr.bf16.mxu0 0
        %3020 = vmatpush1.bf16.msra.mxu0 0
        %3021 = vmatprep.subr.bf16.mxu0 0
        %3022 = vmatpush1.bf16.msra.mxu0 0
        %3023 = vmatprep.subr.bf16.mxu0 0
        %3024 = vmatpush1.bf16.msra.mxu0 0
        %3025 = vmatprep.subr.bf16.mxu0 0
        %3026 = vmatpush1.bf16.msra.mxu0 0
        %3027 = vmatprep.subr.bf16.mxu0 0
        %3028 = vmatpush1.bf16.msra.mxu0 0
        %3029 = vmatprep.subr.bf16.mxu0 0
        %3030 = vmatpush1.bf16.msra.mxu0 %v1353
        %3031 = vmatprep.subr.bf16.mxu0 0
        %3032 = vmatpush1.bf16.msra.mxu0 %v1352
        %3033 = vmatprep.subr.bf16.mxu0 0
        %3034 = vmatpush2.bf16.msra.mxu0 0
        %3035 = vmatprep.subr.bf16.mxu0 0
        %3036 = vmatpush2.bf16.msra.mxu0 0
        %3037 = vmatprep.subr.bf16.mxu0 0
        %3038 = vmatpush2.bf16.msra.mxu0 0
        %3039 = vmatprep.subr.bf16.mxu0 0
        %3040 = vmatpush2.bf16.msra.mxu0 0
        %3041 = vmatprep.subr.bf16.mxu0 0
        %3042 = vmatpush2.bf16.msra.mxu0 0
        %3043 = vmatprep.subr.bf16.mxu0 0
        %3044 = vmatpush2.bf16.msra.mxu0 0
        %3045 = vmatprep.subr.bf16.mxu0 0
        %3046 = vmatpush2.bf16.msra.mxu0 0
        %3047 = vmatprep.subr.bf16.mxu0 0
        %3048 = vmatpush2.bf16.msra.mxu0 0
        %3049 = vmatprep.mubr.bf16.mxu0 0
        %3050 = vmatmul.mubr.bf16.gmra.mxu0 %v3015
        %v3051 = vpop.f32.mrf.mxu0
        %v3052 = vadd.f32 %v1342, %v3051
        %v3053 = vpop.f32.mrf.mxu0
        %v3054 = vpop.f32.mrf.mxu0
        %v3055 = vpop.f32.mrf.mxu0
        %3056 = vdwg.mxu0
        %v3057 = vadd.f32 %v3005, %v3052
        %v3058 = vxor.u32 %v3057, 2147483648
        %v3059 = vmul.f32 %v3058, 1.442695
        %v3060 = vpow.pop %v3059
        %v3061 = vadd.f32 %v3060, 1.0
        %v3062 = vrcp.pop %v3061
        %v3063 = vmul.f32 1.0, %v3062
        %3065 = vrot.lane.b32.xlu0 %v3052, 64
        %v3066 = vpop.permute.xlu0 %3065
        %v3068 = vmul.f32 %v3063, %v3066
        %3070 = vrot.lane.b32.xlu0 %v3068, 64
        %v3071 = vpop.permute.xlu0 %3070
        %v3073 = vadd.f32 %v3005, %v3071
        %v3074 = vtanh.pop %v3073
        %v3075 = vsub.f32 1.0, %v3063
        %3077 = vrot.lane.b32.xlu0 %v3074, 96
        %v3078 = vpop.permute.xlu0 %3077
        %v3080 = vmul.f32 %v3075, %v3078
        %v3081 = vmul.f32 %v3063, %v2531
        %v3082 = vadd.f32 %v3080, %v3081
        %v3084 = vcombine.high %v3082, %v3082
        %v3086 = vunpack.c.l.s4 1966171168
        %v3087 = vunpack.c.0.s8 %v3086
        %v3088 = vlaneseq
        %v3089 = vshrl.u32 %v3088, 7
        %v3090 = vsub.s32 %v3087, %v3089
        %v3091 = vrot.slane %v3082, %v3090
        %v3093 = vunpack.c.l.s4 1966171168
        %v3094 = vunpack.c.0.s8 %v3093
        %v3095 = vlaneseq
        %v3096 = vshrl.u32 %v3095, 7
        %v3097 = vsub.s32 %v3094, %v3096
        %v3098 = vrot.slane %v3084, %v3097
        %v3099 = vcombine.high %v3091, %v3091
        %v3100 = vcombine.high %v3098, %v3098
        %v3102 = vunpack.c.l.s4 1966171168
        %v3103 = vunpack.c.0.s8 %v3102
        %v3104 = vlaneseq
        %v3105 = vshrl.u32 %v3104, 7
        %v3106 = vsub.s32 %v3103, %v3105
        %v3107 = vrot.slane %v3091, %v3106
        %v3109 = vunpack.c.l.s4 1966171168
        %v3110 = vunpack.c.0.s8 %v3109
        %v3111 = vlaneseq
        %v3112 = vshrl.u32 %v3111, 7
        %v3113 = vsub.s32 %v3110, %v3112
        %v3114 = vrot.slane %v3098, %v3113
        %v3116 = vunpack.c.l.s4 1966171168
        %v3117 = vunpack.c.0.s8 %v3116
        %v3118 = vlaneseq
        %v3119 = vshrl.u32 %v3118, 7
        %v3120 = vsub.s32 %v3117, %v3119
        %v3121 = vrot.slane %v3099, %v3120
        %v3123 = vunpack.c.l.s4 1966171168
        %v3124 = vunpack.c.0.s8 %v3123
        %v3125 = vlaneseq
        %v3126 = vshrl.u32 %v3125, 7
        %v3127 = vsub.s32 %v3124, %v3126
        %v3128 = vrot.slane %v3100, %v3127
        %v3129 = vcombine.high %v3107, %v3107
        %v3130 = vcombine.high %v3114, %v3114
        %v3131 = vcombine.high %v3121, %v3121
        %v3132 = vcombine.high %v3128, %v3128
        %v3133 = vlaneseq
        %v3134 = vshrl.u32 %v3133, 7
        %v3135 = vsub.s32 0, %v3134
        %v3136 = vrot.slane %v3107, %v3135
        %v3137 = vlaneseq
        %v3138 = vshrl.u32 %v3137, 7
        %v3139 = vsub.s32 0, %v3138
        %v3140 = vrot.slane %v3121, %v3139
        %v3141 = vlaneseq
        %v3142 = vshrl.u32 %v3141, 7
        %v3143 = vsub.s32 0, %v3142
        %v3144 = vrot.slane %v3129, %v3143
        %v3145 = vlaneseq
        %v3146 = vshrl.u32 %v3145, 7
        %v3147 = vsub.s32 0, %v3146
        %v3148 = vrot.slane %v3131, %v3147
        %v3149 = vlaneseq
        %v3150 = vshrl.u32 %v3149, 7
        %v3151 = vsub.s32 0, %v3150
        %v3152 = vrot.slane %v3114, %v3151
        %v3153 = vlaneseq
        %v3154 = vshrl.u32 %v3153, 7
        %v3155 = vsub.s32 0, %v3154
        %v3156 = vrot.slane %v3128, %v3155
        %v3157 = vlaneseq
        %v3158 = vshrl.u32 %v3157, 7
        %v3159 = vsub.s32 0, %v3158
        %v3160 = vrot.slane %v3130, %v3159
        %v3161 = vlaneseq
        %v3162 = vshrl.u32 %v3161, 7
        %v3163 = vsub.s32 0, %v3162
        %v3164 = vrot.slane %v3132, %v3163
        %3165 = vrot.lane.b32.xlu0 %v3136, 96
        %v3166 = vpop.permute.xlu0 %3165
        %3167 = vrot.lane.b32.xlu0 %v3140, 96
        %v3168 = vpop.permute.xlu0 %3167
        %3169 = vrot.lane.b32.xlu0 %v3144, 96
        %v3170 = vpop.permute.xlu0 %3169
        %3171 = vrot.lane.b32.xlu0 %v3148, 96
        %v3172 = vpop.permute.xlu0 %3171
        %3173 = vrot.lane.b32.xlu0 %v3152, 96
        %v3174 = vpop.permute.xlu0 %3173
        %3175 = vrot.lane.b32.xlu0 %v3156, 96
        %v3176 = vpop.permute.xlu0 %3175
        %3177 = vrot.lane.b32.xlu0 %v3160, 96
        %v3178 = vpop.permute.xlu0 %3177
        %3179 = vrot.lane.b32.xlu0 %v3164, 96
        %v3180 = vpop.permute.xlu0 %3179
        %3189 = vst.msk [vmem:[#allocation4 + $0x3] sm:$0x1] %vm1535, %v3166
        %3190 = vst.msk [vmem:[#allocation4 + $0xb] sm:$0x1] %vm1535, %v3168
        %3191 = vst.msk [vmem:[#allocation4 + $0x13] sm:$0x1] %vm1535, %v3170
        %3192 = vst.msk [vmem:[#allocation4 + $0x1b] sm:$0x1] %vm1535, %v3172
        %3193 = vst.msk [vmem:[#allocation4 + $0x23] sm:$0x1] %vm1535, %v3174
        %3194 = vst.msk [vmem:[#allocation4 + $0x2b] sm:$0x1] %vm1535, %v3176
        %3195 = vst.msk [vmem:[#allocation4 + $0x33] sm:$0x1] %vm1535, %v3178
        %3196 = vst.msk [vmem:[#allocation4 + $0x3b] sm:$0x1] %vm1535, %v3180
        %3197 = vmatprep.subr.bf16.mxu0 0
        %3198 = vmatpush1.bf16.msra.mxu0 0
        %3199 = vmatprep.subr.bf16.mxu0 0
        %3200 = vmatpush1.bf16.msra.mxu0 0
        %3201 = vmatprep.subr.bf16.mxu0 0
        %3202 = vmatpush1.bf16.msra.mxu0 0
        %3203 = vmatprep.subr.bf16.mxu0 0
        %3204 = vmatpush1.bf16.msra.mxu0 0
        %3205 = vmatprep.subr.bf16.mxu0 0
        %3206 = vmatpush1.bf16.msra.mxu0 0
        %3207 = vmatprep.subr.bf16.mxu0 0
        %3208 = vmatpush1.bf16.msra.mxu0 0
        %3209 = vmatprep.subr.bf16.mxu0 0
        %3210 = vmatpush1.bf16.msra.mxu0 %v933
        %3211 = vmatprep.subr.bf16.mxu0 0
        %3212 = vmatpush1.bf16.msra.mxu0 %v932
        %3213 = vmatprep.subr.bf16.mxu0 0
        %3214 = vmatpush2.bf16.msra.mxu0 0
        %3215 = vmatprep.subr.bf16.mxu0 0
        %3216 = vmatpush2.bf16.msra.mxu0 0
        %3217 = vmatprep.subr.bf16.mxu0 0
        %3218 = vmatpush2.bf16.msra.mxu0 0
        %3219 = vmatprep.subr.bf16.mxu0 0
        %3220 = vmatpush2.bf16.msra.mxu0 0
        %3221 = vmatprep.subr.bf16.mxu0 0
        %3222 = vmatpush2.bf16.msra.mxu0 0
        %3223 = vmatprep.subr.bf16.mxu0 0
        %3224 = vmatpush2.bf16.msra.mxu0 0
        %3225 = vmatprep.subr.bf16.mxu0 0
        %3226 = vmatpush2.bf16.msra.mxu0 0
        %3227 = vmatprep.subr.bf16.mxu0 0
        %3228 = vmatpush2.bf16.msra.mxu0 0
        %3229 = vmatprep.mubr.bf16.mxu0 0
        %3230 = vmatmul.mubr.bf16.gmra.mxu0 %v2968
        %v3231 = vpop.f32.mrf.mxu0
        %v3232 = vadd.f32 %v922, %v3231
        %v3233 = vpop.f32.mrf.mxu0
        %v3234 = vpop.f32.mrf.mxu0
        %v3235 = vpop.f32.mrf.mxu0
        %3236 = vdwg.mxu0
        %v3238 = vrot.slane %v3232, 4
        %v3239 = vrot.slane %v3232, 5
        %v3240 = vrot.slane %v3232, 6
        %v3241 = vrot.slane %v3232, 7
        %v3242 = vrot.slane %v3232, 1
        %v3243 = vrot.slane %v3232, 2
        %v3244 = vrot.slane %v3232, 3
        %v3253 = vadd.f32 %v892, %v3238
        %v3254 = vadd.f32 %v893, %v3239
        %v3255 = vadd.f32 %v894, %v3240
        %v3256 = vadd.f32 %v895, %v3241
        %v3257 = vadd.f32 %v896, %v3232
        %v3258 = vadd.f32 %v897, %v3242
        %v3259 = vadd.f32 %v898, %v3243
        %v3260 = vadd.f32 %v899, %v3244
        %v3261 = vxor.u32 %v3253, 2147483648
        %v3262 = vxor.u32 %v3254, 2147483648
        %v3263 = vxor.u32 %v3255, 2147483648
        %v3264 = vxor.u32 %v3256, 2147483648
        %v3265 = vxor.u32 %v3257, 2147483648
        %v3266 = vxor.u32 %v3258, 2147483648
        %v3267 = vxor.u32 %v3259, 2147483648
        %v3268 = vxor.u32 %v3260, 2147483648
        %v3269 = vmul.f32 %v3261, 1.442695
        %v3270 = vpow.pop %v3269
        %v3271 = vmul.f32 %v3262, 1.442695
        %v3272 = vpow.pop %v3271
        %v3273 = vmul.f32 %v3263, 1.442695
        %v3274 = vpow.pop %v3273
        %v3275 = vmul.f32 %v3264, 1.442695
        %v3276 = vpow.pop %v3275
        %v3277 = vmul.f32 %v3265, 1.442695
        %v3278 = vpow.pop %v3277
        %v3279 = vmul.f32 %v3266, 1.442695
        %v3280 = vpow.pop %v3279
        %v3281 = vmul.f32 %v3267, 1.442695
        %v3282 = vpow.pop %v3281
        %v3283 = vmul.f32 %v3268, 1.442695
        %v3284 = vpow.pop %v3283
        %v3285 = vadd.f32 %v3270, 1.0
        %v3286 = vadd.f32 %v3272, 1.0
        %v3287 = vadd.f32 %v3274, 1.0
        %v3288 = vadd.f32 %v3276, 1.0
        %v3289 = vadd.f32 %v3278, 1.0
        %v3290 = vadd.f32 %v3280, 1.0
        %v3291 = vadd.f32 %v3282, 1.0
        %v3292 = vadd.f32 %v3284, 1.0
        %v3293 = vrcp.pop %v3285
        %v3294 = vmul.f32 1.0, %v3293
        %v3295 = vrcp.pop %v3286
        %v3296 = vmul.f32 1.0, %v3295
        %v3297 = vrcp.pop %v3287
        %v3298 = vmul.f32 1.0, %v3297
        %v3299 = vrcp.pop %v3288
        %v3300 = vmul.f32 1.0, %v3299
        %v3301 = vrcp.pop %v3289
        %v3302 = vmul.f32 1.0, %v3301
        %v3303 = vrcp.pop %v3290
        %v3304 = vmul.f32 1.0, %v3303
        %v3305 = vrcp.pop %v3291
        %v3306 = vmul.f32 1.0, %v3305
        %v3307 = vrcp.pop %v3292
        %v3308 = vmul.f32 1.0, %v3307
        %3309 = vrot.lane.b32.xlu0 %v3238, 64
        %v3310 = vpop.permute.xlu0 %3309
        %3311 = vrot.lane.b32.xlu0 %v3239, 64
        %v3312 = vpop.permute.xlu0 %3311
        %3313 = vrot.lane.b32.xlu0 %v3240, 64
        %v3314 = vpop.permute.xlu0 %3313
        %3315 = vrot.lane.b32.xlu0 %v3241, 64
        %v3316 = vpop.permute.xlu0 %3315
        %3317 = vrot.lane.b32.xlu0 %v3232, 64
        %v3318 = vpop.permute.xlu0 %3317
        %3319 = vrot.lane.b32.xlu0 %v3242, 64
        %v3320 = vpop.permute.xlu0 %3319
        %3321 = vrot.lane.b32.xlu0 %v3243, 64
        %v3322 = vpop.permute.xlu0 %3321
        %3323 = vrot.lane.b32.xlu0 %v3244, 64
        %v3324 = vpop.permute.xlu0 %3323
        %v3333 = vmul.f32 %v3294, %v3310
        %v3334 = vmul.f32 %v3296, %v3312
        %v3335 = vmul.f32 %v3298, %v3314
        %v3336 = vmul.f32 %v3300, %v3316
        %v3337 = vmul.f32 %v3302, %v3318
        %v3338 = vmul.f32 %v3304, %v3320
        %v3339 = vmul.f32 %v3306, %v3322
        %v3340 = vmul.f32 %v3308, %v3324
        %3349 = vrot.lane.b32.xlu0 %v3333, 64
        %v3350 = vpop.permute.xlu0 %3349
        %3351 = vrot.lane.b32.xlu0 %v3334, 64
        %v3352 = vpop.permute.xlu0 %3351
        %3353 = vrot.lane.b32.xlu0 %v3335, 64
        %v3354 = vpop.permute.xlu0 %3353
        %3355 = vrot.lane.b32.xlu0 %v3336, 64
        %v3356 = vpop.permute.xlu0 %3355
        %3357 = vrot.lane.b32.xlu0 %v3337, 64
        %v3358 = vpop.permute.xlu0 %3357
        %3359 = vrot.lane.b32.xlu0 %v3338, 64
        %v3360 = vpop.permute.xlu0 %3359
        %3361 = vrot.lane.b32.xlu0 %v3339, 64
        %v3362 = vpop.permute.xlu0 %3361
        %3363 = vrot.lane.b32.xlu0 %v3340, 64
        %v3364 = vpop.permute.xlu0 %3363
        %v3373 = vadd.f32 %v892, %v3350
        %v3374 = vadd.f32 %v893, %v3352
        %v3375 = vadd.f32 %v894, %v3354
        %v3376 = vadd.f32 %v895, %v3356
        %v3377 = vadd.f32 %v896, %v3358
        %v3378 = vadd.f32 %v897, %v3360
        %v3379 = vadd.f32 %v898, %v3362
        %v3380 = vadd.f32 %v899, %v3364
        %v3381 = vtanh.pop %v3373
        %v3382 = vtanh.pop %v3374
        %v3383 = vtanh.pop %v3375
        %v3384 = vtanh.pop %v3376
        %v3385 = vtanh.pop %v3377
        %v3386 = vtanh.pop %v3378
        %v3387 = vtanh.pop %v3379
        %v3388 = vtanh.pop %v3380
        %v3389 = vsub.f32 1.0, %v3294
        %v3390 = vsub.f32 1.0, %v3296
        %v3391 = vsub.f32 1.0, %v3298
        %v3392 = vsub.f32 1.0, %v3300
        %v3393 = vsub.f32 1.0, %v3302
        %v3394 = vsub.f32 1.0, %v3304
        %v3395 = vsub.f32 1.0, %v3306
        %v3396 = vsub.f32 1.0, %v3308
        %3405 = vrot.lane.b32.xlu0 %v3381, 96
        %v3406 = vpop.permute.xlu0 %3405
        %3407 = vrot.lane.b32.xlu0 %v3382, 96
        %v3408 = vpop.permute.xlu0 %3407
        %3409 = vrot.lane.b32.xlu0 %v3383, 96
        %v3410 = vpop.permute.xlu0 %3409
        %3411 = vrot.lane.b32.xlu0 %v3384, 96
        %v3412 = vpop.permute.xlu0 %3411
        %3413 = vrot.lane.b32.xlu0 %v3385, 96
        %v3414 = vpop.permute.xlu0 %3413
        %3415 = vrot.lane.b32.xlu0 %v3386, 96
        %v3416 = vpop.permute.xlu0 %3415
        %3417 = vrot.lane.b32.xlu0 %v3387, 96
        %v3418 = vpop.permute.xlu0 %3417
        %3419 = vrot.lane.b32.xlu0 %v3388, 96
        %v3420 = vpop.permute.xlu0 %3419
        %v3429 = vmul.f32 %v3389, %v3406
        %v3430 = vmul.f32 %v3390, %v3408
        %v3431 = vmul.f32 %v3391, %v3410
        %v3432 = vmul.f32 %v3392, %v3412
        %v3433 = vmul.f32 %v3393, %v3414
        %v3434 = vmul.f32 %v3394, %v3416
        %v3435 = vmul.f32 %v3395, %v3418
        %v3436 = vmul.f32 %v3396, %v3420
        %v3445 = vrot.slane %v2918, 7
        %v3446 = vrot.slane %v2919, 7
        %v3447 = vrot.slane %v2920, 7
        %v3448 = vrot.slane %v2921, 7
        %v3449 = vrot.slane %v2922, 7
        %v3450 = vrot.slane %v2923, 7
        %v3451 = vrot.slane %v2924, 7
        %v3452 = vrot.slane %v2925, 7
        %v3461 = vmul.f32 %v3294, %v3445
        %v3462 = vmul.f32 %v3296, %v3446
        %v3463 = vmul.f32 %v3298, %v3447
        %v3464 = vmul.f32 %v3300, %v3448
        %v3465 = vmul.f32 %v3302, %v3449
        %v3466 = vmul.f32 %v3304, %v3450
        %v3467 = vmul.f32 %v3306, %v3451
        %v3468 = vmul.f32 %v3308, %v3452
        %v3469 = vadd.f32 %v3429, %v3461
        %v3470 = vadd.f32 %v3430, %v3462
        %v3471 = vadd.f32 %v3431, %v3463
        %v3472 = vadd.f32 %v3432, %v3464
        %v3473 = vadd.f32 %v3433, %v3465
        %v3474 = vadd.f32 %v3434, %v3466
        %v3475 = vadd.f32 %v3435, %v3467
        %v3476 = vadd.f32 %v3436, %v3468
        %v3477 = vpack.c.bf16 %v3469, %v3469
        %v3478 = vpack.c.bf16 %v3470, %v3470
        %v3479 = vpack.c.bf16 %v3471, %v3471
        %v3480 = vpack.c.bf16 %v3472, %v3472
        %v3481 = vpack.c.bf16 %v3473, %v3473
        %v3482 = vpack.c.bf16 %v3474, %v3474
        %v3483 = vpack.c.bf16 %v3475, %v3475
        %v3484 = vpack.c.bf16 %v3476, %v3476
        %v3493 = vunpack.c.l.b16 %v3477
        %v3494 = vunpack.c.l.b16 %v3478
        %v3495 = vunpack.c.l.b16 %v3479
        %v3496 = vunpack.c.l.b16 %v3480
        %v3497 = vunpack.c.l.b16 %v3481
        %v3498 = vunpack.c.l.b16 %v3482
        %v3499 = vunpack.c.l.b16 %v3483
        %v3500 = vunpack.c.l.b16 %v3484
        %v3501 = vrot.slane %v3493, 4
        %v3502 = vrot.slane %v3494, 3
        %v3503 = vsel %vm1259, %v3502, %v3501
        %v3504 = vrot.slane %v3495, 2
        %v3505 = vsel %vm1262, %v3504, %v3503
        %v3506 = vrot.slane %v3496, 1
        %v3507 = vsel %vm1265, %v3506, %v3505
        %v3508 = vsel %vm1268, %v3497, %v3507
        %v3509 = vrot.slane %v3498, 7
        %v3510 = vsel %vm1271, %v3509, %v3508
        %v3511 = vrot.slane %v3499, 6
        %v3512 = vsel %vm1274, %v3511, %v3510
        %v3513 = vrot.slane %v3500, 5
        %v3514 = vsel %vm1277, %v3513, %v3512
        %v3515 = vpack.c.b16 %v3514, %v3514
        %3516 = vrot.lane.b32.xlu0 %v3515, 96
        %v3517 = vpop.permute.xlu0 %3516
        %v3519 = vsel %vm936, %v3517, 0
        %3521 = vmatprep.subr.bf16.mxu0 0
        %3522 = vmatpush1.bf16.msra.mxu0 0
        %3523 = vmatprep.subr.bf16.mxu0 0
        %3524 = vmatpush1.bf16.msra.mxu0 0
        %3525 = vmatprep.subr.bf16.mxu0 0
        %3526 = vmatpush1.bf16.msra.mxu0 0
        %3527 = vmatprep.subr.bf16.mxu0 0
        %3528 = vmatpush1.bf16.msra.mxu0 0
        %3529 = vmatprep.subr.bf16.mxu0 0
        %3530 = vmatpush1.bf16.msra.mxu0 0
        %3531 = vmatprep.subr.bf16.mxu0 0
        %3532 = vmatpush1.bf16.msra.mxu0 0
        %3533 = vmatprep.subr.bf16.mxu0 0
        %3534 = vmatpush1.bf16.msra.mxu0 %v1291
        %3535 = vmatprep.subr.bf16.mxu0 0
        %3536 = vmatpush1.bf16.msra.mxu0 %v1290
        %3537 = vmatprep.subr.bf16.mxu0 0
        %3538 = vmatpush2.bf16.msra.mxu0 0
        %3539 = vmatprep.subr.bf16.mxu0 0
        %3540 = vmatpush2.bf16.msra.mxu0 0
        %3541 = vmatprep.subr.bf16.mxu0 0
        %3542 = vmatpush2.bf16.msra.mxu0 0
        %3543 = vmatprep.subr.bf16.mxu0 0
        %3544 = vmatpush2.bf16.msra.mxu0 0
        %3545 = vmatprep.subr.bf16.mxu0 0
        %3546 = vmatpush2.bf16.msra.mxu0 0
        %3547 = vmatprep.subr.bf16.mxu0 0
        %3548 = vmatpush2.bf16.msra.mxu0 0
        %3549 = vmatprep.subr.bf16.mxu0 0
        %3550 = vmatpush2.bf16.msra.mxu0 0
        %3551 = vmatprep.subr.bf16.mxu0 0
        %3552 = vmatpush2.bf16.msra.mxu0 0
        %3553 = vmatprep.mubr.bf16.mxu0 0
        %3554 = vmatmul.mubr.bf16.gmra.mxu0 %v3519
        %v3555 = vpop.f32.mrf.mxu0
        %v3556 = vadd.f32 %v1240, %v3555
        %v3557 = vpop.f32.mrf.mxu0
        %v3558 = vpop.f32.mrf.mxu0
        %v3559 = vpop.f32.mrf.mxu0
        %3560 = vdwg.mxu0
        %v3561 = vpack.c.bf16 %v3082, %v3082
        %3563 = vrot.lane.b32.xlu0 %v3561, 96
        %v3564 = vpop.permute.xlu0 %3563
        %v3566 = vsel %vm936, %v3564, 0
        %3568 = vmatprep.subr.bf16.mxu0 0
        %3569 = vmatpush1.bf16.msra.mxu0 0
        %3570 = vmatprep.subr.bf16.mxu0 0
        %3571 = vmatpush1.bf16.msra.mxu0 0
        %3572 = vmatprep.subr.bf16.mxu0 0
        %3573 = vmatpush1.bf16.msra.mxu0 0
        %3574 = vmatprep.subr.bf16.mxu0 0
        %3575 = vmatpush1.bf16.msra.mxu0 0
        %3576 = vmatprep.subr.bf16.mxu0 0
        %3577 = vmatpush1.bf16.msra.mxu0 0
        %3578 = vmatprep.subr.bf16.mxu0 0
        %3579 = vmatpush1.bf16.msra.mxu0 0
        %3580 = vmatprep.subr.bf16.mxu0 0
        %3581 = vmatpush1.bf16.msra.mxu0 %v1353
        %3582 = vmatprep.subr.bf16.mxu0 0
        %3583 = vmatpush1.bf16.msra.mxu0 %v1352
        %3584 = vmatprep.subr.bf16.mxu0 0
        %3585 = vmatpush2.bf16.msra.mxu0 0
        %3586 = vmatprep.subr.bf16.mxu0 0
        %3587 = vmatpush2.bf16.msra.mxu0 0
        %3588 = vmatprep.subr.bf16.mxu0 0
        %3589 = vmatpush2.bf16.msra.mxu0 0
        %3590 = vmatprep.subr.bf16.mxu0 0
        %3591 = vmatpush2.bf16.msra.mxu0 0
        %3592 = vmatprep.subr.bf16.mxu0 0
        %3593 = vmatpush2.bf16.msra.mxu0 0
        %3594 = vmatprep.subr.bf16.mxu0 0
        %3595 = vmatpush2.bf16.msra.mxu0 0
        %3596 = vmatprep.subr.bf16.mxu0 0
        %3597 = vmatpush2.bf16.msra.mxu0 0
        %3598 = vmatprep.subr.bf16.mxu0 0
        %3599 = vmatpush2.bf16.msra.mxu0 0
        %3600 = vmatprep.mubr.bf16.mxu0 0
        %3601 = vmatmul.mubr.bf16.gmra.mxu0 %v3566
        %v3602 = vpop.f32.mrf.mxu0
        %v3603 = vadd.f32 %v1342, %v3602
        %v3604 = vpop.f32.mrf.mxu0
        %v3605 = vpop.f32.mrf.mxu0
        %v3606 = vpop.f32.mrf.mxu0
        %3607 = vdwg.mxu0
        %v3608 = vadd.f32 %v3556, %v3603
        %v3609 = vxor.u32 %v3608, 2147483648
        %v3610 = vmul.f32 %v3609, 1.442695
        %v3611 = vpow.pop %v3610
        %v3612 = vadd.f32 %v3611, 1.0
        %v3613 = vrcp.pop %v3612
        %v3614 = vmul.f32 1.0, %v3613
        %3616 = vrot.lane.b32.xlu0 %v3603, 64
        %v3617 = vpop.permute.xlu0 %3616
        %v3619 = vmul.f32 %v3614, %v3617
        %3621 = vrot.lane.b32.xlu0 %v3619, 64
        %v3622 = vpop.permute.xlu0 %3621
        %v3624 = vadd.f32 %v3556, %v3622
        %v3625 = vtanh.pop %v3624
        %v3626 = vsub.f32 1.0, %v3614
        %3628 = vrot.lane.b32.xlu0 %v3625, 96
        %v3629 = vpop.permute.xlu0 %3628
        %v3631 = vmul.f32 %v3626, %v3629
        %v3632 = vmul.f32 %v3614, %v3082
        %v3633 = vadd.f32 %v3631, %v3632
        %v3635 = vcombine.high %v3633, %v3633
        %v3637 = vunpack.c.l.s4 1966171168
        %v3638 = vunpack.c.0.s8 %v3637
        %v3639 = vlaneseq
        %v3640 = vshrl.u32 %v3639, 7
        %v3641 = vsub.s32 %v3638, %v3640
        %v3642 = vrot.slane %v3633, %v3641
        %v3644 = vunpack.c.l.s4 1966171168
        %v3645 = vunpack.c.0.s8 %v3644
        %v3646 = vlaneseq
        %v3647 = vshrl.u32 %v3646, 7
        %v3648 = vsub.s32 %v3645, %v3647
        %v3649 = vrot.slane %v3635, %v3648
        %v3650 = vcombine.high %v3642, %v3642
        %v3651 = vcombine.high %v3649, %v3649
        %v3653 = vunpack.c.l.s4 1966171168
        %v3654 = vunpack.c.0.s8 %v3653
        %v3655 = vlaneseq
        %v3656 = vshrl.u32 %v3655, 7
        %v3657 = vsub.s32 %v3654, %v3656
        %v3658 = vrot.slane %v3642, %v3657
        %v3660 = vunpack.c.l.s4 1966171168
        %v3661 = vunpack.c.0.s8 %v3660
        %v3662 = vlaneseq
        %v3663 = vshrl.u32 %v3662, 7
        %v3664 = vsub.s32 %v3661, %v3663
        %v3665 = vrot.slane %v3649, %v3664
        %v3667 = vunpack.c.l.s4 1966171168
        %v3668 = vunpack.c.0.s8 %v3667
        %v3669 = vlaneseq
        %v3670 = vshrl.u32 %v3669, 7
        %v3671 = vsub.s32 %v3668, %v3670
        %v3672 = vrot.slane %v3650, %v3671
        %v3674 = vunpack.c.l.s4 1966171168
        %v3675 = vunpack.c.0.s8 %v3674
        %v3676 = vlaneseq
        %v3677 = vshrl.u32 %v3676, 7
        %v3678 = vsub.s32 %v3675, %v3677
        %v3679 = vrot.slane %v3651, %v3678
        %v3680 = vcombine.high %v3658, %v3658
        %v3681 = vcombine.high %v3665, %v3665
        %v3682 = vcombine.high %v3672, %v3672
        %v3683 = vcombine.high %v3679, %v3679
        %v3684 = vlaneseq
        %v3685 = vshrl.u32 %v3684, 7
        %v3686 = vsub.s32 0, %v3685
        %v3687 = vrot.slane %v3658, %v3686
        %v3688 = vlaneseq
        %v3689 = vshrl.u32 %v3688, 7
        %v3690 = vsub.s32 0, %v3689
        %v3691 = vrot.slane %v3672, %v3690
        %v3692 = vlaneseq
        %v3693 = vshrl.u32 %v3692, 7
        %v3694 = vsub.s32 0, %v3693
        %v3695 = vrot.slane %v3680, %v3694
        %v3696 = vlaneseq
        %v3697 = vshrl.u32 %v3696, 7
        %v3698 = vsub.s32 0, %v3697
        %v3699 = vrot.slane %v3682, %v3698
        %v3700 = vlaneseq
        %v3701 = vshrl.u32 %v3700, 7
        %v3702 = vsub.s32 0, %v3701
        %v3703 = vrot.slane %v3665, %v3702
        %v3704 = vlaneseq
        %v3705 = vshrl.u32 %v3704, 7
        %v3706 = vsub.s32 0, %v3705
        %v3707 = vrot.slane %v3679, %v3706
        %v3708 = vlaneseq
        %v3709 = vshrl.u32 %v3708, 7
        %v3710 = vsub.s32 0, %v3709
        %v3711 = vrot.slane %v3681, %v3710
        %v3712 = vlaneseq
        %v3713 = vshrl.u32 %v3712, 7
        %v3714 = vsub.s32 0, %v3713
        %v3715 = vrot.slane %v3683, %v3714
        %3716 = vrot.lane.b32.xlu0 %v3687, 96
        %v3717 = vpop.permute.xlu0 %3716
        %3718 = vrot.lane.b32.xlu0 %v3691, 96
        %v3719 = vpop.permute.xlu0 %3718
        %3720 = vrot.lane.b32.xlu0 %v3695, 96
        %v3721 = vpop.permute.xlu0 %3720
        %3722 = vrot.lane.b32.xlu0 %v3699, 96
        %v3723 = vpop.permute.xlu0 %3722
        %3724 = vrot.lane.b32.xlu0 %v3703, 96
        %v3725 = vpop.permute.xlu0 %3724
        %3726 = vrot.lane.b32.xlu0 %v3707, 96
        %v3727 = vpop.permute.xlu0 %3726
        %3728 = vrot.lane.b32.xlu0 %v3711, 96
        %v3729 = vpop.permute.xlu0 %3728
        %3730 = vrot.lane.b32.xlu0 %v3715, 96
        %v3731 = vpop.permute.xlu0 %3730
        %3740 = vst.msk [vmem:[#allocation4 + $0x4] sm:$0x1] %vm1535, %v3717
        %3741 = vst.msk [vmem:[#allocation4 + $0xc] sm:$0x1] %vm1535, %v3719
        %3742 = vst.msk [vmem:[#allocation4 + $0x14] sm:$0x1] %vm1535, %v3721
        %3743 = vst.msk [vmem:[#allocation4 + $0x1c] sm:$0x1] %vm1535, %v3723
        %3744 = vst.msk [vmem:[#allocation4 + $0x24] sm:$0x1] %vm1535, %v3725
        %3745 = vst.msk [vmem:[#allocation4 + $0x2c] sm:$0x1] %vm1535, %v3727
        %3746 = vst.msk [vmem:[#allocation4 + $0x34] sm:$0x1] %vm1535, %v3729
        %3747 = vst.msk [vmem:[#allocation4 + $0x3c] sm:$0x1] %vm1535, %v3731
        %3748 = vmatprep.subr.bf16.mxu0 0
        %3749 = vmatpush1.bf16.msra.mxu0 0
        %3750 = vmatprep.subr.bf16.mxu0 0
        %3751 = vmatpush1.bf16.msra.mxu0 0
        %3752 = vmatprep.subr.bf16.mxu0 0
        %3753 = vmatpush1.bf16.msra.mxu0 0
        %3754 = vmatprep.subr.bf16.mxu0 0
        %3755 = vmatpush1.bf16.msra.mxu0 0
        %3756 = vmatprep.subr.bf16.mxu0 0
        %3757 = vmatpush1.bf16.msra.mxu0 0
        %3758 = vmatprep.subr.bf16.mxu0 0
        %3759 = vmatpush1.bf16.msra.mxu0 0
        %3760 = vmatprep.subr.bf16.mxu0 0
        %3761 = vmatpush1.bf16.msra.mxu0 %v933
        %3762 = vmatprep.subr.bf16.mxu0 0
        %3763 = vmatpush1.bf16.msra.mxu0 %v932
        %3764 = vmatprep.subr.bf16.mxu0 0
        %3765 = vmatpush2.bf16.msra.mxu0 0
        %3766 = vmatprep.subr.bf16.mxu0 0
        %3767 = vmatpush2.bf16.msra.mxu0 0
        %3768 = vmatprep.subr.bf16.mxu0 0
        %3769 = vmatpush2.bf16.msra.mxu0 0
        %3770 = vmatprep.subr.bf16.mxu0 0
        %3771 = vmatpush2.bf16.msra.mxu0 0
        %3772 = vmatprep.subr.bf16.mxu0 0
        %3773 = vmatpush2.bf16.msra.mxu0 0
        %3774 = vmatprep.subr.bf16.mxu0 0
        %3775 = vmatpush2.bf16.msra.mxu0 0
        %3776 = vmatprep.subr.bf16.mxu0 0
        %3777 = vmatpush2.bf16.msra.mxu0 0
        %3778 = vmatprep.subr.bf16.mxu0 0
        %3779 = vmatpush2.bf16.msra.mxu0 0
        %3780 = vmatprep.mubr.bf16.mxu0 0
        %3781 = vmatmul.mubr.bf16.gmra.mxu0 %v3519
        %v3782 = vpop.f32.mrf.mxu0
        %v3783 = vadd.f32 %v922, %v3782
        %v3784 = vpop.f32.mrf.mxu0
        %v3785 = vpop.f32.mrf.mxu0
        %v3786 = vpop.f32.mrf.mxu0
        %3787 = vdwg.mxu0
        %v3789 = vrot.slane %v3783, 3
        %v3790 = vrot.slane %v3783, 4
        %v3791 = vrot.slane %v3783, 5
        %v3792 = vrot.slane %v3783, 6
        %v3793 = vrot.slane %v3783, 7
        %v3794 = vrot.slane %v3783, 1
        %v3795 = vrot.slane %v3783, 2
        %v3804 = vadd.f32 %v892, %v3789
        %v3805 = vadd.f32 %v893, %v3790
        %v3806 = vadd.f32 %v894, %v3791
        %v3807 = vadd.f32 %v895, %v3792
        %v3808 = vadd.f32 %v896, %v3793
        %v3809 = vadd.f32 %v897, %v3783
        %v3810 = vadd.f32 %v898, %v3794
        %v3811 = vadd.f32 %v899, %v3795
        %v3812 = vxor.u32 %v3804, 2147483648
        %v3813 = vxor.u32 %v3805, 2147483648
        %v3814 = vxor.u32 %v3806, 2147483648
        %v3815 = vxor.u32 %v3807, 2147483648
        %v3816 = vxor.u32 %v3808, 2147483648
        %v3817 = vxor.u32 %v3809, 2147483648
        %v3818 = vxor.u32 %v3810, 2147483648
        %v3819 = vxor.u32 %v3811, 2147483648
        %v3820 = vmul.f32 %v3812, 1.442695
        %v3821 = vpow.pop %v3820
        %v3822 = vmul.f32 %v3813, 1.442695
        %v3823 = vpow.pop %v3822
        %v3824 = vmul.f32 %v3814, 1.442695
        %v3825 = vpow.pop %v3824
        %v3826 = vmul.f32 %v3815, 1.442695
        %v3827 = vpow.pop %v3826
        %v3828 = vmul.f32 %v3816, 1.442695
        %v3829 = vpow.pop %v3828
        %v3830 = vmul.f32 %v3817, 1.442695
        %v3831 = vpow.pop %v3830
        %v3832 = vmul.f32 %v3818, 1.442695
        %v3833 = vpow.pop %v3832
        %v3834 = vmul.f32 %v3819, 1.442695
        %v3835 = vpow.pop %v3834
        %v3836 = vadd.f32 %v3821, 1.0
        %v3837 = vadd.f32 %v3823, 1.0
        %v3838 = vadd.f32 %v3825, 1.0
        %v3839 = vadd.f32 %v3827, 1.0
        %v3840 = vadd.f32 %v3829, 1.0
        %v3841 = vadd.f32 %v3831, 1.0
        %v3842 = vadd.f32 %v3833, 1.0
        %v3843 = vadd.f32 %v3835, 1.0
        %v3844 = vrcp.pop %v3836
        %v3845 = vmul.f32 1.0, %v3844
        %v3846 = vrcp.pop %v3837
        %v3847 = vmul.f32 1.0, %v3846
        %v3848 = vrcp.pop %v3838
        %v3849 = vmul.f32 1.0, %v3848
        %v3850 = vrcp.pop %v3839
        %v3851 = vmul.f32 1.0, %v3850
        %v3852 = vrcp.pop %v3840
        %v3853 = vmul.f32 1.0, %v3852
        %v3854 = vrcp.pop %v3841
        %v3855 = vmul.f32 1.0, %v3854
        %v3856 = vrcp.pop %v3842
        %v3857 = vmul.f32 1.0, %v3856
        %v3858 = vrcp.pop %v3843
        %v3859 = vmul.f32 1.0, %v3858
        %3860 = vrot.lane.b32.xlu0 %v3789, 64
        %v3861 = vpop.permute.xlu0 %3860
        %3862 = vrot.lane.b32.xlu0 %v3790, 64
        %v3863 = vpop.permute.xlu0 %3862
        %3864 = vrot.lane.b32.xlu0 %v3791, 64
        %v3865 = vpop.permute.xlu0 %3864
        %3866 = vrot.lane.b32.xlu0 %v3792, 64
        %v3867 = vpop.permute.xlu0 %3866
        %3868 = vrot.lane.b32.xlu0 %v3793, 64
        %v3869 = vpop.permute.xlu0 %3868
        %3870 = vrot.lane.b32.xlu0 %v3783, 64
        %v3871 = vpop.permute.xlu0 %3870
        %3872 = vrot.lane.b32.xlu0 %v3794, 64
        %v3873 = vpop.permute.xlu0 %3872
        %3874 = vrot.lane.b32.xlu0 %v3795, 64
        %v3875 = vpop.permute.xlu0 %3874
        %v3884 = vmul.f32 %v3845, %v3861
        %v3885 = vmul.f32 %v3847, %v3863
        %v3886 = vmul.f32 %v3849, %v3865
        %v3887 = vmul.f32 %v3851, %v3867
        %v3888 = vmul.f32 %v3853, %v3869
        %v3889 = vmul.f32 %v3855, %v3871
        %v3890 = vmul.f32 %v3857, %v3873
        %v3891 = vmul.f32 %v3859, %v3875
        %3900 = vrot.lane.b32.xlu0 %v3884, 64
        %v3901 = vpop.permute.xlu0 %3900
        %3902 = vrot.lane.b32.xlu0 %v3885, 64
        %v3903 = vpop.permute.xlu0 %3902
        %3904 = vrot.lane.b32.xlu0 %v3886, 64
        %v3905 = vpop.permute.xlu0 %3904
        %3906 = vrot.lane.b32.xlu0 %v3887, 64
        %v3907 = vpop.permute.xlu0 %3906
        %3908 = vrot.lane.b32.xlu0 %v3888, 64
        %v3909 = vpop.permute.xlu0 %3908
        %3910 = vrot.lane.b32.xlu0 %v3889, 64
        %v3911 = vpop.permute.xlu0 %3910
        %3912 = vrot.lane.b32.xlu0 %v3890, 64
        %v3913 = vpop.permute.xlu0 %3912
        %3914 = vrot.lane.b32.xlu0 %v3891, 64
        %v3915 = vpop.permute.xlu0 %3914
        %v3924 = vadd.f32 %v892, %v3901
        %v3925 = vadd.f32 %v893, %v3903
        %v3926 = vadd.f32 %v894, %v3905
        %v3927 = vadd.f32 %v895, %v3907
        %v3928 = vadd.f32 %v896, %v3909
        %v3929 = vadd.f32 %v897, %v3911
        %v3930 = vadd.f32 %v898, %v3913
        %v3931 = vadd.f32 %v899, %v3915
        %v3932 = vtanh.pop %v3924
        %v3933 = vtanh.pop %v3925
        %v3934 = vtanh.pop %v3926
        %v3935 = vtanh.pop %v3927
        %v3936 = vtanh.pop %v3928
        %v3937 = vtanh.pop %v3929
        %v3938 = vtanh.pop %v3930
        %v3939 = vtanh.pop %v3931
        %v3940 = vsub.f32 1.0, %v3845
        %v3941 = vsub.f32 1.0, %v3847
        %v3942 = vsub.f32 1.0, %v3849
        %v3943 = vsub.f32 1.0, %v3851
        %v3944 = vsub.f32 1.0, %v3853
        %v3945 = vsub.f32 1.0, %v3855
        %v3946 = vsub.f32 1.0, %v3857
        %v3947 = vsub.f32 1.0, %v3859
        %3956 = vrot.lane.b32.xlu0 %v3932, 96
        %v3957 = vpop.permute.xlu0 %3956
        %3958 = vrot.lane.b32.xlu0 %v3933, 96
        %v3959 = vpop.permute.xlu0 %3958
        %3960 = vrot.lane.b32.xlu0 %v3934, 96
        %v3961 = vpop.permute.xlu0 %3960
        %3962 = vrot.lane.b32.xlu0 %v3935, 96
        %v3963 = vpop.permute.xlu0 %3962
        %3964 = vrot.lane.b32.xlu0 %v3936, 96
        %v3965 = vpop.permute.xlu0 %3964
        %3966 = vrot.lane.b32.xlu0 %v3937, 96
        %v3967 = vpop.permute.xlu0 %3966
        %3968 = vrot.lane.b32.xlu0 %v3938, 96
        %v3969 = vpop.permute.xlu0 %3968
        %3970 = vrot.lane.b32.xlu0 %v3939, 96
        %v3971 = vpop.permute.xlu0 %3970
        %v3980 = vmul.f32 %v3940, %v3957
        %v3981 = vmul.f32 %v3941, %v3959
        %v3982 = vmul.f32 %v3942, %v3961
        %v3983 = vmul.f32 %v3943, %v3963
        %v3984 = vmul.f32 %v3944, %v3965
        %v3985 = vmul.f32 %v3945, %v3967
        %v3986 = vmul.f32 %v3946, %v3969
        %v3987 = vmul.f32 %v3947, %v3971
        %v3996 = vrot.slane %v3469, 7
        %v3997 = vrot.slane %v3470, 7
        %v3998 = vrot.slane %v3471, 7
        %v3999 = vrot.slane %v3472, 7
        %v4000 = vrot.slane %v3473, 7
        %v4001 = vrot.slane %v3474, 7
        %v4002 = vrot.slane %v3475, 7
        %v4003 = vrot.slane %v3476, 7
        %v4012 = vmul.f32 %v3845, %v3996
        %v4013 = vmul.f32 %v3847, %v3997
        %v4014 = vmul.f32 %v3849, %v3998
        %v4015 = vmul.f32 %v3851, %v3999
        %v4016 = vmul.f32 %v3853, %v4000
        %v4017 = vmul.f32 %v3855, %v4001
        %v4018 = vmul.f32 %v3857, %v4002
        %v4019 = vmul.f32 %v3859, %v4003
        %v4020 = vadd.f32 %v3980, %v4012
        %v4021 = vadd.f32 %v3981, %v4013
        %v4022 = vadd.f32 %v3982, %v4014
        %v4023 = vadd.f32 %v3983, %v4015
        %v4024 = vadd.f32 %v3984, %v4016
        %v4025 = vadd.f32 %v3985, %v4017
        %v4026 = vadd.f32 %v3986, %v4018
        %v4027 = vadd.f32 %v3987, %v4019
        %v4028 = vpack.c.bf16 %v4020, %v4020
        %v4029 = vpack.c.bf16 %v4021, %v4021
        %v4030 = vpack.c.bf16 %v4022, %v4022
        %v4031 = vpack.c.bf16 %v4023, %v4023
        %v4032 = vpack.c.bf16 %v4024, %v4024
        %v4033 = vpack.c.bf16 %v4025, %v4025
        %v4034 = vpack.c.bf16 %v4026, %v4026
        %v4035 = vpack.c.bf16 %v4027, %v4027
        %v4044 = vunpack.c.l.b16 %v4028
        %v4045 = vunpack.c.l.b16 %v4029
        %v4046 = vunpack.c.l.b16 %v4030
        %v4047 = vunpack.c.l.b16 %v4031
        %v4048 = vunpack.c.l.b16 %v4032
        %v4049 = vunpack.c.l.b16 %v4033
        %v4050 = vunpack.c.l.b16 %v4034
        %v4051 = vunpack.c.l.b16 %v4035
        %v4052 = vrot.slane %v4044, 5
        %v4053 = vrot.slane %v4045, 4
        %v4054 = vsel %vm1259, %v4053, %v4052
        %v4055 = vrot.slane %v4046, 3
        %v4056 = vsel %vm1262, %v4055, %v4054
        %v4057 = vrot.slane %v4047, 2
        %v4058 = vsel %vm1265, %v4057, %v4056
        %v4059 = vrot.slane %v4048, 1
        %v4060 = vsel %vm1268, %v4059, %v4058
        %v4061 = vsel %vm1271, %v4049, %v4060
        %v4062 = vrot.slane %v4050, 7
        %v4063 = vsel %vm1274, %v4062, %v4061
        %v4064 = vrot.slane %v4051, 6
        %v4065 = vsel %vm1277, %v4064, %v4063
        %v4066 = vpack.c.b16 %v4065, %v4065
        %4067 = vrot.lane.b32.xlu0 %v4066, 96
        %v4068 = vpop.permute.xlu0 %4067
        %v4070 = vsel %vm936, %v4068, 0
        %4072 = vmatprep.subr.bf16.mxu0 0
        %4073 = vmatpush1.bf16.msra.mxu0 0
        %4074 = vmatprep.subr.bf16.mxu0 0
        %4075 = vmatpush1.bf16.msra.mxu0 0
        %4076 = vmatprep.subr.bf16.mxu0 0
        %4077 = vmatpush1.bf16.msra.mxu0 0
        %4078 = vmatprep.subr.bf16.mxu0 0
        %4079 = vmatpush1.bf16.msra.mxu0 0
        %4080 = vmatprep.subr.bf16.mxu0 0
        %4081 = vmatpush1.bf16.msra.mxu0 0
        %4082 = vmatprep.subr.bf16.mxu0 0
        %4083 = vmatpush1.bf16.msra.mxu0 0
        %4084 = vmatprep.subr.bf16.mxu0 0
        %4085 = vmatpush1.bf16.msra.mxu0 %v1291
        %4086 = vmatprep.subr.bf16.mxu0 0
        %4087 = vmatpush1.bf16.msra.mxu0 %v1290
        %4088 = vmatprep.subr.bf16.mxu0 0
        %4089 = vmatpush2.bf16.msra.mxu0 0
        %4090 = vmatprep.subr.bf16.mxu0 0
        %4091 = vmatpush2.bf16.msra.mxu0 0
        %4092 = vmatprep.subr.bf16.mxu0 0
        %4093 = vmatpush2.bf16.msra.mxu0 0
        %4094 = vmatprep.subr.bf16.mxu0 0
        %4095 = vmatpush2.bf16.msra.mxu0 0
        %4096 = vmatprep.subr.bf16.mxu0 0
        %4097 = vmatpush2.bf16.msra.mxu0 0
        %4098 = vmatprep.subr.bf16.mxu0 0
        %4099 = vmatpush2.bf16.msra.mxu0 0
        %4100 = vmatprep.subr.bf16.mxu0 0
        %4101 = vmatpush2.bf16.msra.mxu0 0
        %4102 = vmatprep.subr.bf16.mxu0 0
        %4103 = vmatpush2.bf16.msra.mxu0 0
        %4104 = vmatprep.mubr.bf16.mxu0 0
        %4105 = vmatmul.mubr.bf16.gmra.mxu0 %v4070
        %v4106 = vpop.f32.mrf.mxu0
        %v4107 = vadd.f32 %v1240, %v4106
        %v4108 = vpop.f32.mrf.mxu0
        %v4109 = vpop.f32.mrf.mxu0
        %v4110 = vpop.f32.mrf.mxu0
        %4111 = vdwg.mxu0
        %v4112 = vpack.c.bf16 %v3633, %v3633
        %4114 = vrot.lane.b32.xlu0 %v4112, 96
        %v4115 = vpop.permute.xlu0 %4114
        %v4117 = vsel %vm936, %v4115, 0
        %4119 = vmatprep.subr.bf16.mxu0 0
        %4120 = vmatpush1.bf16.msra.mxu0 0
        %4121 = vmatprep.subr.bf16.mxu0 0
        %4122 = vmatpush1.bf16.msra.mxu0 0
        %4123 = vmatprep.subr.bf16.mxu0 0
        %4124 = vmatpush1.bf16.msra.mxu0 0
        %4125 = vmatprep.subr.bf16.mxu0 0
        %4126 = vmatpush1.bf16.msra.mxu0 0
        %4127 = vmatprep.subr.bf16.mxu0 0
        %4128 = vmatpush1.bf16.msra.mxu0 0
        %4129 = vmatprep.subr.bf16.mxu0 0
        %4130 = vmatpush1.bf16.msra.mxu0 0
        %4131 = vmatprep.subr.bf16.mxu0 0
        %4132 = vmatpush1.bf16.msra.mxu0 %v1353
        %4133 = vmatprep.subr.bf16.mxu0 0
        %4134 = vmatpush1.bf16.msra.mxu0 %v1352
        %4135 = vmatprep.subr.bf16.mxu0 0
        %4136 = vmatpush2.bf16.msra.mxu0 0
        %4137 = vmatprep.subr.bf16.mxu0 0
        %4138 = vmatpush2.bf16.msra.mxu0 0
        %4139 = vmatprep.subr.bf16.mxu0 0
        %4140 = vmatpush2.bf16.msra.mxu0 0
        %4141 = vmatprep.subr.bf16.mxu0 0
        %4142 = vmatpush2.bf16.msra.mxu0 0
        %4143 = vmatprep.subr.bf16.mxu0 0
        %4144 = vmatpush2.bf16.msra.mxu0 0
        %4145 = vmatprep.subr.bf16.mxu0 0
        %4146 = vmatpush2.bf16.msra.mxu0 0
        %4147 = vmatprep.subr.bf16.mxu0 0
        %4148 = vmatpush2.bf16.msra.mxu0 0
        %4149 = vmatprep.subr.bf16.mxu0 0
        %4150 = vmatpush2.bf16.msra.mxu0 0
        %4151 = vmatprep.mubr.bf16.mxu0 0
        %4152 = vmatmul.mubr.bf16.gmra.mxu0 %v4117
        %v4153 = vpop.f32.mrf.mxu0
        %v4154 = vadd.f32 %v1342, %v4153
        %v4155 = vpop.f32.mrf.mxu0
        %v4156 = vpop.f32.mrf.mxu0
        %v4157 = vpop.f32.mrf.mxu0
        %4158 = vdwg.mxu0
        %v4159 = vadd.f32 %v4107, %v4154
        %v4160 = vxor.u32 %v4159, 2147483648
        %v4161 = vmul.f32 %v4160, 1.442695
        %v4162 = vpow.pop %v4161
        %v4163 = vadd.f32 %v4162, 1.0
        %v4164 = vrcp.pop %v4163
        %v4165 = vmul.f32 1.0, %v4164
        %4167 = vrot.lane.b32.xlu0 %v4154, 64
        %v4168 = vpop.permute.xlu0 %4167
        %v4170 = vmul.f32 %v4165, %v4168
        %4172 = vrot.lane.b32.xlu0 %v4170, 64
        %v4173 = vpop.permute.xlu0 %4172
        %v4175 = vadd.f32 %v4107, %v4173
        %v4176 = vtanh.pop %v4175
        %v4177 = vsub.f32 1.0, %v4165
        %4179 = vrot.lane.b32.xlu0 %v4176, 96
        %v4180 = vpop.permute.xlu0 %4179
        %v4182 = vmul.f32 %v4177, %v4180
        %v4183 = vmul.f32 %v4165, %v3633
        %v4184 = vadd.f32 %v4182, %v4183
        %v4186 = vcombine.high %v4184, %v4184
        %v4188 = vunpack.c.l.s4 1966171168
        %v4189 = vunpack.c.0.s8 %v4188
        %v4190 = vlaneseq
        %v4191 = vshrl.u32 %v4190, 7
        %v4192 = vsub.s32 %v4189, %v4191
        %v4193 = vrot.slane %v4184, %v4192
        %v4195 = vunpack.c.l.s4 1966171168
        %v4196 = vunpack.c.0.s8 %v4195
        %v4197 = vlaneseq
        %v4198 = vshrl.u32 %v4197, 7
        %v4199 = vsub.s32 %v4196, %v4198
        %v4200 = vrot.slane %v4186, %v4199
        %v4201 = vcombine.high %v4193, %v4193
        %v4202 = vcombine.high %v4200, %v4200
        %v4204 = vunpack.c.l.s4 1966171168
        %v4205 = vunpack.c.0.s8 %v4204
        %v4206 = vlaneseq
        %v4207 = vshrl.u32 %v4206, 7
        %v4208 = vsub.s32 %v4205, %v4207
        %v4209 = vrot.slane %v4193, %v4208
        %v4211 = vunpack.c.l.s4 1966171168
        %v4212 = vunpack.c.0.s8 %v4211
        %v4213 = vlaneseq
        %v4214 = vshrl.u32 %v4213, 7
        %v4215 = vsub.s32 %v4212, %v4214
        %v4216 = vrot.slane %v4200, %v4215
        %v4218 = vunpack.c.l.s4 1966171168
        %v4219 = vunpack.c.0.s8 %v4218
        %v4220 = vlaneseq
        %v4221 = vshrl.u32 %v4220, 7
        %v4222 = vsub.s32 %v4219, %v4221
        %v4223 = vrot.slane %v4201, %v4222
        %v4225 = vunpack.c.l.s4 1966171168
        %v4226 = vunpack.c.0.s8 %v4225
        %v4227 = vlaneseq
        %v4228 = vshrl.u32 %v4227, 7
        %v4229 = vsub.s32 %v4226, %v4228
        %v4230 = vrot.slane %v4202, %v4229
        %v4231 = vcombine.high %v4209, %v4209
        %v4232 = vcombine.high %v4216, %v4216
        %v4233 = vcombine.high %v4223, %v4223
        %v4234 = vcombine.high %v4230, %v4230
        %v4235 = vlaneseq
        %v4236 = vshrl.u32 %v4235, 7
        %v4237 = vsub.s32 0, %v4236
        %v4238 = vrot.slane %v4209, %v4237
        %v4239 = vlaneseq
        %v4240 = vshrl.u32 %v4239, 7
        %v4241 = vsub.s32 0, %v4240
        %v4242 = vrot.slane %v4223, %v4241
        %v4243 = vlaneseq
        %v4244 = vshrl.u32 %v4243, 7
        %v4245 = vsub.s32 0, %v4244
        %v4246 = vrot.slane %v4231, %v4245
        %v4247 = vlaneseq
        %v4248 = vshrl.u32 %v4247, 7
        %v4249 = vsub.s32 0, %v4248
        %v4250 = vrot.slane %v4233, %v4249
        %v4251 = vlaneseq
        %v4252 = vshrl.u32 %v4251, 7
        %v4253 = vsub.s32 0, %v4252
        %v4254 = vrot.slane %v4216, %v4253
        %v4255 = vlaneseq
        %v4256 = vshrl.u32 %v4255, 7
        %v4257 = vsub.s32 0, %v4256
        %v4258 = vrot.slane %v4230, %v4257
        %v4259 = vlaneseq
        %v4260 = vshrl.u32 %v4259, 7
        %v4261 = vsub.s32 0, %v4260
        %v4262 = vrot.slane %v4232, %v4261
        %v4263 = vlaneseq
        %v4264 = vshrl.u32 %v4263, 7
        %v4265 = vsub.s32 0, %v4264
        %v4266 = vrot.slane %v4234, %v4265
        %4267 = vrot.lane.b32.xlu0 %v4238, 96
        %v4268 = vpop.permute.xlu0 %4267
        %4269 = vrot.lane.b32.xlu0 %v4242, 96
        %v4270 = vpop.permute.xlu0 %4269
        %4271 = vrot.lane.b32.xlu0 %v4246, 96
        %v4272 = vpop.permute.xlu0 %4271
        %4273 = vrot.lane.b32.xlu0 %v4250, 96
        %v4274 = vpop.permute.xlu0 %4273
        %4275 = vrot.lane.b32.xlu0 %v4254, 96
        %v4276 = vpop.permute.xlu0 %4275
        %4277 = vrot.lane.b32.xlu0 %v4258, 96
        %v4278 = vpop.permute.xlu0 %4277
        %4279 = vrot.lane.b32.xlu0 %v4262, 96
        %v4280 = vpop.permute.xlu0 %4279
        %4281 = vrot.lane.b32.xlu0 %v4266, 96
        %v4282 = vpop.permute.xlu0 %4281
        %4291 = vst.msk [vmem:[#allocation4 + $0x5] sm:$0x1] %vm1535, %v4268
        %4292 = vst.msk [vmem:[#allocation4 + $0xd] sm:$0x1] %vm1535, %v4270
        %4293 = vst.msk [vmem:[#allocation4 + $0x15] sm:$0x1] %vm1535, %v4272
        %4294 = vst.msk [vmem:[#allocation4 + $0x1d] sm:$0x1] %vm1535, %v4274
        %4295 = vst.msk [vmem:[#allocation4 + $0x25] sm:$0x1] %vm1535, %v4276
        %4296 = vst.msk [vmem:[#allocation4 + $0x2d] sm:$0x1] %vm1535, %v4278
        %4297 = vst.msk [vmem:[#allocation4 + $0x35] sm:$0x1] %vm1535, %v4280
        %4298 = vst.msk [vmem:[#allocation4 + $0x3d] sm:$0x1] %vm1535, %v4282
        %4299 = vmatprep.subr.bf16.mxu0 0
        %4300 = vmatpush1.bf16.msra.mxu0 0
        %4301 = vmatprep.subr.bf16.mxu0 0
        %4302 = vmatpush1.bf16.msra.mxu0 0
        %4303 = vmatprep.subr.bf16.mxu0 0
        %4304 = vmatpush1.bf16.msra.mxu0 0
        %4305 = vmatprep.subr.bf16.mxu0 0
        %4306 = vmatpush1.bf16.msra.mxu0 0
        %4307 = vmatprep.subr.bf16.mxu0 0
        %4308 = vmatpush1.bf16.msra.mxu0 0
        %4309 = vmatprep.subr.bf16.mxu0 0
        %4310 = vmatpush1.bf16.msra.mxu0 0
        %4311 = vmatprep.subr.bf16.mxu0 0
        %4312 = vmatpush1.bf16.msra.mxu0 %v933
        %4313 = vmatprep.subr.bf16.mxu0 0
        %4314 = vmatpush1.bf16.msra.mxu0 %v932
        %4315 = vmatprep.subr.bf16.mxu0 0
        %4316 = vmatpush2.bf16.msra.mxu0 0
        %4317 = vmatprep.subr.bf16.mxu0 0
        %4318 = vmatpush2.bf16.msra.mxu0 0
        %4319 = vmatprep.subr.bf16.mxu0 0
        %4320 = vmatpush2.bf16.msra.mxu0 0
        %4321 = vmatprep.subr.bf16.mxu0 0
        %4322 = vmatpush2.bf16.msra.mxu0 0
        %4323 = vmatprep.subr.bf16.mxu0 0
        %4324 = vmatpush2.bf16.msra.mxu0 0
        %4325 = vmatprep.subr.bf16.mxu0 0
        %4326 = vmatpush2.bf16.msra.mxu0 0
        %4327 = vmatprep.subr.bf16.mxu0 0
        %4328 = vmatpush2.bf16.msra.mxu0 0
        %4329 = vmatprep.subr.bf16.mxu0 0
        %4330 = vmatpush2.bf16.msra.mxu0 0
        %4331 = vmatprep.mubr.bf16.mxu0 0
        %4332 = vmatmul.mubr.bf16.gmra.mxu0 %v4070
        %v4333 = vpop.f32.mrf.mxu0
        %v4334 = vadd.f32 %v922, %v4333
        %v4335 = vpop.f32.mrf.mxu0
        %v4336 = vpop.f32.mrf.mxu0
        %v4337 = vpop.f32.mrf.mxu0
        %4338 = vdwg.mxu0
        %v4340 = vrot.slane %v4334, 2
        %v4341 = vrot.slane %v4334, 3
        %v4342 = vrot.slane %v4334, 4
        %v4343 = vrot.slane %v4334, 5
        %v4344 = vrot.slane %v4334, 6
        %v4345 = vrot.slane %v4334, 7
        %v4346 = vrot.slane %v4334, 1
        %v4355 = vadd.f32 %v892, %v4340
        %v4356 = vadd.f32 %v893, %v4341
        %v4357 = vadd.f32 %v894, %v4342
        %v4358 = vadd.f32 %v895, %v4343
        %v4359 = vadd.f32 %v896, %v4344
        %v4360 = vadd.f32 %v897, %v4345
        %v4361 = vadd.f32 %v898, %v4334
        %v4362 = vadd.f32 %v899, %v4346
        %v4363 = vxor.u32 %v4355, 2147483648
        %v4364 = vxor.u32 %v4356, 2147483648
        %v4365 = vxor.u32 %v4357, 2147483648
        %v4366 = vxor.u32 %v4358, 2147483648
        %v4367 = vxor.u32 %v4359, 2147483648
        %v4368 = vxor.u32 %v4360, 2147483648
        %v4369 = vxor.u32 %v4361, 2147483648
        %v4370 = vxor.u32 %v4362, 2147483648
        %v4371 = vmul.f32 %v4363, 1.442695
        %v4372 = vpow.pop %v4371
        %v4373 = vmul.f32 %v4364, 1.442695
        %v4374 = vpow.pop %v4373
        %v4375 = vmul.f32 %v4365, 1.442695
        %v4376 = vpow.pop %v4375
        %v4377 = vmul.f32 %v4366, 1.442695
        %v4378 = vpow.pop %v4377
        %v4379 = vmul.f32 %v4367, 1.442695
        %v4380 = vpow.pop %v4379
        %v4381 = vmul.f32 %v4368, 1.442695
        %v4382 = vpow.pop %v4381
        %v4383 = vmul.f32 %v4369, 1.442695
        %v4384 = vpow.pop %v4383
        %v4385 = vmul.f32 %v4370, 1.442695
        %v4386 = vpow.pop %v4385
        %v4387 = vadd.f32 %v4372, 1.0
        %v4388 = vadd.f32 %v4374, 1.0
        %v4389 = vadd.f32 %v4376, 1.0
        %v4390 = vadd.f32 %v4378, 1.0
        %v4391 = vadd.f32 %v4380, 1.0
        %v4392 = vadd.f32 %v4382, 1.0
        %v4393 = vadd.f32 %v4384, 1.0
        %v4394 = vadd.f32 %v4386, 1.0
        %v4395 = vrcp.pop %v4387
        %v4396 = vmul.f32 1.0, %v4395
        %v4397 = vrcp.pop %v4388
        %v4398 = vmul.f32 1.0, %v4397
        %v4399 = vrcp.pop %v4389
        %v4400 = vmul.f32 1.0, %v4399
        %v4401 = vrcp.pop %v4390
        %v4402 = vmul.f32 1.0, %v4401
        %v4403 = vrcp.pop %v4391
        %v4404 = vmul.f32 1.0, %v4403
        %v4405 = vrcp.pop %v4392
        %v4406 = vmul.f32 1.0, %v4405
        %v4407 = vrcp.pop %v4393
        %v4408 = vmul.f32 1.0, %v4407
        %v4409 = vrcp.pop %v4394
        %v4410 = vmul.f32 1.0, %v4409
        %4411 = vrot.lane.b32.xlu0 %v4340, 64
        %v4412 = vpop.permute.xlu0 %4411
        %4413 = vrot.lane.b32.xlu0 %v4341, 64
        %v4414 = vpop.permute.xlu0 %4413
        %4415 = vrot.lane.b32.xlu0 %v4342, 64
        %v4416 = vpop.permute.xlu0 %4415
        %4417 = vrot.lane.b32.xlu0 %v4343, 64
        %v4418 = vpop.permute.xlu0 %4417
        %4419 = vrot.lane.b32.xlu0 %v4344, 64
        %v4420 = vpop.permute.xlu0 %4419
        %4421 = vrot.lane.b32.xlu0 %v4345, 64
        %v4422 = vpop.permute.xlu0 %4421
        %4423 = vrot.lane.b32.xlu0 %v4334, 64
        %v4424 = vpop.permute.xlu0 %4423
        %4425 = vrot.lane.b32.xlu0 %v4346, 64
        %v4426 = vpop.permute.xlu0 %4425
        %v4435 = vmul.f32 %v4396, %v4412
        %v4436 = vmul.f32 %v4398, %v4414
        %v4437 = vmul.f32 %v4400, %v4416
        %v4438 = vmul.f32 %v4402, %v4418
        %v4439 = vmul.f32 %v4404, %v4420
        %v4440 = vmul.f32 %v4406, %v4422
        %v4441 = vmul.f32 %v4408, %v4424
        %v4442 = vmul.f32 %v4410, %v4426
        %4451 = vrot.lane.b32.xlu0 %v4435, 64
        %v4452 = vpop.permute.xlu0 %4451
        %4453 = vrot.lane.b32.xlu0 %v4436, 64
        %v4454 = vpop.permute.xlu0 %4453
        %4455 = vrot.lane.b32.xlu0 %v4437, 64
        %v4456 = vpop.permute.xlu0 %4455
        %4457 = vrot.lane.b32.xlu0 %v4438, 64
        %v4458 = vpop.permute.xlu0 %4457
        %4459 = vrot.lane.b32.xlu0 %v4439, 64
        %v4460 = vpop.permute.xlu0 %4459
        %4461 = vrot.lane.b32.xlu0 %v4440, 64
        %v4462 = vpop.permute.xlu0 %4461
        %4463 = vrot.lane.b32.xlu0 %v4441, 64
        %v4464 = vpop.permute.xlu0 %4463
        %4465 = vrot.lane.b32.xlu0 %v4442, 64
        %v4466 = vpop.permute.xlu0 %4465
        %v4475 = vadd.f32 %v892, %v4452
        %v4476 = vadd.f32 %v893, %v4454
        %v4477 = vadd.f32 %v894, %v4456
        %v4478 = vadd.f32 %v895, %v4458
        %v4479 = vadd.f32 %v896, %v4460
        %v4480 = vadd.f32 %v897, %v4462
        %v4481 = vadd.f32 %v898, %v4464
        %v4482 = vadd.f32 %v899, %v4466
        %v4483 = vtanh.pop %v4475
        %v4484 = vtanh.pop %v4476
        %v4485 = vtanh.pop %v4477
        %v4486 = vtanh.pop %v4478
        %v4487 = vtanh.pop %v4479
        %v4488 = vtanh.pop %v4480
        %v4489 = vtanh.pop %v4481
        %v4490 = vtanh.pop %v4482
        %v4491 = vsub.f32 1.0, %v4396
        %v4492 = vsub.f32 1.0, %v4398
        %v4493 = vsub.f32 1.0, %v4400
        %v4494 = vsub.f32 1.0, %v4402
        %v4495 = vsub.f32 1.0, %v4404
        %v4496 = vsub.f32 1.0, %v4406
        %v4497 = vsub.f32 1.0, %v4408
        %v4498 = vsub.f32 1.0, %v4410
        %4507 = vrot.lane.b32.xlu0 %v4483, 96
        %v4508 = vpop.permute.xlu0 %4507
        %4509 = vrot.lane.b32.xlu0 %v4484, 96
        %v4510 = vpop.permute.xlu0 %4509
        %4511 = vrot.lane.b32.xlu0 %v4485, 96
        %v4512 = vpop.permute.xlu0 %4511
        %4513 = vrot.lane.b32.xlu0 %v4486, 96
        %v4514 = vpop.permute.xlu0 %4513
        %4515 = vrot.lane.b32.xlu0 %v4487, 96
        %v4516 = vpop.permute.xlu0 %4515
        %4517 = vrot.lane.b32.xlu0 %v4488, 96
        %v4518 = vpop.permute.xlu0 %4517
        %4519 = vrot.lane.b32.xlu0 %v4489, 96
        %v4520 = vpop.permute.xlu0 %4519
        %4521 = vrot.lane.b32.xlu0 %v4490, 96
        %v4522 = vpop.permute.xlu0 %4521
        %v4531 = vmul.f32 %v4491, %v4508
        %v4532 = vmul.f32 %v4492, %v4510
        %v4533 = vmul.f32 %v4493, %v4512
        %v4534 = vmul.f32 %v4494, %v4514
        %v4535 = vmul.f32 %v4495, %v4516
        %v4536 = vmul.f32 %v4496, %v4518
        %v4537 = vmul.f32 %v4497, %v4520
        %v4538 = vmul.f32 %v4498, %v4522
        %v4547 = vrot.slane %v4020, 7
        %v4548 = vrot.slane %v4021, 7
        %v4549 = vrot.slane %v4022, 7
        %v4550 = vrot.slane %v4023, 7
        %v4551 = vrot.slane %v4024, 7
        %v4552 = vrot.slane %v4025, 7
        %v4553 = vrot.slane %v4026, 7
        %v4554 = vrot.slane %v4027, 7
        %v4563 = vmul.f32 %v4396, %v4547
        %v4564 = vmul.f32 %v4398, %v4548
        %v4565 = vmul.f32 %v4400, %v4549
        %v4566 = vmul.f32 %v4402, %v4550
        %v4567 = vmul.f32 %v4404, %v4551
        %v4568 = vmul.f32 %v4406, %v4552
        %v4569 = vmul.f32 %v4408, %v4553
        %v4570 = vmul.f32 %v4410, %v4554
        %v4571 = vadd.f32 %v4531, %v4563
        %v4572 = vadd.f32 %v4532, %v4564
        %v4573 = vadd.f32 %v4533, %v4565
        %v4574 = vadd.f32 %v4534, %v4566
        %v4575 = vadd.f32 %v4535, %v4567
        %v4576 = vadd.f32 %v4536, %v4568
        %v4577 = vadd.f32 %v4537, %v4569
        %v4578 = vadd.f32 %v4538, %v4570
        %v4579 = vpack.c.bf16 %v4571, %v4571
        %v4580 = vpack.c.bf16 %v4572, %v4572
        %v4581 = vpack.c.bf16 %v4573, %v4573
        %v4582 = vpack.c.bf16 %v4574, %v4574
        %v4583 = vpack.c.bf16 %v4575, %v4575
        %v4584 = vpack.c.bf16 %v4576, %v4576
        %v4585 = vpack.c.bf16 %v4577, %v4577
        %v4586 = vpack.c.bf16 %v4578, %v4578
        %v4595 = vunpack.c.l.b16 %v4579
        %v4596 = vunpack.c.l.b16 %v4580
        %v4597 = vunpack.c.l.b16 %v4581
        %v4598 = vunpack.c.l.b16 %v4582
        %v4599 = vunpack.c.l.b16 %v4583
        %v4600 = vunpack.c.l.b16 %v4584
        %v4601 = vunpack.c.l.b16 %v4585
        %v4602 = vunpack.c.l.b16 %v4586
        %v4603 = vrot.slane %v4595, 6
        %v4604 = vrot.slane %v4596, 5
        %v4605 = vsel %vm1259, %v4604, %v4603
        %v4606 = vrot.slane %v4597, 4
        %v4607 = vsel %vm1262, %v4606, %v4605
        %v4608 = vrot.slane %v4598, 3
        %v4609 = vsel %vm1265, %v4608, %v4607
        %v4610 = vrot.slane %v4599, 2
        %v4611 = vsel %vm1268, %v4610, %v4609
        %v4612 = vrot.slane %v4600, 1
        %v4613 = vsel %vm1271, %v4612, %v4611
        %v4614 = vsel %vm1274, %v4601, %v4613
        %v4615 = vrot.slane %v4602, 7
        %v4616 = vsel %vm1277, %v4615, %v4614
        %v4617 = vpack.c.b16 %v4616, %v4616
        %4618 = vrot.lane.b32.xlu0 %v4617, 96
        %v4619 = vpop.permute.xlu0 %4618
        %v4621 = vsel %vm936, %v4619, 0
        %4623 = vmatprep.subr.bf16.mxu0 0
        %4624 = vmatpush1.bf16.msra.mxu0 0
        %4625 = vmatprep.subr.bf16.mxu0 0
        %4626 = vmatpush1.bf16.msra.mxu0 0
        %4627 = vmatprep.subr.bf16.mxu0 0
        %4628 = vmatpush1.bf16.msra.mxu0 0
        %4629 = vmatprep.subr.bf16.mxu0 0
        %4630 = vmatpush1.bf16.msra.mxu0 0
        %4631 = vmatprep.subr.bf16.mxu0 0
        %4632 = vmatpush1.bf16.msra.mxu0 0
        %4633 = vmatprep.subr.bf16.mxu0 0
        %4634 = vmatpush1.bf16.msra.mxu0 0
        %4635 = vmatprep.subr.bf16.mxu0 0
        %4636 = vmatpush1.bf16.msra.mxu0 %v1291
        %4637 = vmatprep.subr.bf16.mxu0 0
        %4638 = vmatpush1.bf16.msra.mxu0 %v1290
        %4639 = vmatprep.subr.bf16.mxu0 0
        %4640 = vmatpush2.bf16.msra.mxu0 0
        %4641 = vmatprep.subr.bf16.mxu0 0
        %4642 = vmatpush2.bf16.msra.mxu0 0
        %4643 = vmatprep.subr.bf16.mxu0 0
        %4644 = vmatpush2.bf16.msra.mxu0 0
        %4645 = vmatprep.subr.bf16.mxu0 0
        %4646 = vmatpush2.bf16.msra.mxu0 0
        %4647 = vmatprep.subr.bf16.mxu0 0
        %4648 = vmatpush2.bf16.msra.mxu0 0
        %4649 = vmatprep.subr.bf16.mxu0 0
        %4650 = vmatpush2.bf16.msra.mxu0 0
        %4651 = vmatprep.subr.bf16.mxu0 0
        %4652 = vmatpush2.bf16.msra.mxu0 0
        %4653 = vmatprep.subr.bf16.mxu0 0
        %4654 = vmatpush2.bf16.msra.mxu0 0
        %4655 = vmatprep.mubr.bf16.mxu0 0
        %4656 = vmatmul.mubr.bf16.gmra.mxu0 %v4621
        %v4657 = vpop.f32.mrf.mxu0
        %v4658 = vadd.f32 %v1240, %v4657
        %v4659 = vpop.f32.mrf.mxu0
        %v4660 = vpop.f32.mrf.mxu0
        %v4661 = vpop.f32.mrf.mxu0
        %4662 = vdwg.mxu0
        %v4663 = vpack.c.bf16 %v4184, %v4184
        %4665 = vrot.lane.b32.xlu0 %v4663, 96
        %v4666 = vpop.permute.xlu0 %4665
        %v4668 = vsel %vm936, %v4666, 0
        %4670 = vmatprep.subr.bf16.mxu0 0
        %4671 = vmatpush1.bf16.msra.mxu0 0
        %4672 = vmatprep.subr.bf16.mxu0 0
        %4673 = vmatpush1.bf16.msra.mxu0 0
        %4674 = vmatprep.subr.bf16.mxu0 0
        %4675 = vmatpush1.bf16.msra.mxu0 0
        %4676 = vmatprep.subr.bf16.mxu0 0
        %4677 = vmatpush1.bf16.msra.mxu0 0
        %4678 = vmatprep.subr.bf16.mxu0 0
        %4679 = vmatpush1.bf16.msra.mxu0 0
        %4680 = vmatprep.subr.bf16.mxu0 0
        %4681 = vmatpush1.bf16.msra.mxu0 0
        %4682 = vmatprep.subr.bf16.mxu0 0
        %4683 = vmatpush1.bf16.msra.mxu0 %v1353
        %4684 = vmatprep.subr.bf16.mxu0 0
        %4685 = vmatpush1.bf16.msra.mxu0 %v1352
        %4686 = vmatprep.subr.bf16.mxu0 0
        %4687 = vmatpush2.bf16.msra.mxu0 0
        %4688 = vmatprep.subr.bf16.mxu0 0
        %4689 = vmatpush2.bf16.msra.mxu0 0
        %4690 = vmatprep.subr.bf16.mxu0 0
        %4691 = vmatpush2.bf16.msra.mxu0 0
        %4692 = vmatprep.subr.bf16.mxu0 0
        %4693 = vmatpush2.bf16.msra.mxu0 0
        %4694 = vmatprep.subr.bf16.mxu0 0
        %4695 = vmatpush2.bf16.msra.mxu0 0
        %4696 = vmatprep.subr.bf16.mxu0 0
        %4697 = vmatpush2.bf16.msra.mxu0 0
        %4698 = vmatprep.subr.bf16.mxu0 0
        %4699 = vmatpush2.bf16.msra.mxu0 0
        %4700 = vmatprep.subr.bf16.mxu0 0
        %4701 = vmatpush2.bf16.msra.mxu0 0
        %4702 = vmatprep.mubr.bf16.mxu0 0
        %4703 = vmatmul.mubr.bf16.gmra.mxu0 %v4668
        %v4704 = vpop.f32.mrf.mxu0
        %v4705 = vadd.f32 %v1342, %v4704
        %v4706 = vpop.f32.mrf.mxu0
        %v4707 = vpop.f32.mrf.mxu0
        %v4708 = vpop.f32.mrf.mxu0
        %4709 = vdwg.mxu0
        %v4710 = vadd.f32 %v4658, %v4705
        %v4711 = vxor.u32 %v4710, 2147483648
        %v4712 = vmul.f32 %v4711, 1.442695
        %v4713 = vpow.pop %v4712
        %v4714 = vadd.f32 %v4713, 1.0
        %v4715 = vrcp.pop %v4714
        %v4716 = vmul.f32 1.0, %v4715
        %4718 = vrot.lane.b32.xlu0 %v4705, 64
        %v4719 = vpop.permute.xlu0 %4718
        %v4721 = vmul.f32 %v4716, %v4719
        %4723 = vrot.lane.b32.xlu0 %v4721, 64
        %v4724 = vpop.permute.xlu0 %4723
        %v4726 = vadd.f32 %v4658, %v4724
        %v4727 = vtanh.pop %v4726
        %v4728 = vsub.f32 1.0, %v4716
        %4730 = vrot.lane.b32.xlu0 %v4727, 96
        %v4731 = vpop.permute.xlu0 %4730
        %v4733 = vmul.f32 %v4728, %v4731
        %v4734 = vmul.f32 %v4716, %v4184
        %v4735 = vadd.f32 %v4733, %v4734
        %v4737 = vcombine.high %v4735, %v4735
        %v4739 = vunpack.c.l.s4 1966171168
        %v4740 = vunpack.c.0.s8 %v4739
        %v4741 = vlaneseq
        %v4742 = vshrl.u32 %v4741, 7
        %v4743 = vsub.s32 %v4740, %v4742
        %v4744 = vrot.slane %v4735, %v4743
        %v4746 = vunpack.c.l.s4 1966171168
        %v4747 = vunpack.c.0.s8 %v4746
        %v4748 = vlaneseq
        %v4749 = vshrl.u32 %v4748, 7
        %v4750 = vsub.s32 %v4747, %v4749
        %v4751 = vrot.slane %v4737, %v4750
        %v4752 = vcombine.high %v4744, %v4744
        %v4753 = vcombine.high %v4751, %v4751
        %v4755 = vunpack.c.l.s4 1966171168
        %v4756 = vunpack.c.0.s8 %v4755
        %v4757 = vlaneseq
        %v4758 = vshrl.u32 %v4757, 7
        %v4759 = vsub.s32 %v4756, %v4758
        %v4760 = vrot.slane %v4744, %v4759
        %v4762 = vunpack.c.l.s4 1966171168
        %v4763 = vunpack.c.0.s8 %v4762
        %v4764 = vlaneseq
        %v4765 = vshrl.u32 %v4764, 7
        %v4766 = vsub.s32 %v4763, %v4765
        %v4767 = vrot.slane %v4751, %v4766
        %v4769 = vunpack.c.l.s4 1966171168
        %v4770 = vunpack.c.0.s8 %v4769
        %v4771 = vlaneseq
        %v4772 = vshrl.u32 %v4771, 7
        %v4773 = vsub.s32 %v4770, %v4772
        %v4774 = vrot.slane %v4752, %v4773
        %v4776 = vunpack.c.l.s4 1966171168
        %v4777 = vunpack.c.0.s8 %v4776
        %v4778 = vlaneseq
        %v4779 = vshrl.u32 %v4778, 7
        %v4780 = vsub.s32 %v4777, %v4779
        %v4781 = vrot.slane %v4753, %v4780
        %v4782 = vcombine.high %v4760, %v4760
        %v4783 = vcombine.high %v4767, %v4767
        %v4784 = vcombine.high %v4774, %v4774
        %v4785 = vcombine.high %v4781, %v4781
        %v4786 = vlaneseq
        %v4787 = vshrl.u32 %v4786, 7
        %v4788 = vsub.s32 0, %v4787
        %v4789 = vrot.slane %v4760, %v4788
        %v4790 = vlaneseq
        %v4791 = vshrl.u32 %v4790, 7
        %v4792 = vsub.s32 0, %v4791
        %v4793 = vrot.slane %v4774, %v4792
        %v4794 = vlaneseq
        %v4795 = vshrl.u32 %v4794, 7
        %v4796 = vsub.s32 0, %v4795
        %v4797 = vrot.slane %v4782, %v4796
        %v4798 = vlaneseq
        %v4799 = vshrl.u32 %v4798, 7
        %v4800 = vsub.s32 0, %v4799
        %v4801 = vrot.slane %v4784, %v4800
        %v4802 = vlaneseq
        %v4803 = vshrl.u32 %v4802, 7
        %v4804 = vsub.s32 0, %v4803
        %v4805 = vrot.slane %v4767, %v4804
        %v4806 = vlaneseq
        %v4807 = vshrl.u32 %v4806, 7
        %v4808 = vsub.s32 0, %v4807
        %v4809 = vrot.slane %v4781, %v4808
        %v4810 = vlaneseq
        %v4811 = vshrl.u32 %v4810, 7
        %v4812 = vsub.s32 0, %v4811
        %v4813 = vrot.slane %v4783, %v4812
        %v4814 = vlaneseq
        %v4815 = vshrl.u32 %v4814, 7
        %v4816 = vsub.s32 0, %v4815
        %v4817 = vrot.slane %v4785, %v4816
        %4818 = vrot.lane.b32.xlu0 %v4789, 96
        %v4819 = vpop.permute.xlu0 %4818
        %4820 = vrot.lane.b32.xlu0 %v4793, 96
        %v4821 = vpop.permute.xlu0 %4820
        %4822 = vrot.lane.b32.xlu0 %v4797, 96
        %v4823 = vpop.permute.xlu0 %4822
        %4824 = vrot.lane.b32.xlu0 %v4801, 96
        %v4825 = vpop.permute.xlu0 %4824
        %4826 = vrot.lane.b32.xlu0 %v4805, 96
        %v4827 = vpop.permute.xlu0 %4826
        %4828 = vrot.lane.b32.xlu0 %v4809, 96
        %v4829 = vpop.permute.xlu0 %4828
        %4830 = vrot.lane.b32.xlu0 %v4813, 96
        %v4831 = vpop.permute.xlu0 %4830
        %4832 = vrot.lane.b32.xlu0 %v4817, 96
        %v4833 = vpop.permute.xlu0 %4832
        %4842 = vst.msk [vmem:[#allocation4 + $0x6] sm:$0x1] %vm1535, %v4819
        %4843 = vst.msk [vmem:[#allocation4 + $0xe] sm:$0x1] %vm1535, %v4821
        %4844 = vst.msk [vmem:[#allocation4 + $0x16] sm:$0x1] %vm1535, %v4823
        %4845 = vst.msk [vmem:[#allocation4 + $0x1e] sm:$0x1] %vm1535, %v4825
        %4846 = vst.msk [vmem:[#allocation4 + $0x26] sm:$0x1] %vm1535, %v4827
        %4847 = vst.msk [vmem:[#allocation4 + $0x2e] sm:$0x1] %vm1535, %v4829
        %4848 = vst.msk [vmem:[#allocation4 + $0x36] sm:$0x1] %vm1535, %v4831
        %4849 = vst.msk [vmem:[#allocation4 + $0x3e] sm:$0x1] %vm1535, %v4833
        %4850 = vmatprep.subr.bf16.mxu0 0
        %4851 = vmatpush1.bf16.msra.mxu0 0
        %4852 = vmatprep.subr.bf16.mxu0 0
        %4853 = vmatpush1.bf16.msra.mxu0 0
        %4854 = vmatprep.subr.bf16.mxu0 0
        %4855 = vmatpush1.bf16.msra.mxu0 0
        %4856 = vmatprep.subr.bf16.mxu0 0
        %4857 = vmatpush1.bf16.msra.mxu0 0
        %4858 = vmatprep.subr.bf16.mxu0 0
        %4859 = vmatpush1.bf16.msra.mxu0 0
        %4860 = vmatprep.subr.bf16.mxu0 0
        %4861 = vmatpush1.bf16.msra.mxu0 0
        %4862 = vmatprep.subr.bf16.mxu0 0
        %4863 = vmatpush1.bf16.msra.mxu0 %v933
        %4864 = vmatprep.subr.bf16.mxu0 0
        %4865 = vmatpush1.bf16.msra.mxu0 %v932
        %4866 = vmatprep.subr.bf16.mxu0 0
        %4867 = vmatpush2.bf16.msra.mxu0 0
        %4868 = vmatprep.subr.bf16.mxu0 0
        %4869 = vmatpush2.bf16.msra.mxu0 0
        %4870 = vmatprep.subr.bf16.mxu0 0
        %4871 = vmatpush2.bf16.msra.mxu0 0
        %4872 = vmatprep.subr.bf16.mxu0 0
        %4873 = vmatpush2.bf16.msra.mxu0 0
        %4874 = vmatprep.subr.bf16.mxu0 0
        %4875 = vmatpush2.bf16.msra.mxu0 0
        %4876 = vmatprep.subr.bf16.mxu0 0
        %4877 = vmatpush2.bf16.msra.mxu0 0
        %4878 = vmatprep.subr.bf16.mxu0 0
        %4879 = vmatpush2.bf16.msra.mxu0 0
        %4880 = vmatprep.subr.bf16.mxu0 0
        %4881 = vmatpush2.bf16.msra.mxu0 0
        %4882 = vmatprep.mubr.bf16.mxu0 0
        %4883 = vmatmul.mubr.bf16.gmra.mxu0 %v4621
        %v4884 = vpop.f32.mrf.mxu0
        %v4885 = vadd.f32 %v922, %v4884
        %v4886 = vpop.f32.mrf.mxu0
        %v4887 = vpop.f32.mrf.mxu0
        %v4888 = vpop.f32.mrf.mxu0
        %4889 = vdwg.mxu0
        %v4891 = vrot.slane %v4885, 1
        %v4892 = vrot.slane %v4885, 2
        %v4893 = vrot.slane %v4885, 3
        %v4894 = vrot.slane %v4885, 4
        %v4895 = vrot.slane %v4885, 5
        %v4896 = vrot.slane %v4885, 6
        %v4897 = vrot.slane %v4885, 7
        %v4906 = vadd.f32 %v892, %v4891
        %v4907 = vadd.f32 %v893, %v4892
        %v4908 = vadd.f32 %v894, %v4893
        %v4909 = vadd.f32 %v895, %v4894
        %v4910 = vadd.f32 %v896, %v4895
        %v4911 = vadd.f32 %v897, %v4896
        %v4912 = vadd.f32 %v898, %v4897
        %v4913 = vadd.f32 %v899, %v4885
        %v4914 = vxor.u32 %v4906, 2147483648
        %v4915 = vxor.u32 %v4907, 2147483648
        %v4916 = vxor.u32 %v4908, 2147483648
        %v4917 = vxor.u32 %v4909, 2147483648
        %v4918 = vxor.u32 %v4910, 2147483648
        %v4919 = vxor.u32 %v4911, 2147483648
        %v4920 = vxor.u32 %v4912, 2147483648
        %v4921 = vxor.u32 %v4913, 2147483648
        %v4922 = vmul.f32 %v4914, 1.442695
        %v4923 = vpow.pop %v4922
        %v4924 = vmul.f32 %v4915, 1.442695
        %v4925 = vpow.pop %v4924
        %v4926 = vmul.f32 %v4916, 1.442695
        %v4927 = vpow.pop %v4926
        %v4928 = vmul.f32 %v4917, 1.442695
        %v4929 = vpow.pop %v4928
        %v4930 = vmul.f32 %v4918, 1.442695
        %v4931 = vpow.pop %v4930
        %v4932 = vmul.f32 %v4919, 1.442695
        %v4933 = vpow.pop %v4932
        %v4934 = vmul.f32 %v4920, 1.442695
        %v4935 = vpow.pop %v4934
        %v4936 = vmul.f32 %v4921, 1.442695
        %v4937 = vpow.pop %v4936
        %v4938 = vadd.f32 %v4923, 1.0
        %v4939 = vadd.f32 %v4925, 1.0
        %v4940 = vadd.f32 %v4927, 1.0
        %v4941 = vadd.f32 %v4929, 1.0
        %v4942 = vadd.f32 %v4931, 1.0
        %v4943 = vadd.f32 %v4933, 1.0
        %v4944 = vadd.f32 %v4935, 1.0
        %v4945 = vadd.f32 %v4937, 1.0
        %v4946 = vrcp.pop %v4938
        %v4947 = vmul.f32 1.0, %v4946
        %v4948 = vrcp.pop %v4939
        %v4949 = vmul.f32 1.0, %v4948
        %v4950 = vrcp.pop %v4940
        %v4951 = vmul.f32 1.0, %v4950
        %v4952 = vrcp.pop %v4941
        %v4953 = vmul.f32 1.0, %v4952
        %v4954 = vrcp.pop %v4942
        %v4955 = vmul.f32 1.0, %v4954
        %v4956 = vrcp.pop %v4943
        %v4957 = vmul.f32 1.0, %v4956
        %v4958 = vrcp.pop %v4944
        %v4959 = vmul.f32 1.0, %v4958
        %v4960 = vrcp.pop %v4945
        %v4961 = vmul.f32 1.0, %v4960
        %4962 = vrot.lane.b32.xlu0 %v4891, 64
        %v4963 = vpop.permute.xlu0 %4962
        %4964 = vrot.lane.b32.xlu0 %v4892, 64
        %v4965 = vpop.permute.xlu0 %4964
        %4966 = vrot.lane.b32.xlu0 %v4893, 64
        %v4967 = vpop.permute.xlu0 %4966
        %4968 = vrot.lane.b32.xlu0 %v4894, 64
        %v4969 = vpop.permute.xlu0 %4968
        %4970 = vrot.lane.b32.xlu0 %v4895, 64
        %v4971 = vpop.permute.xlu0 %4970
        %4972 = vrot.lane.b32.xlu0 %v4896, 64
        %v4973 = vpop.permute.xlu0 %4972
        %4974 = vrot.lane.b32.xlu0 %v4897, 64
        %v4975 = vpop.permute.xlu0 %4974
        %4976 = vrot.lane.b32.xlu0 %v4885, 64
        %v4977 = vpop.permute.xlu0 %4976
        %v4986 = vmul.f32 %v4947, %v4963
        %v4987 = vmul.f32 %v4949, %v4965
        %v4988 = vmul.f32 %v4951, %v4967
        %v4989 = vmul.f32 %v4953, %v4969
        %v4990 = vmul.f32 %v4955, %v4971
        %v4991 = vmul.f32 %v4957, %v4973
        %v4992 = vmul.f32 %v4959, %v4975
        %v4993 = vmul.f32 %v4961, %v4977
        %5002 = vrot.lane.b32.xlu0 %v4986, 64
        %v5003 = vpop.permute.xlu0 %5002
        %5004 = vrot.lane.b32.xlu0 %v4987, 64
        %v5005 = vpop.permute.xlu0 %5004
        %5006 = vrot.lane.b32.xlu0 %v4988, 64
        %v5007 = vpop.permute.xlu0 %5006
        %5008 = vrot.lane.b32.xlu0 %v4989, 64
        %v5009 = vpop.permute.xlu0 %5008
        %5010 = vrot.lane.b32.xlu0 %v4990, 64
        %v5011 = vpop.permute.xlu0 %5010
        %5012 = vrot.lane.b32.xlu0 %v4991, 64
        %v5013 = vpop.permute.xlu0 %5012
        %5014 = vrot.lane.b32.xlu0 %v4992, 64
        %v5015 = vpop.permute.xlu0 %5014
        %5016 = vrot.lane.b32.xlu0 %v4993, 64
        %v5017 = vpop.permute.xlu0 %5016
        %v5026 = vadd.f32 %v892, %v5003
        %v5027 = vadd.f32 %v893, %v5005
        %v5028 = vadd.f32 %v894, %v5007
        %v5029 = vadd.f32 %v895, %v5009
        %v5030 = vadd.f32 %v896, %v5011
        %v5031 = vadd.f32 %v897, %v5013
        %v5032 = vadd.f32 %v898, %v5015
        %v5033 = vadd.f32 %v899, %v5017
        %v5034 = vtanh.pop %v5026
        %v5035 = vtanh.pop %v5027
        %v5036 = vtanh.pop %v5028
        %v5037 = vtanh.pop %v5029
        %v5038 = vtanh.pop %v5030
        %v5039 = vtanh.pop %v5031
        %v5040 = vtanh.pop %v5032
        %v5041 = vtanh.pop %v5033
        %v5042 = vsub.f32 1.0, %v4947
        %v5043 = vsub.f32 1.0, %v4949
        %v5044 = vsub.f32 1.0, %v4951
        %v5045 = vsub.f32 1.0, %v4953
        %v5046 = vsub.f32 1.0, %v4955
        %v5047 = vsub.f32 1.0, %v4957
        %v5048 = vsub.f32 1.0, %v4959
        %v5049 = vsub.f32 1.0, %v4961
        %5058 = vrot.lane.b32.xlu0 %v5034, 96
        %v5059 = vpop.permute.xlu0 %5058
        %5060 = vrot.lane.b32.xlu0 %v5035, 96
        %v5061 = vpop.permute.xlu0 %5060
        %5062 = vrot.lane.b32.xlu0 %v5036, 96
        %v5063 = vpop.permute.xlu0 %5062
        %5064 = vrot.lane.b32.xlu0 %v5037, 96
        %v5065 = vpop.permute.xlu0 %5064
        %5066 = vrot.lane.b32.xlu0 %v5038, 96
        %v5067 = vpop.permute.xlu0 %5066
        %5068 = vrot.lane.b32.xlu0 %v5039, 96
        %v5069 = vpop.permute.xlu0 %5068
        %5070 = vrot.lane.b32.xlu0 %v5040, 96
        %v5071 = vpop.permute.xlu0 %5070
        %5072 = vrot.lane.b32.xlu0 %v5041, 96
        %v5073 = vpop.permute.xlu0 %5072
        %v5082 = vmul.f32 %v5042, %v5059
        %v5083 = vmul.f32 %v5043, %v5061
        %v5084 = vmul.f32 %v5044, %v5063
        %v5085 = vmul.f32 %v5045, %v5065
        %v5086 = vmul.f32 %v5046, %v5067
        %v5087 = vmul.f32 %v5047, %v5069
        %v5088 = vmul.f32 %v5048, %v5071
        %v5089 = vmul.f32 %v5049, %v5073
        %v5098 = vrot.slane %v4571, 7
        %v5099 = vrot.slane %v4572, 7
        %v5100 = vrot.slane %v4573, 7
        %v5101 = vrot.slane %v4574, 7
        %v5102 = vrot.slane %v4575, 7
        %v5103 = vrot.slane %v4576, 7
        %v5104 = vrot.slane %v4577, 7
        %v5105 = vrot.slane %v4578, 7
        %v5114 = vmul.f32 %v4947, %v5098
        %v5115 = vmul.f32 %v4949, %v5099
        %v5116 = vmul.f32 %v4951, %v5100
        %v5117 = vmul.f32 %v4953, %v5101
        %v5118 = vmul.f32 %v4955, %v5102
        %v5119 = vmul.f32 %v4957, %v5103
        %v5120 = vmul.f32 %v4959, %v5104
        %v5121 = vmul.f32 %v4961, %v5105
        %v5122 = vadd.f32 %v5082, %v5114
        %v5123 = vadd.f32 %v5083, %v5115
        %v5124 = vadd.f32 %v5084, %v5116
        %v5125 = vadd.f32 %v5085, %v5117
        %v5126 = vadd.f32 %v5086, %v5118
        %v5127 = vadd.f32 %v5087, %v5119
        %v5128 = vadd.f32 %v5088, %v5120
        %v5129 = vadd.f32 %v5089, %v5121
        %v5130 = vpack.c.bf16 %v5122, %v5122
        %v5131 = vpack.c.bf16 %v5123, %v5123
        %v5132 = vpack.c.bf16 %v5124, %v5124
        %v5133 = vpack.c.bf16 %v5125, %v5125
        %v5134 = vpack.c.bf16 %v5126, %v5126
        %v5135 = vpack.c.bf16 %v5127, %v5127
        %v5136 = vpack.c.bf16 %v5128, %v5128
        %v5137 = vpack.c.bf16 %v5129, %v5129
        %v5146 = vunpack.c.l.b16 %v5130
        %v5147 = vunpack.c.l.b16 %v5131
        %v5148 = vunpack.c.l.b16 %v5132
        %v5149 = vunpack.c.l.b16 %v5133
        %v5150 = vunpack.c.l.b16 %v5134
        %v5151 = vunpack.c.l.b16 %v5135
        %v5152 = vunpack.c.l.b16 %v5136
        %v5153 = vunpack.c.l.b16 %v5137
        %v5154 = vrot.slane %v5146, 7
        %v5155 = vrot.slane %v5147, 6
        %v5156 = vsel %vm1259, %v5155, %v5154
        %v5157 = vrot.slane %v5148, 5
        %v5158 = vsel %vm1262, %v5157, %v5156
        %v5159 = vrot.slane %v5149, 4
        %v5160 = vsel %vm1265, %v5159, %v5158
        %v5161 = vrot.slane %v5150, 3
        %v5162 = vsel %vm1268, %v5161, %v5160
        %v5163 = vrot.slane %v5151, 2
        %v5164 = vsel %vm1271, %v5163, %v5162
        %v5165 = vrot.slane %v5152, 1
        %v5166 = vsel %vm1274, %v5165, %v5164
        %v5167 = vsel %vm1277, %v5153, %v5166
        %v5168 = vpack.c.b16 %v5167, %v5167
        %5169 = vrot.lane.b32.xlu0 %v5168, 96
        %v5170 = vpop.permute.xlu0 %5169
        %v5172 = vsel %vm936, %v5170, 0
        %5174 = vmatprep.subr.bf16.mxu0 0
        %5175 = vmatpush1.bf16.msra.mxu0 0
        %5176 = vmatprep.subr.bf16.mxu0 0
        %5177 = vmatpush1.bf16.msra.mxu0 0
        %5178 = vmatprep.subr.bf16.mxu0 0
        %5179 = vmatpush1.bf16.msra.mxu0 0
        %5180 = vmatprep.subr.bf16.mxu0 0
        %5181 = vmatpush1.bf16.msra.mxu0 0
        %5182 = vmatprep.subr.bf16.mxu0 0
        %5183 = vmatpush1.bf16.msra.mxu0 0
        %5184 = vmatprep.subr.bf16.mxu0 0
        %5185 = vmatpush1.bf16.msra.mxu0 0
        %5186 = vmatprep.subr.bf16.mxu0 0
        %5187 = vmatpush1.bf16.msra.mxu0 %v1291
        %5188 = vmatprep.subr.bf16.mxu0 0
        %5189 = vmatpush1.bf16.msra.mxu0 %v1290
        %5190 = vmatprep.subr.bf16.mxu0 0
        %5191 = vmatpush2.bf16.msra.mxu0 0
        %5192 = vmatprep.subr.bf16.mxu0 0
        %5193 = vmatpush2.bf16.msra.mxu0 0
        %5194 = vmatprep.subr.bf16.mxu0 0
        %5195 = vmatpush2.bf16.msra.mxu0 0
        %5196 = vmatprep.subr.bf16.mxu0 0
        %5197 = vmatpush2.bf16.msra.mxu0 0
        %5198 = vmatprep.subr.bf16.mxu0 0
        %5199 = vmatpush2.bf16.msra.mxu0 0
        %5200 = vmatprep.subr.bf16.mxu0 0
        %5201 = vmatpush2.bf16.msra.mxu0 0
        %5202 = vmatprep.subr.bf16.mxu0 0
        %5203 = vmatpush2.bf16.msra.mxu0 0
        %5204 = vmatprep.subr.bf16.mxu0 0
        %5205 = vmatpush2.bf16.msra.mxu0 0
        %5206 = vmatprep.mubr.bf16.mxu0 0
        %5207 = vmatmul.mubr.bf16.gmra.mxu0 %v5172
        %v5208 = vpop.f32.mrf.mxu0
        %v5209 = vadd.f32 %v1240, %v5208
        %v5210 = vpop.f32.mrf.mxu0
        %v5211 = vpop.f32.mrf.mxu0
        %v5212 = vpop.f32.mrf.mxu0
        %5213 = vdwg.mxu0
        %v5214 = vpack.c.bf16 %v4735, %v4735
        %5216 = vrot.lane.b32.xlu0 %v5214, 96
        %v5217 = vpop.permute.xlu0 %5216
        %v5219 = vsel %vm936, %v5217, 0
        %5221 = vmatprep.subr.bf16.mxu0 0
        %5222 = vmatpush1.bf16.msra.mxu0 0
        %5223 = vmatprep.subr.bf16.mxu0 0
        %5224 = vmatpush1.bf16.msra.mxu0 0
        %5225 = vmatprep.subr.bf16.mxu0 0
        %5226 = vmatpush1.bf16.msra.mxu0 0
        %5227 = vmatprep.subr.bf16.mxu0 0
        %5228 = vmatpush1.bf16.msra.mxu0 0
        %5229 = vmatprep.subr.bf16.mxu0 0
        %5230 = vmatpush1.bf16.msra.mxu0 0
        %5231 = vmatprep.subr.bf16.mxu0 0
        %5232 = vmatpush1.bf16.msra.mxu0 0
        %5233 = vmatprep.subr.bf16.mxu0 0
        %5234 = vmatpush1.bf16.msra.mxu0 %v1353
        %5235 = vmatprep.subr.bf16.mxu0 0
        %5236 = vmatpush1.bf16.msra.mxu0 %v1352
        %5237 = vmatprep.subr.bf16.mxu0 0
        %5238 = vmatpush2.bf16.msra.mxu0 0
        %5239 = vmatprep.subr.bf16.mxu0 0
        %5240 = vmatpush2.bf16.msra.mxu0 0
        %5241 = vmatprep.subr.bf16.mxu0 0
        %5242 = vmatpush2.bf16.msra.mxu0 0
        %5243 = vmatprep.subr.bf16.mxu0 0
        %5244 = vmatpush2.bf16.msra.mxu0 0
        %5245 = vmatprep.subr.bf16.mxu0 0
        %5246 = vmatpush2.bf16.msra.mxu0 0
        %5247 = vmatprep.subr.bf16.mxu0 0
        %5248 = vmatpush2.bf16.msra.mxu0 0
        %5249 = vmatprep.subr.bf16.mxu0 0
        %5250 = vmatpush2.bf16.msra.mxu0 0
        %5251 = vmatprep.subr.bf16.mxu0 0
        %5252 = vmatpush2.bf16.msra.mxu0 0
        %5253 = vmatprep.mubr.bf16.mxu0 0
        %5254 = vmatmul.mubr.bf16.gmra.mxu0 %v5219
        %v5255 = vpop.f32.mrf.mxu0
        %v5256 = vadd.f32 %v1342, %v5255
        %v5257 = vpop.f32.mrf.mxu0
        %v5258 = vpop.f32.mrf.mxu0
        %v5259 = vpop.f32.mrf.mxu0
        %5260 = vdwg.mxu0
        %v5261 = vadd.f32 %v5209, %v5256
        %v5262 = vxor.u32 %v5261, 2147483648
        %v5263 = vmul.f32 %v5262, 1.442695
        %v5264 = vpow.pop %v5263
        %v5265 = vadd.f32 %v5264, 1.0
        %v5266 = vrcp.pop %v5265
        %v5267 = vmul.f32 1.0, %v5266
        %5269 = vrot.lane.b32.xlu0 %v5256, 64
        %v5270 = vpop.permute.xlu0 %5269
        %v5272 = vmul.f32 %v5267, %v5270
        %5274 = vrot.lane.b32.xlu0 %v5272, 64
        %v5275 = vpop.permute.xlu0 %5274
        %v5277 = vadd.f32 %v5209, %v5275
        %v5278 = vtanh.pop %v5277
        %v5279 = vsub.f32 1.0, %v5267
        %5281 = vrot.lane.b32.xlu0 %v5278, 96
        %v5282 = vpop.permute.xlu0 %5281
        %v5284 = vmul.f32 %v5279, %v5282
        %v5285 = vmul.f32 %v5267, %v4735
        %v5286 = vadd.f32 %v5284, %v5285
        %v5288 = vcombine.high %v5286, %v5286
        %v5290 = vunpack.c.l.s4 1966171168
        %v5291 = vunpack.c.0.s8 %v5290
        %v5292 = vlaneseq
        %v5293 = vshrl.u32 %v5292, 7
        %v5294 = vsub.s32 %v5291, %v5293
        %v5295 = vrot.slane %v5286, %v5294
        %v5297 = vunpack.c.l.s4 1966171168
        %v5298 = vunpack.c.0.s8 %v5297
        %v5299 = vlaneseq
        %v5300 = vshrl.u32 %v5299, 7
        %v5301 = vsub.s32 %v5298, %v5300
        %v5302 = vrot.slane %v5288, %v5301
        %v5303 = vcombine.high %v5295, %v5295
        %v5304 = vcombine.high %v5302, %v5302
        %v5306 = vunpack.c.l.s4 1966171168
        %v5307 = vunpack.c.0.s8 %v5306
        %v5308 = vlaneseq
        %v5309 = vshrl.u32 %v5308, 7
        %v5310 = vsub.s32 %v5307, %v5309
        %v5311 = vrot.slane %v5295, %v5310
        %v5313 = vunpack.c.l.s4 1966171168
        %v5314 = vunpack.c.0.s8 %v5313
        %v5315 = vlaneseq
        %v5316 = vshrl.u32 %v5315, 7
        %v5317 = vsub.s32 %v5314, %v5316
        %v5318 = vrot.slane %v5302, %v5317
        %v5320 = vunpack.c.l.s4 1966171168
        %v5321 = vunpack.c.0.s8 %v5320
        %v5322 = vlaneseq
        %v5323 = vshrl.u32 %v5322, 7
        %v5324 = vsub.s32 %v5321, %v5323
        %v5325 = vrot.slane %v5303, %v5324
        %v5327 = vunpack.c.l.s4 1966171168
        %v5328 = vunpack.c.0.s8 %v5327
        %v5329 = vlaneseq
        %v5330 = vshrl.u32 %v5329, 7
        %v5331 = vsub.s32 %v5328, %v5330
        %v5332 = vrot.slane %v5304, %v5331
        %v5333 = vcombine.high %v5311, %v5311
        %v5334 = vcombine.high %v5318, %v5318
        %v5335 = vcombine.high %v5325, %v5325
        %v5336 = vcombine.high %v5332, %v5332
        %v5337 = vlaneseq
        %v5338 = vshrl.u32 %v5337, 7
        %v5339 = vsub.s32 0, %v5338
        %v5340 = vrot.slane %v5311, %v5339
        %v5341 = vlaneseq
        %v5342 = vshrl.u32 %v5341, 7
        %v5343 = vsub.s32 0, %v5342
        %v5344 = vrot.slane %v5325, %v5343
        %v5345 = vlaneseq
        %v5346 = vshrl.u32 %v5345, 7
        %v5347 = vsub.s32 0, %v5346
        %v5348 = vrot.slane %v5333, %v5347
        %v5349 = vlaneseq
        %v5350 = vshrl.u32 %v5349, 7
        %v5351 = vsub.s32 0, %v5350
        %v5352 = vrot.slane %v5335, %v5351
        %v5353 = vlaneseq
        %v5354 = vshrl.u32 %v5353, 7
        %v5355 = vsub.s32 0, %v5354
        %v5356 = vrot.slane %v5318, %v5355
        %v5357 = vlaneseq
        %v5358 = vshrl.u32 %v5357, 7
        %v5359 = vsub.s32 0, %v5358
        %v5360 = vrot.slane %v5332, %v5359
        %v5361 = vlaneseq
        %v5362 = vshrl.u32 %v5361, 7
        %v5363 = vsub.s32 0, %v5362
        %v5364 = vrot.slane %v5334, %v5363
        %v5365 = vlaneseq
        %v5366 = vshrl.u32 %v5365, 7
        %v5367 = vsub.s32 0, %v5366
        %v5368 = vrot.slane %v5336, %v5367
        %5369 = vrot.lane.b32.xlu0 %v5340, 96
        %v5370 = vpop.permute.xlu0 %5369
        %5371 = vrot.lane.b32.xlu0 %v5344, 96
        %v5372 = vpop.permute.xlu0 %5371
        %5373 = vrot.lane.b32.xlu0 %v5348, 96
        %v5374 = vpop.permute.xlu0 %5373
        %5375 = vrot.lane.b32.xlu0 %v5352, 96
        %v5376 = vpop.permute.xlu0 %5375
        %5377 = vrot.lane.b32.xlu0 %v5356, 96
        %v5378 = vpop.permute.xlu0 %5377
        %5379 = vrot.lane.b32.xlu0 %v5360, 96
        %v5380 = vpop.permute.xlu0 %5379
        %5381 = vrot.lane.b32.xlu0 %v5364, 96
        %v5382 = vpop.permute.xlu0 %5381
        %5383 = vrot.lane.b32.xlu0 %v5368, 96
        %v5384 = vpop.permute.xlu0 %5383
        %5393 = vst.msk [vmem:[#allocation4 + $0x7] sm:$0x1] %vm1535, %v5370
        %5394 = vst.msk [vmem:[#allocation4 + $0xf] sm:$0x1] %vm1535, %v5372
        %5395 = vst.msk [vmem:[#allocation4 + $0x17] sm:$0x1] %vm1535, %v5374
        %5396 = vst.msk [vmem:[#allocation4 + $0x1f] sm:$0x1] %vm1535, %v5376
        %5397 = vst.msk [vmem:[#allocation4 + $0x27] sm:$0x1] %vm1535, %v5378
        %5398 = vst.msk [vmem:[#allocation4 + $0x2f] sm:$0x1] %vm1535, %v5380
        %5399 = vst.msk [vmem:[#allocation4 + $0x37] sm:$0x1] %vm1535, %v5382
        %5400 = vst.msk [vmem:[#allocation4 + $0x3f] sm:$0x1] %vm1535, %v5384
        %v5409 = vrot.slane %v5123, 7
        %v5410 = vrot.slane %v5124, 6
        %v5411 = vsel %vm1259, %v5410, %v5409
        %v5412 = vrot.slane %v5125, 5
        %v5413 = vsel %vm1262, %v5412, %v5411
        %v5414 = vrot.slane %v5126, 4
        %v5415 = vsel %vm1265, %v5414, %v5413
        %v5416 = vrot.slane %v5127, 3
        %v5417 = vsel %vm1268, %v5416, %v5415
        %v5418 = vrot.slane %v5128, 2
        %v5419 = vsel %vm1271, %v5418, %v5417
        %v5420 = vrot.slane %v5129, 1
        %v5421 = vsel %vm1274, %v5420, %v5419
        %5422 = vrot.lane.b32.xlu0 %v5122, 96
        %v5423 = vpop.permute.xlu0 %5422
        %5424 = vrot.lane.b32.xlu0 %v5421, 96
        %v5425 = vpop.permute.xlu0 %5424
        %vm5428 = vcmask 261127
        %5429 = vst.msk [vmem:[#allocation2 - $0x7] sm:$0x80] %vm5428, %v5423
        %vm5430 = vcmask 260096
        %5431 = vst.msk [vmem:[#allocation2 + $0x1] sm:$0x7f] %vm5430, %v5425
        %5432 = vrot.lane.b32.xlu0 %v5286, 96
        %v5433 = vpop.permute.xlu0 %5432
        %5435 = vst.msk [vmem:[#allocation3] sm:$0xff] %vm936, %v5433
        %v5436 = vld [vmem:[#allocation4] sm:$0xff]
        %v5437 = vld [vmem:[#allocation4 + $0x8] sm:$0xff]
        %v5438 = vld [vmem:[#allocation4 + $0x10] sm:$0xff]
        %v5439 = vld [vmem:[#allocation4 + $0x18] sm:$0xff]
        %v5440 = vld [vmem:[#allocation4 + $0x20] sm:$0xff]
        %v5441 = vld [vmem:[#allocation4 + $0x28] sm:$0xff]
        %v5442 = vld [vmem:[#allocation4 + $0x30] sm:$0xff]
        %v5443 = vld [vmem:[#allocation4 + $0x38] sm:$0xff]
        %v5444 = vpack.c.bf16 %v5437, %v5436
        %v5445 = vpack.c.bf16 %v5439, %v5438
        %v5446 = vpack.c.bf16 %v5441, %v5440
        %v5447 = vpack.c.bf16 %v5443, %v5442
        %v5448 = vld [vmem:[#allocation18] sm:$0xff]
        %v5449 = vld [vmem:[#allocation18 + $0x8] sm:$0xff]
        %v5450 = vld [vmem:[#allocation18 + $0x10] sm:$0xff]
        %v5451 = vld [vmem:[#allocation18 + $0x18] sm:$0xff]
        %v5452 = vld [vmem:[%s12] sm:$0x3]
        %v5454 = vlaneseq
        %v5455 = vshrl.u32 %v5454, 7
        %v5456 = vsub.s32 0, %v5455
        %v5457 = vrot.slane %v5452, %v5456
        %v5458 = vlaneseq
        %v5459 = vshrl.u32 %v5458, 7
        %v5460 = vsub.s32 1, %v5459
        %v5461 = vrot.slane %v5452, %v5460
        %v5468 = vunpack.c.l.b16 %v5448
        %v5469 = vunpack.c.h.b16 %v5448
        %v5470 = vunpack.c.l.b16 %v5449
        %v5471 = vunpack.c.h.b16 %v5449
        %v5472 = vunpack.c.l.b16 %v5450
        %v5473 = vunpack.c.h.b16 %v5450
        %v5474 = vunpack.c.l.b16 %v5451
        %v5475 = vunpack.c.h.b16 %v5451
        %v5476 = vpack.c.b16 %v5470, %v5468
        %v5477 = vpack.c.b16 %v5471, %v5469
        %v5478 = vpack.c.b16 %v5474, %v5472
        %v5479 = vpack.c.b16 %v5475, %v5473
        %v5485 = vsel %vm936, %v5444, 0
        %v5488 = vsel %vm936, %v5445, 0
        %v5491 = vsel %vm936, %v5446, 0
        %v5494 = vsel %vm936, %v5447, 0
        %5496 = vmatprep.subr.bf16.mxu0 0
        %5497 = vmatpush1.bf16.msra.mxu0 0
        %5498 = vmatprep.subr.bf16.mxu0 0
        %5499 = vmatpush1.bf16.msra.mxu0 0
        %5500 = vmatprep.subr.bf16.mxu0 0
        %5501 = vmatpush1.bf16.msra.mxu0 0
        %5502 = vmatprep.subr.bf16.mxu0 0
        %5503 = vmatpush1.bf16.msra.mxu0 0
        %5504 = vmatprep.subr.bf16.mxu0 0
        %5505 = vmatpush1.bf16.msra.mxu0 0
        %5506 = vmatprep.subr.bf16.mxu0 0
        %5507 = vmatpush1.bf16.msra.mxu0 0
        %5508 = vmatprep.subr.bf16.mxu0 %v5479
        %5509 = vmatpush1.bf16.msra.mxu0 %v5478
        %5510 = vmatprep.subr.bf16.mxu0 %v5477
        %5511 = vmatpush1.bf16.msra.mxu0 %v5476
        %5512 = vmatprep.subr.bf16.mxu0 0
        %5513 = vmatpush2.bf16.msra.mxu0 0
        %5514 = vmatprep.subr.bf16.mxu0 0
        %5515 = vmatpush2.bf16.msra.mxu0 0
        %5516 = vmatprep.subr.bf16.mxu0 0
        %5517 = vmatpush2.bf16.msra.mxu0 0
        %5518 = vmatprep.subr.bf16.mxu0 0
        %5519 = vmatpush2.bf16.msra.mxu0 0
        %5520 = vmatprep.subr.bf16.mxu0 0
        %5521 = vmatpush2.bf16.msra.mxu0 0
        %5522 = vmatprep.subr.bf16.mxu0 0
        %5523 = vmatpush2.bf16.msra.mxu0 0
        %5524 = vmatprep.subr.bf16.mxu0 0
        %5525 = vmatpush2.bf16.msra.mxu0 0
        %5526 = vmatprep.subr.bf16.mxu0 0
        %5527 = vmatpush2.bf16.msra.mxu0 0
        %5528 = vmatprep.mubr.bf16.mxu0 0
        %5529 = vmatmul.mubr.bf16.gmra.mxu0 %v5485
        %v5530 = vpop.f32.mrf.mxu0
        %v5531 = vadd.f32 %v5457, %v5530
        %v5532 = vpop.f32.mrf.mxu0
        %v5533 = vadd.f32 %v5461, %v5532
        %v5534 = vpop.f32.mrf.mxu0
        %v5535 = vadd.f32 %v5457, %v5534
        %v5536 = vpop.f32.mrf.mxu0
        %v5537 = vadd.f32 %v5461, %v5536
        %5538 = vmatprep.mubr.bf16.mxu0 0
        %5539 = vmatmul.mubr.bf16.gmra.mxu0 %v5488
        %v5540 = vpop.f32.mrf.mxu0
        %v5541 = vadd.f32 %v5457, %v5540
        %v5542 = vpop.f32.mrf.mxu0
        %v5543 = vadd.f32 %v5461, %v5542
        %v5544 = vpop.f32.mrf.mxu0
        %v5545 = vadd.f32 %v5457, %v5544
        %v5546 = vpop.f32.mrf.mxu0
        %v5547 = vadd.f32 %v5461, %v5546
        %5548 = vmatprep.mubr.bf16.mxu0 0
        %5549 = vmatmul.mubr.bf16.gmra.mxu0 %v5491
        %v5550 = vpop.f32.mrf.mxu0
        %v5551 = vadd.f32 %v5457, %v5550
        %v5552 = vpop.f32.mrf.mxu0
        %v5553 = vadd.f32 %v5461, %v5552
        %v5554 = vpop.f32.mrf.mxu0
        %v5555 = vadd.f32 %v5457, %v5554
        %v5556 = vpop.f32.mrf.mxu0
        %v5557 = vadd.f32 %v5461, %v5556
        %5558 = vmatprep.mubr.bf16.mxu0 0
        %5559 = vmatmul.mubr.bf16.gmra.mxu0 %v5494
        %v5560 = vpop.f32.mrf.mxu0
        %v5561 = vadd.f32 %v5457, %v5560
        %v5562 = vpop.f32.mrf.mxu0
        %v5563 = vadd.f32 %v5461, %v5562
        %v5564 = vpop.f32.mrf.mxu0
        %v5565 = vadd.f32 %v5457, %v5564
        %v5566 = vpop.f32.mrf.mxu0
        %v5567 = vadd.f32 %v5461, %v5566
        %5568 = vdwg.mxu0
        %5569 = vst [vmem:[%s704] sm:$0xff] %v5531
        %5570 = vst [vmem:[%s704 + $0x8] sm:$0xff] %v5533
        %5571 = vst [vmem:[%s704 + $0x10] sm:$0xff] %v5535
        %5572 = vst [vmem:[%s704 + $0x18] sm:$0xff] %v5537
        %5573 = vst [vmem:[%s704 + $0x20] sm:$0xff] %v5541
        %5574 = vst [vmem:[%s704 + $0x28] sm:$0xff] %v5543
        %5575 = vst [vmem:[%s704 + $0x30] sm:$0xff] %v5545
        %5576 = vst [vmem:[%s704 + $0x38] sm:$0xff] %v5547
        %5577 = vst [vmem:[%s704 + $0x40] sm:$0xff] %v5551
        %5578 = vst [vmem:[%s704 + $0x48] sm:$0xff] %v5553
        %5579 = vst [vmem:[%s704 + $0x50] sm:$0xff] %v5555
        %5580 = vst [vmem:[%s704 + $0x58] sm:$0xff] %v5557
        %5581 = vst [vmem:[%s704 + $0x60] sm:$0xff] %v5561
        %5582 = vst [vmem:[%s704 + $0x68] sm:$0xff] %v5563
        %5583 = vst [vmem:[%s704 + $0x70] sm:$0xff] %v5565
        %5584 = vst [vmem:[%s704 + $0x78] sm:$0xff] %v5567
        %s5585 = sand.u32 %s340, 1
        %s5586 = scalar_lea.sflag [#allocation9], %s5585
        %s5587 = sand.u32 %s340, 1
        %s5588 = smul.addr %s5587, 128
        %s5589 = scalar_lea.vmem [#allocation19], %s5588
        // Predicated region
        $region181: #{tpu_custom_call.1} parent=139 // pred_check
          %p5590 = pneg %p350
        $region182: #{tpu_custom_call.1} parent=139 // pred_check_branch
          %5592 = sbr.rel (%p5590) target = $region184
        $region183: #{tpu_custom_call.1} parent=139 // pred_region
          %s5593 = smul.u32 8, %s35
          %s5595 = ssub.s32 2048, 2048
          %5596 = vsyncadd %s5586, %s5595
          %s5597 = smul.addr %s36, 2
          %s5598 = smul.addr %s5593, 4
          %s5599 = sadd.s32 %s5597, %s5598
          %s5600 = smul.addr %s5599, 128
          %s5601 = scalar_lea.hbm %s13, %s5600
          %s5602 = sshll.u32 %s5589, 4
          %s5603 = int_to_ptr.vmem [resolvable:$true] %s5602
          %5608 = dma.vmem_to_hbm [thread:$0]  %s5603, 2048, %s5601, %s5586, 256, 512, 16
        $region184: #{tpu_custom_call.1} parent=139 // pred_fallthru
          _
      $region140: #{tpu_custom_call.1} parent=5 // pred_fallthru
        _
      %p5609 = scmp.le.s32.totalorder 2, %s26
      // Predicated region
      $region185: #{tpu_custom_call.1} parent=5 // pred_check
        %p5610 = pneg %p5609
      $region186: #{tpu_custom_call.1} parent=5 // pred_check_branch
        %5612 = sbr.rel (%p5610) target = $region188
      $region187: #{tpu_custom_call.1} parent=5 // pred_region
        %s5613 = ssub.s32 %s26, 2
        // Predicated region
        $region189: #{tpu_custom_call.1} parent=187 // pred_check
          %p5614 = pneg %p356
        $region190: #{tpu_custom_call.1} parent=187 // pred_check_branch
          %5616 = sbr.rel (%p5614) target = $region192
        $region191: #{tpu_custom_call.1} parent=187 // pred_region
          %s5617 = sand.u32 %s341, 1
          %s5618 = scalar_lea.sflag [#allocation9], %s5617
          %s5619 = sand.u32 %s341, 1
          %s5620 = smul.addr %s5619, 128
          %s5621 = scalar_lea.vmem [#allocation19], %s5620
          %5622 = dma.done %s5618, 2048
        $region192: #{tpu_custom_call.1} parent=187 // pred_fallthru
          _
      $region188: #{tpu_custom_call.1} parent=5 // pred_fallthru
        _
    $region6: #{tpu_custom_call.1} parent=1 // loop_footer
      %s30 = sadd.s32 1, %s26
    $region7: #{tpu_custom_call.1} parent=1 // loop_footer_branch
      %25 = sbr.rel target = $region3
    $region8: #{tpu_custom_call.1} parent=1 // loop_exit
      _
    %5623 = vsyncpa [#allocation8], 1
    %s5624 = scalar_lea.sflag [#allocation8], 1
    %5625 = vsyncpa %s5624, 1
    %5626 = vsyncpa [#allocation11], 1
    %5627 = vsyncpa [#allocation14], 1
    %5628 = vsyncpa [#allocation17], 1
    %5629 = vsyncpa [#allocation9], 1
    %s5630 = scalar_lea.sflag [#allocation9], 1
    %5631 = vsyncpa %s5630, 1

</llo_original>
